<compile_context>
chip_gen: v7x
topology: tpu7x:2x2x1
jax: 0.10.0
libtpu: 0.0.40
codegen_flags: <defaults>
</compile_context>

<pallas_src>
import numpy as np

import jax
import jax.numpy as jnp
from jax import lax
from jax.experimental import pallas as pl
from jax.experimental.pallas import tpu as pltpu

P_DROP = 0.3
LEAK = 0.2

# Flip to True on real TPU hardware: the on-chip PRNG makes mask generation
# near-free.  Kept False by default because it has no CPU/interpret lowering.
USE_HW_PRNG = False

# keep an element iff its hashed uint32 >= threshold  =>  P(keep) = 1 - P_DROP
_THRESH = np.uint32(int(round(P_DROP * float(2 ** 32))))
_M1 = np.uint32(0x9E3779B9)
_M2 = np.uint32(0x85EBCA6B)
_M3 = np.uint32(0x7FEB352D)


def _leaky_relu(x):
    # mul + max (2 VPU ops, bf16-packed on v6e/v7x) instead of cmp+mul+select.
    return jnp.maximum(x, LEAK * x)


def _keep_mask_hash(shape, salt):
    """Portable stateless hash -> Bernoulli(1 - P_DROP) keep mask.

    Row/col mixing terms are computed on (rows,1)/(1,cols) vectors so only the
    combine + one xorshift-mul-xorshift round + compare run at full width
    (~7 int32 VALU ops per element)."""
    rows, cols = shape
    r = lax.broadcasted_iota(jnp.int32, (rows, 1), 0).astype(jnp.uint32)
    c = lax.broadcasted_iota(jnp.int32, (1, cols), 1).astype(jnp.uint32)
    rh = r * _M1 + salt          # cheap: (rows, 1)
    ch = c * _M2                 # cheap: (1, cols)
    x = rh + ch                  # full width from here on
    x = x ^ (x >> 15)
    x = x * _M3
    x = x ^ (x >> 13)
    return x >= _THRESH


def _keep_mask_hw(shape):
    bits = pltpu.bitcast(pltpu.prng_random_bits(shape), jnp.uint32)
    return bits >= _THRESH


def _dropout(h, salt):
    # The 1/(1-p) rescale is folded into the next layer's weights
    # (prepare_params), so here we only zero the dropped lanes (bf16 select).
    if USE_HW_PRNG:
        keep = _keep_mask_hw(h.shape)
    else:
        keep = _keep_mask_hash(h.shape, salt)
    return jnp.where(keep, h, 0)


def discriminator_kernel(seed_ref, x_ref,
                         w1_ref, b1_ref, w2_ref, b2_ref,
                         w3_ref, b3_ref, w4_ref, b4_ref,
                         out_ref):
    seed = seed_ref[0].astype(jnp.uint32)
    tile = pl.program_id(0).astype(jnp.uint32)
    base = (seed * _M1) ^ ((tile + np.uint32(1)) * _M3)

    if USE_HW_PRNG:
        pltpu.prng_seed(seed_ref[0], pl.program_id(0))

    x = x_ref[...]                                   # already bf16

    # fc1
    h = jnp.dot(x, w1_ref[...], preferred_element_type=jnp.float32) + b1_ref[...]
    h = _dropout(_leaky_relu(h.astype(jnp.bfloat16)), base + np.uint32(0x1B873593))

    # fc2 (dropout rescale folded into w2)
    h = jnp.dot(h, w2_ref[...], preferred_element_type=jnp.float32) + b2_ref[...]
    h = _dropout(_leaky_relu(h.astype(jnp.bfloat16)), base + np.uint32(0x2545F491))

    # fc3 (dropout rescale folded into w3)
    h = jnp.dot(h, w3_ref[...], preferred_element_type=jnp.float32) + b3_ref[...]
    h = _dropout(_leaky_relu(h.astype(jnp.bfloat16)), base + np.uint32(0x68E31DA4))

    # fc4: single output column -> VPU multiply + XLU lane reduce (f32 accum).
    # w4_ref is a (1, 256) f32 row (dropout rescale already folded in).
    z = jnp.sum(h * w4_ref[...], axis=-1, keepdims=True) + b4_ref[...]   # (tb, 1)

    # numerically stable sigmoid via tanh (EUP op, never overflows)
    sig = 0.5 * (jnp.tanh(0.5 * z) + 1.0)

    # lane-dense (1, tb) row store (avoids masked 1-wide column stores)
    out_ref[...] = sig.reshape((1, -1))


def init_params(key, d_input_dim):
    """PyTorch-equivalent nn.Linear params, W as (in, out), b as (1, out), float32."""
    dims = [d_input_dim, 1024, 512, 256, 1]
    params = []
    for i in range(4):
        key, wk, bk = jax.random.split(key, 3)
        fan_in, fan_out = dims[i], dims[i + 1]
        bound = 1.0 / (fan_in ** 0.5)
        w = jax.random.uniform(wk, (fan_in, fan_out), jnp.float32, -bound, bound)
        b = jax.random.uniform(bk, (1, fan_out), jnp.float32, -bound, bound)
        params += [w, b]
    return params


def prepare_params(params):
    """One-time host-side prep: fold the dropout 1/(1-p) rescale into the
    downstream weights, cast big weights to bf16, and lay fc4 out as a
    (1, 256) f32 row for the in-kernel lane reduce.  No K padding: block
    shapes use the full K dim, which is always legal."""
    w1, b1, w2, b2, w3, b3, w4, b4 = params
    inv_keep = 1.0 / (1.0 - P_DROP)
    return [
        w1.astype(jnp.bfloat16), b1,
        (w2 * inv_keep).astype(jnp.bfloat16), b2,
        (w3 * inv_keep).astype(jnp.bfloat16), b3,
        (w4 * inv_keep).T.astype(jnp.float32), b4,   # (1, 256) row, (1, 1) bias
    ]


def discriminator_forward(x, prepared_params, seed=0, block_b=256):
    w1, b1, w2, b2, w3, b3, w4, b4 = prepared_params
    B, D = x.shape
    assert w1.shape[0] == D, "input dim must match fc1"

    # Stream x in bf16: halves the only per-tile HBM input DMA.
    x = x.astype(jnp.bfloat16)

    if B <= 128:
        tb = B                                   # single tile (block == full dims)
    else:
        # Keep tiles a multiple of 128 (lane-dense out store) and keep the grid
        # at >= 2 steps so ("parallel",) can shard across both v7x TensorCores.
        tb = min(max(128, (block_b // 128) * 128),
                 max(128, ((B + 255) // 256) * 128))
    grid = (pl.cdiv(B, tb),)

    seed_arr = jnp.asarray([seed], dtype=jnp.int32)

    def resident(shape):
        # constant index_map -> block stays VMEM-resident across batch tiles
        return pl.BlockSpec(shape, lambda i: (0, 0))

    out_row = pl.pallas_call(
        discriminator_kernel,
        out_shape=jax.ShapeDtypeStruct((1, B), jnp.float32),
        grid=grid,
        in_specs=[
            pl.BlockSpec(memory_space=pltpu.MemorySpace.SMEM),   # seed scalar
            pl.BlockSpec((tb, D), lambda i: (i, 0)),             # x batch tile
            resident(w1.shape), resident(b1.shape),
            resident(w2.shape), resident(b2.shape),
            resident(w3.shape), resident(b3.shape),
            resident(w4.shape), resident(b4.shape),
        ],
        out_specs=pl.BlockSpec((1, tb), lambda i: (0, i)),
        compiler_params=pltpu.CompilerParams(
            dimension_semantics=("parallel",),
            vmem_limit_bytes=32 << 20,
        ),
    )(seed_arr, x, w1, b1, w2, b2, w3, b3, w4, b4)

    return out_row.reshape(B, 1)


if __name__ == "__main__":
    key = jax.random.PRNGKey(0)
    d_input_dim = 256   # small synthetic input dim (real MNIST would be 784)
    batch = 8

    pkey, xkey = jax.random.split(key)
    params = init_params(pkey, d_input_dim)
    prepared = prepare_params(params)
    x = jax.random.normal(xkey, (batch, d_input_dim), jnp.float32)

    out = discriminator_forward(x, prepared, seed=1234)
    out = jax.block_until_ready(out)

    assert out.shape == (batch, 1)
    assert bool(jnp.all(jnp.isfinite(out)))
    assert bool(jnp.all((out >= 0.0) & (out <= 1.0)))
    print("KERNEL_OK")
</pallas_src>

<mosaic_0001>
module attributes {stable_mosaic.version = 11 : i64} {
  func.func @discriminator_kernel(%arg0: i32, %arg1: memref<1xi32, #tpu.memory_space<smem>>, %arg2: memref<8x256xbf16, #tpu.memory_space<vmem>>, %arg3: memref<256x1024xbf16, #tpu.memory_space<vmem>>, %arg4: memref<1x1024xf32, #tpu.memory_space<vmem>>, %arg5: memref<1024x512xbf16, #tpu.memory_space<vmem>>, %arg6: memref<1x512xf32, #tpu.memory_space<vmem>>, %arg7: memref<512x256xbf16, #tpu.memory_space<vmem>>, %arg8: memref<1x256xf32, #tpu.memory_space<vmem>>, %arg9: memref<1x256xf32, #tpu.memory_space<vmem>>, %arg10: memref<1x1xf32, #tpu.memory_space<vmem>>, %arg11: memref<1x8xf32, #tpu.memory_space<vmem>>) attributes {dimension_semantics = [#tpu.dimension_semantics<parallel>], iteration_bounds = array<i64: 1>, scalar_prefetch = 0 : i64, scratch_operands = 0 : i64, tpu.core_type = #tpu.core_type<tc>, window_params = [{transform_indices = @transform_0, window_bounds = array<i64: 1>}, {transform_indices = @transform_1, window_bounds = array<i64: 8, 256>}, {pipeline_mode = #tpu.pipeline_mode<synchronous>, transform_indices = @transform_2, window_bounds = array<i64: 256, 1024>}, {pipeline_mode = #tpu.pipeline_mode<synchronous>, transform_indices = @transform_3, window_bounds = array<i64: 1, 1024>}, {pipeline_mode = #tpu.pipeline_mode<synchronous>, transform_indices = @transform_4, window_bounds = array<i64: 1024, 512>}, {pipeline_mode = #tpu.pipeline_mode<synchronous>, transform_indices = @transform_5, window_bounds = array<i64: 1, 512>}, {pipeline_mode = #tpu.pipeline_mode<synchronous>, transform_indices = @transform_6, window_bounds = array<i64: 512, 256>}, {pipeline_mode = #tpu.pipeline_mode<synchronous>, transform_indices = @transform_7, window_bounds = array<i64: 1, 256>}, {pipeline_mode = #tpu.pipeline_mode<synchronous>, transform_indices = @transform_8, window_bounds = array<i64: 1, 256>}, {pipeline_mode = #tpu.pipeline_mode<synchronous>, transform_indices = @transform_9, window_bounds = array<i64: 1, 1>}, {transform_indices = @transform_10, window_bounds = array<i64: 1, 8>}]} {
    %c0 = arith.constant 0 : index
    %0 = memref.load %arg1[%c0] : memref<1xi32, #tpu.memory_space<smem>>
    %c-1640531527_i32 = arith.constant -1640531527 : i32
    %1 = arith.muli %0, %c-1640531527_i32 : i32
    %c1_i32 = arith.constant 1 : i32
    %2 = arith.addi %arg0, %c1_i32 : i32
    %c2146121005_i32 = arith.constant 2146121005 : i32
    %3 = arith.muli %2, %c2146121005_i32 : i32
    %4 = arith.xori %1, %3 : i32
    %c0_0 = arith.constant 0 : index
    %c0_1 = arith.constant 0 : index
    %5 = vector.load %arg2[%c0_0, %c0_1] : memref<8x256xbf16, #tpu.memory_space<vmem>>, vector<8x256xbf16>
    %c0_2 = arith.constant 0 : index
    %c0_3 = arith.constant 0 : index
    %6 = vector.load %arg3[%c0_2, %c0_3] : memref<256x1024xbf16, #tpu.memory_space<vmem>>, vector<256x1024xbf16>
    %cst = arith.constant dense<0.000000e+00> : vector<8x1024xf32>
    %7 = tpu.matmul %5, %6, %cst {dimension_numbers = #tpu.dot_dimension_numbers<[1], [0], [0], [1], [0, 0, 1, 1], [], []>} : vector<8x256xbf16>, vector<256x1024xbf16>, vector<8x1024xf32> -> vector<8x1024xf32>
    %c0_4 = arith.constant 0 : index
    %c0_5 = arith.constant 0 : index
    %8 = vector.load %arg4[%c0_4, %c0_5] : memref<1x1024xf32, #tpu.memory_space<vmem>>, vector<1x1024xf32>
    %9 = vector.broadcast %8 : vector<1x1024xf32> to vector<8x1024xf32>
    %10 = arith.addf %7, %9 : vector<8x1024xf32>
    %11 = arith.truncf %10 : vector<8x1024xf32> to vector<8x1024xbf16>
    %cst_6 = arith.constant 2.001950e-01 : bf16
    %12 = vector.broadcast %cst_6 : bf16 to vector<8x1024xbf16>
    %13 = arith.mulf %12, %11 : vector<8x1024xbf16>
    %14 = arith.maximumf %11, %13 : vector<8x1024xbf16>
    %c461845907_i32 = arith.constant 461845907 : i32
    %15 = arith.addi %4, %c461845907_i32 : i32
    %16 = tpu.iota {dimensions = array<i32: 0>} : vector<8x1xi32>
    %17 = tpu.iota {dimensions = array<i32: 1>} : vector<1x1024xi32>
    %c-1640531527_i32_7 = arith.constant -1640531527 : i32
    %18 = vector.broadcast %c-1640531527_i32_7 : i32 to vector<8x1xi32>
    %19 = arith.muli %16, %18 : vector<8x1xi32>
    %20 = vector.broadcast %15 : i32 to vector<8x1xi32>
    %21 = arith.addi %19, %20 : vector<8x1xi32>
    %c-2048144789_i32 = arith.constant -2048144789 : i32
    %22 = vector.broadcast %c-2048144789_i32 : i32 to vector<1x1024xi32>
    %23 = arith.muli %17, %22 : vector<1x1024xi32>
    %24 = vector.broadcast %21 : vector<8x1xi32> to vector<8x1024xi32>
    %25 = vector.broadcast %23 : vector<1x1024xi32> to vector<8x1024xi32>
    %26 = arith.addi %24, %25 : vector<8x1024xi32>
    %c15_i32 = arith.constant 15 : i32
    %27 = vector.broadcast %c15_i32 : i32 to vector<8x1024xi32>
    %28 = arith.shrui %26, %27 : vector<8x1024xi32>
    %29 = arith.xori %26, %28 : vector<8x1024xi32>
    %c2146121005_i32_8 = arith.constant 2146121005 : i32
    %30 = vector.broadcast %c2146121005_i32_8 : i32 to vector<8x1024xi32>
    %31 = arith.muli %29, %30 : vector<8x1024xi32>
    %c13_i32 = arith.constant 13 : i32
    %32 = vector.broadcast %c13_i32 : i32 to vector<8x1024xi32>
    %33 = arith.shrui %31, %32 : vector<8x1024xi32>
    %34 = arith.xori %31, %33 : vector<8x1024xi32>
    %c1288490189_i32 = arith.constant 1288490189 : i32
    %35 = vector.broadcast %c1288490189_i32 : i32 to vector<8x1024xi32>
    %36 = arith.cmpi uge, %34, %35 : vector<8x1024xi32>
    %c0_i32 = arith.constant 0 : i32
    %37 = arith.sitofp %c0_i32 : i32 to bf16
    %38 = vector.broadcast %37 : bf16 to vector<8x1024xbf16>
    %39 = arith.select %36, %14, %38 : vector<8x1024xi1>, vector<8x1024xbf16>
    %c0_9 = arith.constant 0 : index
    %c0_10 = arith.constant 0 : index
    %40 = vector.load %arg5[%c0_9, %c0_10] : memref<1024x512xbf16, #tpu.memory_space<vmem>>, vector<1024x512xbf16>
    %cst_11 = arith.constant dense<0.000000e+00> : vector<8x512xf32>
    %41 = tpu.matmul %39, %40, %cst_11 {dimension_numbers = #tpu.dot_dimension_numbers<[1], [0], [0], [1], [0, 0, 1, 1], [], []>} : vector<8x1024xbf16>, vector<1024x512xbf16>, vector<8x512xf32> -> vector<8x512xf32>
    %c0_12 = arith.constant 0 : index
    %c0_13 = arith.constant 0 : index
    %42 = vector.load %arg6[%c0_12, %c0_13] : memref<1x512xf32, #tpu.memory_space<vmem>>, vector<1x512xf32>
    %43 = vector.broadcast %42 : vector<1x512xf32> to vector<8x512xf32>
    %44 = arith.addf %41, %43 : vector<8x512xf32>
    %45 = arith.truncf %44 : vector<8x512xf32> to vector<8x512xbf16>
    %cst_14 = arith.constant 2.001950e-01 : bf16
    %46 = vector.broadcast %cst_14 : bf16 to vector<8x512xbf16>
    %47 = arith.mulf %46, %45 : vector<8x512xbf16>
    %48 = arith.maximumf %45, %47 : vector<8x512xbf16>
    %c625341585_i32 = arith.constant 625341585 : i32
    %49 = arith.addi %4, %c625341585_i32 : i32
    %50 = tpu.iota {dimensions = array<i32: 0>} : vector<8x1xi32>
    %51 = tpu.iota {dimensions = array<i32: 1>} : vector<1x512xi32>
    %c-1640531527_i32_15 = arith.constant -1640531527 : i32
    %52 = vector.broadcast %c-1640531527_i32_15 : i32 to vector<8x1xi32>
    %53 = arith.muli %50, %52 : vector<8x1xi32>
    %54 = vector.broadcast %49 : i32 to vector<8x1xi32>
    %55 = arith.addi %53, %54 : vector<8x1xi32>
    %c-2048144789_i32_16 = arith.constant -2048144789 : i32
    %56 = vector.broadcast %c-2048144789_i32_16 : i32 to vector<1x512xi32>
    %57 = arith.muli %51, %56 : vector<1x512xi32>
    %58 = vector.broadcast %55 : vector<8x1xi32> to vector<8x512xi32>
    %59 = vector.broadcast %57 : vector<1x512xi32> to vector<8x512xi32>
    %60 = arith.addi %58, %59 : vector<8x512xi32>
    %c15_i32_17 = arith.constant 15 : i32
    %61 = vector.broadcast %c15_i32_17 : i32 to vector<8x512xi32>
    %62 = arith.shrui %60, %61 : vector<8x512xi32>
    %63 = arith.xori %60, %62 : vector<8x512xi32>
    %c2146121005_i32_18 = arith.constant 2146121005 : i32
    %64 = vector.broadcast %c2146121005_i32_18 : i32 to vector<8x512xi32>
    %65 = arith.muli %63, %64 : vector<8x512xi32>
    %c13_i32_19 = arith.constant 13 : i32
    %66 = vector.broadcast %c13_i32_19 : i32 to vector<8x512xi32>
    %67 = arith.shrui %65, %66 : vector<8x512xi32>
    %68 = arith.xori %65, %67 : vector<8x512xi32>
    %c1288490189_i32_20 = arith.constant 1288490189 : i32
    %69 = vector.broadcast %c1288490189_i32_20 : i32 to vector<8x512xi32>
    %70 = arith.cmpi uge, %68, %69 : vector<8x512xi32>
    %c0_i32_21 = arith.constant 0 : i32
    %71 = arith.sitofp %c0_i32_21 : i32 to bf16
    %72 = vector.broadcast %71 : bf16 to vector<8x512xbf16>
    %73 = arith.select %70, %48, %72 : vector<8x512xi1>, vector<8x512xbf16>
    %c0_22 = arith.constant 0 : index
    %c0_23 = arith.constant 0 : index
    %74 = vector.load %arg7[%c0_22, %c0_23] : memref<512x256xbf16, #tpu.memory_space<vmem>>, vector<512x256xbf16>
    %cst_24 = arith.constant dense<0.000000e+00> : vector<8x256xf32>
    %75 = tpu.matmul %73, %74, %cst_24 {dimension_numbers = #tpu.dot_dimension_numbers<[1], [0], [0], [1], [0, 0, 1, 1], [], []>} : vector<8x512xbf16>, vector<512x256xbf16>, vector<8x256xf32> -> vector<8x256xf32>
    %c0_25 = arith.constant 0 : index
    %c0_26 = arith.constant 0 : index
    %76 = vector.load %arg8[%c0_25, %c0_26] : memref<1x256xf32, #tpu.memory_space<vmem>>, vector<1x256xf32>
    %77 = vector.broadcast %76 : vector<1x256xf32> to vector<8x256xf32>
    %78 = arith.addf %75, %77 : vector<8x256xf32>
    %79 = arith.truncf %78 : vector<8x256xf32> to vector<8x256xbf16>
    %cst_27 = arith.constant 2.001950e-01 : bf16
    %80 = vector.broadcast %cst_27 : bf16 to vector<8x256xbf16>
    %81 = arith.mulf %80, %79 : vector<8x256xbf16>
    %82 = arith.maximumf %79, %81 : vector<8x256xbf16>
    %c1759714724_i32 = arith.constant 1759714724 : i32
    %83 = arith.addi %4, %c1759714724_i32 : i32
    %84 = tpu.iota {dimensions = array<i32: 0>} : vector<8x1xi32>
    %85 = tpu.iota {dimensions = array<i32: 1>} : vector<1x256xi32>
    %c-1640531527_i32_28 = arith.constant -1640531527 : i32
    %86 = vector.broadcast %c-1640531527_i32_28 : i32 to vector<8x1xi32>
    %87 = arith.muli %84, %86 : vector<8x1xi32>
    %88 = vector.broadcast %83 : i32 to vector<8x1xi32>
    %89 = arith.addi %87, %88 : vector<8x1xi32>
    %c-2048144789_i32_29 = arith.constant -2048144789 : i32
    %90 = vector.broadcast %c-2048144789_i32_29 : i32 to vector<1x256xi32>
    %91 = arith.muli %85, %90 : vector<1x256xi32>
    %92 = vector.broadcast %89 : vector<8x1xi32> to vector<8x256xi32>
    %93 = vector.broadcast %91 : vector<1x256xi32> to vector<8x256xi32>
    %94 = arith.addi %92, %93 : vector<8x256xi32>
    %c15_i32_30 = arith.constant 15 : i32
    %95 = vector.broadcast %c15_i32_30 : i32 to vector<8x256xi32>
    %96 = arith.shrui %94, %95 : vector<8x256xi32>
    %97 = arith.xori %94, %96 : vector<8x256xi32>
    %c2146121005_i32_31 = arith.constant 2146121005 : i32
    %98 = vector.broadcast %c2146121005_i32_31 : i32 to vector<8x256xi32>
    %99 = arith.muli %97, %98 : vector<8x256xi32>
    %c13_i32_32 = arith.constant 13 : i32
    %100 = vector.broadcast %c13_i32_32 : i32 to vector<8x256xi32>
    %101 = arith.shrui %99, %100 : vector<8x256xi32>
    %102 = arith.xori %99, %101 : vector<8x256xi32>
    %c1288490189_i32_33 = arith.constant 1288490189 : i32
    %103 = vector.broadcast %c1288490189_i32_33 : i32 to vector<8x256xi32>
    %104 = arith.cmpi uge, %102, %103 : vector<8x256xi32>
    %c0_i32_34 = arith.constant 0 : i32
    %105 = arith.sitofp %c0_i32_34 : i32 to bf16
    %106 = vector.broadcast %105 : bf16 to vector<8x256xbf16>
    %107 = arith.select %104, %82, %106 : vector<8x256xi1>, vector<8x256xbf16>
    %c0_35 = arith.constant 0 : index
    %c0_36 = arith.constant 0 : index
    %108 = vector.load %arg9[%c0_35, %c0_36] : memref<1x256xf32, #tpu.memory_space<vmem>>, vector<1x256xf32>
    %109 = arith.extf %107 : vector<8x256xbf16> to vector<8x256xf32>
    %110 = vector.broadcast %108 : vector<1x256xf32> to vector<8x256xf32>
    %111 = arith.mulf %109, %110 : vector<8x256xf32>
    %cst_37 = arith.constant dense<0.000000e+00> : vector<8xf32>
    %112 = vector.multi_reduction <add>, %111, %cst_37 [1] : vector<8x256xf32> to vector<8xf32>
    %113 = vector.shape_cast %112 : vector<8xf32> to vector<8x1xf32>
    %c0_38 = arith.constant 0 : index
    %c0_39 = arith.constant 0 : index
    %114 = vector.load %arg10[%c0_38, %c0_39] : memref<1x1xf32, #tpu.memory_space<vmem>>, vector<1x1xf32>
    %115 = vector.broadcast %114 : vector<1x1xf32> to vector<8x1xf32>
    %116 = arith.addf %113, %115 : vector<8x1xf32>
    %cst_40 = arith.constant 5.000000e-01 : f32
    %117 = vector.broadcast %cst_40 : f32 to vector<8x1xf32>
    %118 = arith.mulf %117, %116 : vector<8x1xf32>
    %119 = math.tanh %118 : vector<8x1xf32>
    %cst_41 = arith.constant 1.000000e+00 : f32
    %120 = vector.broadcast %cst_41 : f32 to vector<8x1xf32>
    %121 = arith.addf %119, %120 : vector<8x1xf32>
    %cst_42 = arith.constant 5.000000e-01 : f32
    %122 = vector.broadcast %cst_42 : f32 to vector<8x1xf32>
    %123 = arith.mulf %122, %121 : vector<8x1xf32>
    %124 = vector.shape_cast %123 : vector<8x1xf32> to vector<1x8xf32>
    %c0_43 = arith.constant 0 : index
    %c0_44 = arith.constant 0 : index
    %125 = vector.load %arg11[%c0_43, %c0_44] : memref<1x8xf32, #tpu.memory_space<vmem>>, vector<1x8xf32>
    tpu.vector_store %arg11[%c0_43, %c0_44], %124 {strides = array<i32>} : memref<1x8xf32, #tpu.memory_space<vmem>>, vector<1x8xf32>,
    return
  }
  func.func @transform_0(%arg0: i32) -> i32 {
    %c0_i32 = arith.constant 0 : i32
    %c0_i32_0 = arith.constant 0 : i32
    return %c0_i32 : i32
  }
  func.func @transform_1(%arg0: i32) -> (i32, i32) {
    %c0_i32 = arith.constant 0 : i32
    %c0_i32_0 = arith.constant 0 : i32
    return %arg0, %c0_i32 : i32, i32
  }
  func.func @transform_2(%arg0: i32) -> (i32, i32) {
    %c0_i32 = arith.constant 0 : i32
    %c0_i32_0 = arith.constant 0 : i32
    %c0_i32_1 = arith.constant 0 : i32
    return %c0_i32, %c0_i32_0 : i32, i32
  }
  func.func @transform_3(%arg0: i32) -> (i32, i32) {
    %c0_i32 = arith.constant 0 : i32
    %c0_i32_0 = arith.constant 0 : i32
    %c0_i32_1 = arith.constant 0 : i32
    return %c0_i32, %c0_i32_0 : i32, i32
  }
  func.func @transform_4(%arg0: i32) -> (i32, i32) {
    %c0_i32 = arith.constant 0 : i32
    %c0_i32_0 = arith.constant 0 : i32
    %c0_i32_1 = arith.constant 0 : i32
    return %c0_i32, %c0_i32_0 : i32, i32
  }
  func.func @transform_5(%arg0: i32) -> (i32, i32) {
    %c0_i32 = arith.constant 0 : i32
    %c0_i32_0 = arith.constant 0 : i32
    %c0_i32_1 = arith.constant 0 : i32
    return %c0_i32, %c0_i32_0 : i32, i32
  }
  func.func @transform_6(%arg0: i32) -> (i32, i32) {
    %c0_i32 = arith.constant 0 : i32
    %c0_i32_0 = arith.constant 0 : i32
    %c0_i32_1 = arith.constant 0 : i32
    return %c0_i32, %c0_i32_0 : i32, i32
  }
  func.func @transform_7(%arg0: i32) -> (i32, i32) {
    %c0_i32 = arith.constant 0 : i32
    %c0_i32_0 = arith.constant 0 : i32
    %c0_i32_1 = arith.constant 0 : i32
    return %c0_i32, %c0_i32_0 : i32, i32
  }
  func.func @transform_8(%arg0: i32) -> (i32, i32) {
    %c0_i32 = arith.constant 0 : i32
    %c0_i32_0 = arith.constant 0 : i32
    %c0_i32_1 = arith.constant 0 : i32
    return %c0_i32, %c0_i32_0 : i32, i32
  }
  func.func @transform_9(%arg0: i32) -> (i32, i32) {
    %c0_i32 = arith.constant 0 : i32
    %c0_i32_0 = arith.constant 0 : i32
    %c0_i32_1 = arith.constant 0 : i32
    return %c0_i32, %c0_i32_0 : i32, i32
  }
  func.func @transform_10(%arg0: i32) -> (i32, i32) {
    %c0_i32 = arith.constant 0 : i32
    %c0_i32_0 = arith.constant 0 : i32
    return %c0_i32, %arg0 : i32, i32
  }
}

</mosaic_0001>

<llo_original>
// kernel: tpu_custom_call.1
$region0: #{tpu_custom_call.1}
  #allocation0 [shape = 'u32[]', space=smem, size = 0x4, offset = 0x4, fixed_abs, tag = 'smem constant byte address 0x4 - core index']
  #allocation1 [shape = 'u32[144,128]{1,0:T(1,128)}', space=vmem, size = 0x12000, scoped, tag = 'internal scratch']
  #allocation2 [shape = 's32[1]{0:T(128)S(6)}', space=smem, size = 0x200, scoped, tag = 'scoped memory for tpu_custom_call.1']
  #allocation3 [shape = 'f32[1,1]{1,0:T(1,128)S(1)}', space=vmem, size = 0x200, scoped, tag = 'scoped memory for tpu_custom_call.1']
  %s0 = inlined_call_operand.<no memory space> [shape: s32[1], index: 0, kind: input, shape index: {}]
  %s1 = inlined_call_operand.hbm [shape: bf16[8,256], index: 1, kind: input, shape index: {}]
  %s2 = inlined_call_operand.hbm [shape: bf16[256,1024], index: 2, kind: input, shape index: {}]
  %s3 = inlined_call_operand.vmem [shape: f32[1,1024], index: 3, kind: input, shape index: {}]
  %s4 = inlined_call_operand.hbm [shape: bf16[1024,512], index: 4, kind: input, shape index: {}]
  %s5 = inlined_call_operand.vmem [shape: f32[1,512], index: 5, kind: input, shape index: {}]
  %s6 = inlined_call_operand.hbm [shape: bf16[512,256], index: 6, kind: input, shape index: {}]
  %s7 = inlined_call_operand.vmem [shape: f32[1,256], index: 7, kind: input, shape index: {}]
  %s8 = inlined_call_operand.vmem [shape: f32[1,256], index: 8, kind: input, shape index: {}]
  %s9 = inlined_call_operand.<no memory space> [shape: f32[1,1], index: 9, kind: input, shape index: {}]
  %s10 = inlined_call_operand.hbm [shape: f32[1,8], index: 10, kind: output, shape index: {}]
  %s11 = sld [smem:[#allocation0]]
  $region66: #{tpu_custom_call.1} parent=0
    _
  %s13 = ssub.s32 1, %s11
  %s14 = scalar_select 0, %s13, %s11
  %15 = sst [smem:[#allocation2]] %s0
  %v16 = vstv %s9
  %17 = vst [vmem:[#allocation3] sm:$0x1] %v16
  $region1: #{tpu_custom_call.1} parent=0
    #allocation4 [shape = 'u8[4096]{0}', space=vmem, size = 0x1000, scoped, tag = 'input window, operand 1, single buffered']
    #allocation5 [shape = 's32[1]{0}', space=sflag, size = 0x4, scoped, tag = 'scoped memory for tpu_custom_call.1']
    #allocation6 [shape = 's32[1]{0}', space=sflag, size = 0x4, scoped, tag = 'scoped memory for tpu_custom_call.1']
    #allocation7 [shape = 'u8[524288]{0}', space=vmem, size = 0x80000, scoped, tag = 'input window, operand 2, single buffered']
    #allocation8 [shape = 's32[1]{0}', space=sflag, size = 0x4, scoped, tag = 'scoped memory for tpu_custom_call.1']
    #allocation9 [shape = 'u8[1048576]{0}', space=vmem, size = 0x100000, scoped, tag = 'input window, operand 4, single buffered']
    #allocation10 [shape = 'u8[262144]{0}', space=vmem, size = 0x40000, scoped, tag = 'input window, operand 6, single buffered']
    #allocation11 [shape = 's32[1]{0}', space=sflag, size = 0x4, scoped, tag = 'scoped memory for tpu_custom_call.1']
    #allocation12 [shape = 'u8[512]{0}', space=vmem, size = 0x400, scoped, tag = 'output window, operand 0, single buffered']
    %18 = vsyncpa [#allocation5], 0
    %19 = vsyncpa [#allocation8], 0
    %20 = vsyncpa [#allocation11], 0
    %21 = vsyncpa [#allocation6], 0
    // Predicated region
    $region2: #{tpu_custom_call.1} parent=1 // pred_check
      _
    $region3: #{tpu_custom_call.1} parent=1 // pred_check_branch
      %23 = sbr.rel (0) target = $region5
    $region4: #{tpu_custom_call.1} parent=1 // pred_region
      _
    $region5: #{tpu_custom_call.1} parent=1 // pred_fallthru
      _
    // Predicated region
    $region6: #{tpu_custom_call.1} parent=1 // pred_check
      _
    $region7: #{tpu_custom_call.1} parent=1 // pred_check_branch
      %25 = sbr.rel (0) target = $region9
    $region8: #{tpu_custom_call.1} parent=1 // pred_region
      %s27 = ssub.s32 128, 128
      %28 = vsyncadd [#allocation5], %s27
      %s30 = sshll.u32 [#allocation4], 4
      %s31 = int_to_ptr.vmem [resolvable:$true] %s30
      %33 = dma.hbm_to_vmem [thread:$0]  %s1, 128, %s31, [#allocation5]
    $region9: #{tpu_custom_call.1} parent=1 // pred_fallthru
      _
    // Predicated region
    $region10: #{tpu_custom_call.1} parent=1 // pred_check
      _
    $region11: #{tpu_custom_call.1} parent=1 // pred_check_branch
      %35 = sbr.rel (0) target = $region13
    $region12: #{tpu_custom_call.1} parent=1 // pred_region
      %s37 = ssub.s32 16384, 16384
      %38 = vsyncadd [#allocation8], %s37
      %s39 = sshll.u32 [#allocation7], 4
      %s40 = int_to_ptr.vmem [resolvable:$true] %s39
      %45 = dma.hbm_to_vmem [thread:$0]  %s2, 16384, %s40, [#allocation8], 512, 512, 32
    $region13: #{tpu_custom_call.1} parent=1 // pred_fallthru
      _
    // Predicated region
    $region14: #{tpu_custom_call.1} parent=1 // pred_check
      _
    $region15: #{tpu_custom_call.1} parent=1 // pred_check_branch
      %47 = sbr.rel (0) target = $region17
    $region16: #{tpu_custom_call.1} parent=1 // pred_region
      _
    $region17: #{tpu_custom_call.1} parent=1 // pred_fallthru
      _
    // Predicated region
    $region18: #{tpu_custom_call.1} parent=1 // pred_check
      _
    $region19: #{tpu_custom_call.1} parent=1 // pred_check_branch
      %49 = sbr.rel (0) target = $region21
    $region20: #{tpu_custom_call.1} parent=1 // pred_region
      %s51 = ssub.s32 32768, 32768
      %52 = vsyncadd [#allocation8], %s51
      %s53 = sshll.u32 [#allocation9], 4
      %s54 = int_to_ptr.vmem [resolvable:$true] %s53
      %59 = dma.hbm_to_vmem [thread:$0]  %s4, 32768, %s54, [#allocation8], 256, 256, 16
    $region21: #{tpu_custom_call.1} parent=1 // pred_fallthru
      _
    // Predicated region
    $region22: #{tpu_custom_call.1} parent=1 // pred_check
      _
    $region23: #{tpu_custom_call.1} parent=1 // pred_check_branch
      %61 = sbr.rel (0) target = $region25
    $region24: #{tpu_custom_call.1} parent=1 // pred_region
      _
    $region25: #{tpu_custom_call.1} parent=1 // pred_fallthru
      _
    // Predicated region
    $region26: #{tpu_custom_call.1} parent=1 // pred_check
      _
    $region27: #{tpu_custom_call.1} parent=1 // pred_check_branch
      %63 = sbr.rel (0) target = $region29
    $region28: #{tpu_custom_call.1} parent=1 // pred_region
      %s65 = ssub.s32 8192, 8192
      %66 = vsyncadd [#allocation11], %s65
      %s67 = sshll.u32 [#allocation10], 4
      %s68 = int_to_ptr.vmem [resolvable:$true] %s67
      %73 = dma.hbm_to_vmem [thread:$0]  %s6, 8192, %s68, [#allocation11], 128, 128, 8
    $region29: #{tpu_custom_call.1} parent=1 // pred_fallthru
      _
    // Predicated region
    $region30: #{tpu_custom_call.1} parent=1 // pred_check
      _
    $region31: #{tpu_custom_call.1} parent=1 // pred_check_branch
      %75 = sbr.rel (0) target = $region33
    $region32: #{tpu_custom_call.1} parent=1 // pred_region
      _
    $region33: #{tpu_custom_call.1} parent=1 // pred_fallthru
      _
    // Predicated region
    $region34: #{tpu_custom_call.1} parent=1 // pred_check
      _
    $region35: #{tpu_custom_call.1} parent=1 // pred_check_branch
      %77 = sbr.rel (0) target = $region37
    $region36: #{tpu_custom_call.1} parent=1 // pred_region
      _
    $region37: #{tpu_custom_call.1} parent=1 // pred_fallthru
      _
    // Predicated region
    $region38: #{tpu_custom_call.1} parent=1 // pred_check
      _
    $region39: #{tpu_custom_call.1} parent=1 // pred_check_branch
      %79 = sbr.rel (0) target = $region41
    $region40: #{tpu_custom_call.1} parent=1 // pred_region
      _
    $region41: #{tpu_custom_call.1} parent=1 // pred_fallthru
      _
    // Predicated region
    $region42: #{tpu_custom_call.1} parent=1 // pred_check
      _
    $region43: #{tpu_custom_call.1} parent=1 // pred_check_branch
      %81 = sbr.rel (0) target = $region45
    $region44: #{tpu_custom_call.1} parent=1 // pred_region
      %82 = dma.done [#allocation5], 128
    $region45: #{tpu_custom_call.1} parent=1 // pred_fallthru
      _
    // Predicated region
    $region46: #{tpu_custom_call.1} parent=1 // pred_check
      _
    $region47: #{tpu_custom_call.1} parent=1 // pred_check_branch
      %84 = sbr.rel (0) target = $region49
    $region48: #{tpu_custom_call.1} parent=1 // pred_region
      %85 = dma.done [#allocation8], 16384
    $region49: #{tpu_custom_call.1} parent=1 // pred_fallthru
      _
    // Predicated region
    $region50: #{tpu_custom_call.1} parent=1 // pred_check
      _
    $region51: #{tpu_custom_call.1} parent=1 // pred_check_branch
      %87 = sbr.rel (0) target = $region53
    $region52: #{tpu_custom_call.1} parent=1 // pred_region
      %88 = dma.done [#allocation8], 32768
    $region53: #{tpu_custom_call.1} parent=1 // pred_fallthru
      _
    // Predicated region
    $region54: #{tpu_custom_call.1} parent=1 // pred_check
      _
    $region55: #{tpu_custom_call.1} parent=1 // pred_check_branch
      %90 = sbr.rel (0) target = $region57
    $region56: #{tpu_custom_call.1} parent=1 // pred_region
      %91 = dma.done [#allocation11], 8192
    $region57: #{tpu_custom_call.1} parent=1 // pred_fallthru
      _
    %s94 = sld [smem:[#allocation2]]
    %s95 = smul.u32 %s94, 2654435769
    %s96 = sadd.s32 0, 1
    %s97 = smul.u32 %s96, 2146121005
    %s98 = sxor.u32 %s95, %s97
    %v99 = vld [vmem:[#allocation4] sm:$0xff]
    %v100 = vld [vmem:[#allocation7] sm:$0xff]
    %v101 = vld [vmem:[#allocation7 + $0x8] sm:$0xff]
    %v102 = vld [vmem:[#allocation7 + $0x10] sm:$0xff]
    %v103 = vld [vmem:[#allocation7 + $0x18] sm:$0xff]
    %v104 = vld [vmem:[#allocation7 + $0x20] sm:$0xff]
    %v105 = vld [vmem:[#allocation7 + $0x28] sm:$0xff]
    %v106 = vld [vmem:[#allocation7 + $0x30] sm:$0xff]
    %v107 = vld [vmem:[#allocation7 + $0x38] sm:$0xff]
    %v108 = vld [vmem:[#allocation7 + $0x40] sm:$0xff]
    %v109 = vld [vmem:[#allocation7 + $0x48] sm:$0xff]
    %v110 = vld [vmem:[#allocation7 + $0x50] sm:$0xff]
    %v111 = vld [vmem:[#allocation7 + $0x58] sm:$0xff]
    %v112 = vld [vmem:[#allocation7 + $0x60] sm:$0xff]
    %v113 = vld [vmem:[#allocation7 + $0x68] sm:$0xff]
    %v114 = vld [vmem:[#allocation7 + $0x70] sm:$0xff]
    %v115 = vld [vmem:[#allocation7 + $0x78] sm:$0xff]
    %v116 = vld [vmem:[#allocation7 + $0x80] sm:$0xff]
    %v117 = vld [vmem:[#allocation7 + $0x88] sm:$0xff]
    %v118 = vld [vmem:[#allocation7 + $0x90] sm:$0xff]
    %v119 = vld [vmem:[#allocation7 + $0x98] sm:$0xff]
    %v120 = vld [vmem:[#allocation7 + $0xa0] sm:$0xff]
    %v121 = vld [vmem:[#allocation7 + $0xa8] sm:$0xff]
    %v122 = vld [vmem:[#allocation7 + $0xb0] sm:$0xff]
    %v123 = vld [vmem:[#allocation7 + $0xb8] sm:$0xff]
    %v124 = vld [vmem:[#allocation7 + $0xc0] sm:$0xff]
    %v125 = vld [vmem:[#allocation7 + $0xc8] sm:$0xff]
    %v126 = vld [vmem:[#allocation7 + $0xd0] sm:$0xff]
    %v127 = vld [vmem:[#allocation7 + $0xd8] sm:$0xff]
    %v128 = vld [vmem:[#allocation7 + $0xe0] sm:$0xff]
    %v129 = vld [vmem:[#allocation7 + $0xe8] sm:$0xff]
    %v130 = vld [vmem:[#allocation7 + $0xf0] sm:$0xff]
    %v131 = vld [vmem:[#allocation7 + $0xf8] sm:$0xff]
    %v132 = vld [vmem:[#allocation7 + $0x100] sm:$0xff]
    %v133 = vld [vmem:[#allocation7 + $0x108] sm:$0xff]
    %v134 = vld [vmem:[#allocation7 + $0x110] sm:$0xff]
    %v135 = vld [vmem:[#allocation7 + $0x118] sm:$0xff]
    %v136 = vld [vmem:[#allocation7 + $0x120] sm:$0xff]
    %v137 = vld [vmem:[#allocation7 + $0x128] sm:$0xff]
    %v138 = vld [vmem:[#allocation7 + $0x130] sm:$0xff]
    %v139 = vld [vmem:[#allocation7 + $0x138] sm:$0xff]
    %v140 = vld [vmem:[#allocation7 + $0x140] sm:$0xff]
    %v141 = vld [vmem:[#allocation7 + $0x148] sm:$0xff]
    %v142 = vld [vmem:[#allocation7 + $0x150] sm:$0xff]
    %v143 = vld [vmem:[#allocation7 + $0x158] sm:$0xff]
    %v144 = vld [vmem:[#allocation7 + $0x160] sm:$0xff]
    %v145 = vld [vmem:[#allocation7 + $0x168] sm:$0xff]
    %v146 = vld [vmem:[#allocation7 + $0x170] sm:$0xff]
    %v147 = vld [vmem:[#allocation7 + $0x178] sm:$0xff]
    %v148 = vld [vmem:[#allocation7 + $0x180] sm:$0xff]
    %v149 = vld [vmem:[#allocation7 + $0x188] sm:$0xff]
    %v150 = vld [vmem:[#allocation7 + $0x190] sm:$0xff]
    %v151 = vld [vmem:[#allocation7 + $0x198] sm:$0xff]
    %v152 = vld [vmem:[#allocation7 + $0x1a0] sm:$0xff]
    %v153 = vld [vmem:[#allocation7 + $0x1a8] sm:$0xff]
    %v154 = vld [vmem:[#allocation7 + $0x1b0] sm:$0xff]
    %v155 = vld [vmem:[#allocation7 + $0x1b8] sm:$0xff]
    %v156 = vld [vmem:[#allocation7 + $0x1c0] sm:$0xff]
    %v157 = vld [vmem:[#allocation7 + $0x1c8] sm:$0xff]
    %v158 = vld [vmem:[#allocation7 + $0x1d0] sm:$0xff]
    %v159 = vld [vmem:[#allocation7 + $0x1d8] sm:$0xff]
    %v160 = vld [vmem:[#allocation7 + $0x1e0] sm:$0xff]
    %v161 = vld [vmem:[#allocation7 + $0x1e8] sm:$0xff]
    %v162 = vld [vmem:[#allocation7 + $0x1f0] sm:$0xff]
    %v163 = vld [vmem:[#allocation7 + $0x1f8] sm:$0xff]
    %v164 = vld [vmem:[#allocation7 + $0x200] sm:$0xff]
    %v165 = vld [vmem:[#allocation7 + $0x208] sm:$0xff]
    %v166 = vld [vmem:[#allocation7 + $0x210] sm:$0xff]
    %v167 = vld [vmem:[#allocation7 + $0x218] sm:$0xff]
    %v168 = vld [vmem:[#allocation7 + $0x220] sm:$0xff]
    %v169 = vld [vmem:[#allocation7 + $0x228] sm:$0xff]
    %v170 = vld [vmem:[#allocation7 + $0x230] sm:$0xff]
    %v171 = vld [vmem:[#allocation7 + $0x238] sm:$0xff]
    %v172 = vld [vmem:[#allocation7 + $0x240] sm:$0xff]
    %v173 = vld [vmem:[#allocation7 + $0x248] sm:$0xff]
    %v174 = vld [vmem:[#allocation7 + $0x250] sm:$0xff]
    %v175 = vld [vmem:[#allocation7 + $0x258] sm:$0xff]
    %v176 = vld [vmem:[#allocation7 + $0x260] sm:$0xff]
    %v177 = vld [vmem:[#allocation7 + $0x268] sm:$0xff]
    %v178 = vld [vmem:[#allocation7 + $0x270] sm:$0xff]
    %v179 = vld [vmem:[#allocation7 + $0x278] sm:$0xff]
    %v180 = vld [vmem:[#allocation7 + $0x280] sm:$0xff]
    %v181 = vld [vmem:[#allocation7 + $0x288] sm:$0xff]
    %v182 = vld [vmem:[#allocation7 + $0x290] sm:$0xff]
    %v183 = vld [vmem:[#allocation7 + $0x298] sm:$0xff]
    %v184 = vld [vmem:[#allocation7 + $0x2a0] sm:$0xff]
    %v185 = vld [vmem:[#allocation7 + $0x2a8] sm:$0xff]
    %v186 = vld [vmem:[#allocation7 + $0x2b0] sm:$0xff]
    %v187 = vld [vmem:[#allocation7 + $0x2b8] sm:$0xff]
    %v188 = vld [vmem:[#allocation7 + $0x2c0] sm:$0xff]
    %v189 = vld [vmem:[#allocation7 + $0x2c8] sm:$0xff]
    %v190 = vld [vmem:[#allocation7 + $0x2d0] sm:$0xff]
    %v191 = vld [vmem:[#allocation7 + $0x2d8] sm:$0xff]
    %v192 = vld [vmem:[#allocation7 + $0x2e0] sm:$0xff]
    %v193 = vld [vmem:[#allocation7 + $0x2e8] sm:$0xff]
    %v194 = vld [vmem:[#allocation7 + $0x2f0] sm:$0xff]
    %v195 = vld [vmem:[#allocation7 + $0x2f8] sm:$0xff]
    %v196 = vld [vmem:[#allocation7 + $0x300] sm:$0xff]
    %v197 = vld [vmem:[#allocation7 + $0x308] sm:$0xff]
    %v198 = vld [vmem:[#allocation7 + $0x310] sm:$0xff]
    %v199 = vld [vmem:[#allocation7 + $0x318] sm:$0xff]
    %v200 = vld [vmem:[#allocation7 + $0x320] sm:$0xff]
    %v201 = vld [vmem:[#allocation7 + $0x328] sm:$0xff]
    %v202 = vld [vmem:[#allocation7 + $0x330] sm:$0xff]
    %v203 = vld [vmem:[#allocation7 + $0x338] sm:$0xff]
    %v204 = vld [vmem:[#allocation7 + $0x340] sm:$0xff]
    %v205 = vld [vmem:[#allocation7 + $0x348] sm:$0xff]
    %v206 = vld [vmem:[#allocation7 + $0x350] sm:$0xff]
    %v207 = vld [vmem:[#allocation7 + $0x358] sm:$0xff]
    %v208 = vld [vmem:[#allocation7 + $0x360] sm:$0xff]
    %v209 = vld [vmem:[#allocation7 + $0x368] sm:$0xff]
    %v210 = vld [vmem:[#allocation7 + $0x370] sm:$0xff]
    %v211 = vld [vmem:[#allocation7 + $0x378] sm:$0xff]
    %v212 = vld [vmem:[#allocation7 + $0x380] sm:$0xff]
    %v213 = vld [vmem:[#allocation7 + $0x388] sm:$0xff]
    %v214 = vld [vmem:[#allocation7 + $0x390] sm:$0xff]
    %v215 = vld [vmem:[#allocation7 + $0x398] sm:$0xff]
    %v216 = vld [vmem:[#allocation7 + $0x3a0] sm:$0xff]
    %v217 = vld [vmem:[#allocation7 + $0x3a8] sm:$0xff]
    %v218 = vld [vmem:[#allocation7 + $0x3b0] sm:$0xff]
    %v219 = vld [vmem:[#allocation7 + $0x3b8] sm:$0xff]
    %v220 = vld [vmem:[#allocation7 + $0x3c0] sm:$0xff]
    %v221 = vld [vmem:[#allocation7 + $0x3c8] sm:$0xff]
    %v222 = vld [vmem:[#allocation7 + $0x3d0] sm:$0xff]
    %v223 = vld [vmem:[#allocation7 + $0x3d8] sm:$0xff]
    %v224 = vld [vmem:[#allocation7 + $0x3e0] sm:$0xff]
    %v225 = vld [vmem:[#allocation7 + $0x3e8] sm:$0xff]
    %v226 = vld [vmem:[#allocation7 + $0x3f0] sm:$0xff]
    %v227 = vld [vmem:[#allocation7 + $0x3f8] sm:$0xff]
    %v228 = vld [vmem:[%s3] sm:$0xff]
    %v230 = vlaneseq
    %v231 = vshrl.u32 %v230, 7
    %v232 = vsub.s32 0, %v231
    %v233 = vrot.slane %v228, %v232
    %v234 = vlaneseq
    %v235 = vshrl.u32 %v234, 7
    %v236 = vsub.s32 1, %v235
    %v237 = vrot.slane %v228, %v236
    %v238 = vlaneseq
    %v239 = vshrl.u32 %v238, 7
    %v240 = vsub.s32 2, %v239
    %v241 = vrot.slane %v228, %v240
    %v242 = vlaneseq
    %v243 = vshrl.u32 %v242, 7
    %v244 = vsub.s32 3, %v243
    %v245 = vrot.slane %v228, %v244
    %v246 = vlaneseq
    %v247 = vshrl.u32 %v246, 7
    %v248 = vsub.s32 4, %v247
    %v249 = vrot.slane %v228, %v248
    %v250 = vlaneseq
    %v251 = vshrl.u32 %v250, 7
    %v252 = vsub.s32 5, %v251
    %v253 = vrot.slane %v228, %v252
    %v254 = vlaneseq
    %v255 = vshrl.u32 %v254, 7
    %v256 = vsub.s32 6, %v255
    %v257 = vrot.slane %v228, %v256
    %v258 = vlaneseq
    %v259 = vshrl.u32 %v258, 7
    %v260 = vsub.s32 7, %v259
    %v261 = vrot.slane %v228, %v260
    %v271 = vunpack.c.l.b16 %v99
    %v272 = vunpack.c.h.b16 %v99
    %v273 = vpack.c.b16 %v271, %v271
    %v274 = vpack.c.b16 %v272, %v272
    %v405 = vunpack.c.l.b16 %v100
    %v406 = vunpack.c.h.b16 %v100
    %v407 = vunpack.c.l.b16 %v101
    %v408 = vunpack.c.h.b16 %v101
    %v409 = vunpack.c.l.b16 %v102
    %v410 = vunpack.c.h.b16 %v102
    %v411 = vunpack.c.l.b16 %v103
    %v412 = vunpack.c.h.b16 %v103
    %v413 = vunpack.c.l.b16 %v104
    %v414 = vunpack.c.h.b16 %v104
    %v415 = vunpack.c.l.b16 %v105
    %v416 = vunpack.c.h.b16 %v105
    %v417 = vunpack.c.l.b16 %v106
    %v418 = vunpack.c.h.b16 %v106
    %v419 = vunpack.c.l.b16 %v107
    %v420 = vunpack.c.h.b16 %v107
    %v421 = vunpack.c.l.b16 %v108
    %v422 = vunpack.c.h.b16 %v108
    %v423 = vunpack.c.l.b16 %v109
    %v424 = vunpack.c.h.b16 %v109
    %v425 = vunpack.c.l.b16 %v110
    %v426 = vunpack.c.h.b16 %v110
    %v427 = vunpack.c.l.b16 %v111
    %v428 = vunpack.c.h.b16 %v111
    %v429 = vunpack.c.l.b16 %v112
    %v430 = vunpack.c.h.b16 %v112
    %v431 = vunpack.c.l.b16 %v113
    %v432 = vunpack.c.h.b16 %v113
    %v433 = vunpack.c.l.b16 %v114
    %v434 = vunpack.c.h.b16 %v114
    %v435 = vunpack.c.l.b16 %v115
    %v436 = vunpack.c.h.b16 %v115
    %v437 = vunpack.c.l.b16 %v116
    %v438 = vunpack.c.h.b16 %v116
    %v439 = vunpack.c.l.b16 %v117
    %v440 = vunpack.c.h.b16 %v117
    %v441 = vunpack.c.l.b16 %v118
    %v442 = vunpack.c.h.b16 %v118
    %v443 = vunpack.c.l.b16 %v119
    %v444 = vunpack.c.h.b16 %v119
    %v445 = vunpack.c.l.b16 %v120
    %v446 = vunpack.c.h.b16 %v120
    %v447 = vunpack.c.l.b16 %v121
    %v448 = vunpack.c.h.b16 %v121
    %v449 = vunpack.c.l.b16 %v122
    %v450 = vunpack.c.h.b16 %v122
    %v451 = vunpack.c.l.b16 %v123
    %v452 = vunpack.c.h.b16 %v123
    %v453 = vunpack.c.l.b16 %v124
    %v454 = vunpack.c.h.b16 %v124
    %v455 = vunpack.c.l.b16 %v125
    %v456 = vunpack.c.h.b16 %v125
    %v457 = vunpack.c.l.b16 %v126
    %v458 = vunpack.c.h.b16 %v126
    %v459 = vunpack.c.l.b16 %v127
    %v460 = vunpack.c.h.b16 %v127
    %v461 = vunpack.c.l.b16 %v128
    %v462 = vunpack.c.h.b16 %v128
    %v463 = vunpack.c.l.b16 %v129
    %v464 = vunpack.c.h.b16 %v129
    %v465 = vunpack.c.l.b16 %v130
    %v466 = vunpack.c.h.b16 %v130
    %v467 = vunpack.c.l.b16 %v131
    %v468 = vunpack.c.h.b16 %v131
    %v469 = vunpack.c.l.b16 %v132
    %v470 = vunpack.c.h.b16 %v132
    %v471 = vunpack.c.l.b16 %v133
    %v472 = vunpack.c.h.b16 %v133
    %v473 = vunpack.c.l.b16 %v134
    %v474 = vunpack.c.h.b16 %v134
    %v475 = vunpack.c.l.b16 %v135
    %v476 = vunpack.c.h.b16 %v135
    %v477 = vunpack.c.l.b16 %v136
    %v478 = vunpack.c.h.b16 %v136
    %v479 = vunpack.c.l.b16 %v137
    %v480 = vunpack.c.h.b16 %v137
    %v481 = vunpack.c.l.b16 %v138
    %v482 = vunpack.c.h.b16 %v138
    %v483 = vunpack.c.l.b16 %v139
    %v484 = vunpack.c.h.b16 %v139
    %v485 = vunpack.c.l.b16 %v140
    %v486 = vunpack.c.h.b16 %v140
    %v487 = vunpack.c.l.b16 %v141
    %v488 = vunpack.c.h.b16 %v141
    %v489 = vunpack.c.l.b16 %v142
    %v490 = vunpack.c.h.b16 %v142
    %v491 = vunpack.c.l.b16 %v143
    %v492 = vunpack.c.h.b16 %v143
    %v493 = vunpack.c.l.b16 %v144
    %v494 = vunpack.c.h.b16 %v144
    %v495 = vunpack.c.l.b16 %v145
    %v496 = vunpack.c.h.b16 %v145
    %v497 = vunpack.c.l.b16 %v146
    %v498 = vunpack.c.h.b16 %v146
    %v499 = vunpack.c.l.b16 %v147
    %v500 = vunpack.c.h.b16 %v147
    %v501 = vunpack.c.l.b16 %v148
    %v502 = vunpack.c.h.b16 %v148
    %v503 = vunpack.c.l.b16 %v149
    %v504 = vunpack.c.h.b16 %v149
    %v505 = vunpack.c.l.b16 %v150
    %v506 = vunpack.c.h.b16 %v150
    %v507 = vunpack.c.l.b16 %v151
    %v508 = vunpack.c.h.b16 %v151
    %v509 = vunpack.c.l.b16 %v152
    %v510 = vunpack.c.h.b16 %v152
    %v511 = vunpack.c.l.b16 %v153
    %v512 = vunpack.c.h.b16 %v153
    %v513 = vunpack.c.l.b16 %v154
    %v514 = vunpack.c.h.b16 %v154
    %v515 = vunpack.c.l.b16 %v155
    %v516 = vunpack.c.h.b16 %v155
    %v517 = vunpack.c.l.b16 %v156
    %v518 = vunpack.c.h.b16 %v156
    %v519 = vunpack.c.l.b16 %v157
    %v520 = vunpack.c.h.b16 %v157
    %v521 = vunpack.c.l.b16 %v158
    %v522 = vunpack.c.h.b16 %v158
    %v523 = vunpack.c.l.b16 %v159
    %v524 = vunpack.c.h.b16 %v159
    %v525 = vunpack.c.l.b16 %v160
    %v526 = vunpack.c.h.b16 %v160
    %v527 = vunpack.c.l.b16 %v161
    %v528 = vunpack.c.h.b16 %v161
    %v529 = vunpack.c.l.b16 %v162
    %v530 = vunpack.c.h.b16 %v162
    %v531 = vunpack.c.l.b16 %v163
    %v532 = vunpack.c.h.b16 %v163
    %v533 = vunpack.c.l.b16 %v164
    %v534 = vunpack.c.h.b16 %v164
    %v535 = vunpack.c.l.b16 %v165
    %v536 = vunpack.c.h.b16 %v165
    %v537 = vunpack.c.l.b16 %v166
    %v538 = vunpack.c.h.b16 %v166
    %v539 = vunpack.c.l.b16 %v167
    %v540 = vunpack.c.h.b16 %v167
    %v541 = vunpack.c.l.b16 %v168
    %v542 = vunpack.c.h.b16 %v168
    %v543 = vunpack.c.l.b16 %v169
    %v544 = vunpack.c.h.b16 %v169
    %v545 = vunpack.c.l.b16 %v170
    %v546 = vunpack.c.h.b16 %v170
    %v547 = vunpack.c.l.b16 %v171
    %v548 = vunpack.c.h.b16 %v171
    %v549 = vunpack.c.l.b16 %v172
    %v550 = vunpack.c.h.b16 %v172
    %v551 = vunpack.c.l.b16 %v173
    %v552 = vunpack.c.h.b16 %v173
    %v553 = vunpack.c.l.b16 %v174
    %v554 = vunpack.c.h.b16 %v174
    %v555 = vunpack.c.l.b16 %v175
    %v556 = vunpack.c.h.b16 %v175
    %v557 = vunpack.c.l.b16 %v176
    %v558 = vunpack.c.h.b16 %v176
    %v559 = vunpack.c.l.b16 %v177
    %v560 = vunpack.c.h.b16 %v177
    %v561 = vunpack.c.l.b16 %v178
    %v562 = vunpack.c.h.b16 %v178
    %v563 = vunpack.c.l.b16 %v179
    %v564 = vunpack.c.h.b16 %v179
    %v565 = vunpack.c.l.b16 %v180
    %v566 = vunpack.c.h.b16 %v180
    %v567 = vunpack.c.l.b16 %v181
    %v568 = vunpack.c.h.b16 %v181
    %v569 = vunpack.c.l.b16 %v182
    %v570 = vunpack.c.h.b16 %v182
    %v571 = vunpack.c.l.b16 %v183
    %v572 = vunpack.c.h.b16 %v183
    %v573 = vunpack.c.l.b16 %v184
    %v574 = vunpack.c.h.b16 %v184
    %v575 = vunpack.c.l.b16 %v185
    %v576 = vunpack.c.h.b16 %v185
    %v577 = vunpack.c.l.b16 %v186
    %v578 = vunpack.c.h.b16 %v186
    %v579 = vunpack.c.l.b16 %v187
    %v580 = vunpack.c.h.b16 %v187
    %v581 = vunpack.c.l.b16 %v188
    %v582 = vunpack.c.h.b16 %v188
    %v583 = vunpack.c.l.b16 %v189
    %v584 = vunpack.c.h.b16 %v189
    %v585 = vunpack.c.l.b16 %v190
    %v586 = vunpack.c.h.b16 %v190
    %v587 = vunpack.c.l.b16 %v191
    %v588 = vunpack.c.h.b16 %v191
    %v589 = vunpack.c.l.b16 %v192
    %v590 = vunpack.c.h.b16 %v192
    %v591 = vunpack.c.l.b16 %v193
    %v592 = vunpack.c.h.b16 %v193
    %v593 = vunpack.c.l.b16 %v194
    %v594 = vunpack.c.h.b16 %v194
    %v595 = vunpack.c.l.b16 %v195
    %v596 = vunpack.c.h.b16 %v195
    %v597 = vunpack.c.l.b16 %v196
    %v598 = vunpack.c.h.b16 %v196
    %v599 = vunpack.c.l.b16 %v197
    %v600 = vunpack.c.h.b16 %v197
    %v601 = vunpack.c.l.b16 %v198
    %v602 = vunpack.c.h.b16 %v198
    %v603 = vunpack.c.l.b16 %v199
    %v604 = vunpack.c.h.b16 %v199
    %v605 = vunpack.c.l.b16 %v200
    %v606 = vunpack.c.h.b16 %v200
    %v607 = vunpack.c.l.b16 %v201
    %v608 = vunpack.c.h.b16 %v201
    %v609 = vunpack.c.l.b16 %v202
    %v610 = vunpack.c.h.b16 %v202
    %v611 = vunpack.c.l.b16 %v203
    %v612 = vunpack.c.h.b16 %v203
    %v613 = vunpack.c.l.b16 %v204
    %v614 = vunpack.c.h.b16 %v204
    %v615 = vunpack.c.l.b16 %v205
    %v616 = vunpack.c.h.b16 %v205
    %v617 = vunpack.c.l.b16 %v206
    %v618 = vunpack.c.h.b16 %v206
    %v619 = vunpack.c.l.b16 %v207
    %v620 = vunpack.c.h.b16 %v207
    %v621 = vunpack.c.l.b16 %v208
    %v622 = vunpack.c.h.b16 %v208
    %v623 = vunpack.c.l.b16 %v209
    %v624 = vunpack.c.h.b16 %v209
    %v625 = vunpack.c.l.b16 %v210
    %v626 = vunpack.c.h.b16 %v210
    %v627 = vunpack.c.l.b16 %v211
    %v628 = vunpack.c.h.b16 %v211
    %v629 = vunpack.c.l.b16 %v212
    %v630 = vunpack.c.h.b16 %v212
    %v631 = vunpack.c.l.b16 %v213
    %v632 = vunpack.c.h.b16 %v213
    %v633 = vunpack.c.l.b16 %v214
    %v634 = vunpack.c.h.b16 %v214
    %v635 = vunpack.c.l.b16 %v215
    %v636 = vunpack.c.h.b16 %v215
    %v637 = vunpack.c.l.b16 %v216
    %v638 = vunpack.c.h.b16 %v216
    %v639 = vunpack.c.l.b16 %v217
    %v640 = vunpack.c.h.b16 %v217
    %v641 = vunpack.c.l.b16 %v218
    %v642 = vunpack.c.h.b16 %v218
    %v643 = vunpack.c.l.b16 %v219
    %v644 = vunpack.c.h.b16 %v219
    %v645 = vunpack.c.l.b16 %v220
    %v646 = vunpack.c.h.b16 %v220
    %v647 = vunpack.c.l.b16 %v221
    %v648 = vunpack.c.h.b16 %v221
    %v649 = vunpack.c.l.b16 %v222
    %v650 = vunpack.c.h.b16 %v222
    %v651 = vunpack.c.l.b16 %v223
    %v652 = vunpack.c.h.b16 %v223
    %v653 = vunpack.c.l.b16 %v224
    %v654 = vunpack.c.h.b16 %v224
    %v655 = vunpack.c.l.b16 %v225
    %v656 = vunpack.c.h.b16 %v225
    %v657 = vunpack.c.l.b16 %v226
    %v658 = vunpack.c.h.b16 %v226
    %v659 = vunpack.c.l.b16 %v227
    %v660 = vunpack.c.h.b16 %v227
    %v661 = vpack.c.b16 %v413, %v405
    %v662 = vpack.c.b16 %v414, %v406
    %v663 = vpack.c.b16 %v415, %v407
    %v664 = vpack.c.b16 %v416, %v408
    %v665 = vpack.c.b16 %v417, %v409
    %v666 = vpack.c.b16 %v418, %v410
    %v667 = vpack.c.b16 %v419, %v411
    %v668 = vpack.c.b16 %v420, %v412
    %v669 = vpack.c.b16 %v429, %v421
    %v670 = vpack.c.b16 %v430, %v422
    %v671 = vpack.c.b16 %v431, %v423
    %v672 = vpack.c.b16 %v432, %v424
    %v673 = vpack.c.b16 %v433, %v425
    %v674 = vpack.c.b16 %v434, %v426
    %v675 = vpack.c.b16 %v435, %v427
    %v676 = vpack.c.b16 %v436, %v428
    %v677 = vpack.c.b16 %v445, %v437
    %v678 = vpack.c.b16 %v446, %v438
    %v679 = vpack.c.b16 %v447, %v439
    %v680 = vpack.c.b16 %v448, %v440
    %v681 = vpack.c.b16 %v449, %v441
    %v682 = vpack.c.b16 %v450, %v442
    %v683 = vpack.c.b16 %v451, %v443
    %v684 = vpack.c.b16 %v452, %v444
    %v685 = vpack.c.b16 %v461, %v453
    %v686 = vpack.c.b16 %v462, %v454
    %v687 = vpack.c.b16 %v463, %v455
    %v688 = vpack.c.b16 %v464, %v456
    %v689 = vpack.c.b16 %v465, %v457
    %v690 = vpack.c.b16 %v466, %v458
    %v691 = vpack.c.b16 %v467, %v459
    %v692 = vpack.c.b16 %v468, %v460
    %v693 = vpack.c.b16 %v477, %v469
    %v694 = vpack.c.b16 %v478, %v470
    %v695 = vpack.c.b16 %v479, %v471
    %v696 = vpack.c.b16 %v480, %v472
    %v697 = vpack.c.b16 %v481, %v473
    %v698 = vpack.c.b16 %v482, %v474
    %v699 = vpack.c.b16 %v483, %v475
    %v700 = vpack.c.b16 %v484, %v476
    %v701 = vpack.c.b16 %v493, %v485
    %v702 = vpack.c.b16 %v494, %v486
    %v703 = vpack.c.b16 %v495, %v487
    %v704 = vpack.c.b16 %v496, %v488
    %v705 = vpack.c.b16 %v497, %v489
    %v706 = vpack.c.b16 %v498, %v490
    %v707 = vpack.c.b16 %v499, %v491
    %v708 = vpack.c.b16 %v500, %v492
    %v709 = vpack.c.b16 %v509, %v501
    %v710 = vpack.c.b16 %v510, %v502
    %v711 = vpack.c.b16 %v511, %v503
    %v712 = vpack.c.b16 %v512, %v504
    %v713 = vpack.c.b16 %v513, %v505
    %v714 = vpack.c.b16 %v514, %v506
    %v715 = vpack.c.b16 %v515, %v507
    %v716 = vpack.c.b16 %v516, %v508
    %v717 = vpack.c.b16 %v525, %v517
    %v718 = vpack.c.b16 %v526, %v518
    %v719 = vpack.c.b16 %v527, %v519
    %v720 = vpack.c.b16 %v528, %v520
    %v721 = vpack.c.b16 %v529, %v521
    %v722 = vpack.c.b16 %v530, %v522
    %v723 = vpack.c.b16 %v531, %v523
    %v724 = vpack.c.b16 %v532, %v524
    %v725 = vpack.c.b16 %v541, %v533
    %v726 = vpack.c.b16 %v542, %v534
    %v727 = vpack.c.b16 %v543, %v535
    %v728 = vpack.c.b16 %v544, %v536
    %v729 = vpack.c.b16 %v545, %v537
    %v730 = vpack.c.b16 %v546, %v538
    %v731 = vpack.c.b16 %v547, %v539
    %v732 = vpack.c.b16 %v548, %v540
    %v733 = vpack.c.b16 %v557, %v549
    %v734 = vpack.c.b16 %v558, %v550
    %v735 = vpack.c.b16 %v559, %v551
    %v736 = vpack.c.b16 %v560, %v552
    %v737 = vpack.c.b16 %v561, %v553
    %v738 = vpack.c.b16 %v562, %v554
    %v739 = vpack.c.b16 %v563, %v555
    %v740 = vpack.c.b16 %v564, %v556
    %v741 = vpack.c.b16 %v573, %v565
    %v742 = vpack.c.b16 %v574, %v566
    %v743 = vpack.c.b16 %v575, %v567
    %v744 = vpack.c.b16 %v576, %v568
    %v745 = vpack.c.b16 %v577, %v569
    %v746 = vpack.c.b16 %v578, %v570
    %v747 = vpack.c.b16 %v579, %v571
    %v748 = vpack.c.b16 %v580, %v572
    %v749 = vpack.c.b16 %v589, %v581
    %v750 = vpack.c.b16 %v590, %v582
    %v751 = vpack.c.b16 %v591, %v583
    %v752 = vpack.c.b16 %v592, %v584
    %v753 = vpack.c.b16 %v593, %v585
    %v754 = vpack.c.b16 %v594, %v586
    %v755 = vpack.c.b16 %v595, %v587
    %v756 = vpack.c.b16 %v596, %v588
    %v757 = vpack.c.b16 %v605, %v597
    %v758 = vpack.c.b16 %v606, %v598
    %v759 = vpack.c.b16 %v607, %v599
    %v760 = vpack.c.b16 %v608, %v600
    %v761 = vpack.c.b16 %v609, %v601
    %v762 = vpack.c.b16 %v610, %v602
    %v763 = vpack.c.b16 %v611, %v603
    %v764 = vpack.c.b16 %v612, %v604
    %v765 = vpack.c.b16 %v621, %v613
    %v766 = vpack.c.b16 %v622, %v614
    %v767 = vpack.c.b16 %v623, %v615
    %v768 = vpack.c.b16 %v624, %v616
    %v769 = vpack.c.b16 %v625, %v617
    %v770 = vpack.c.b16 %v626, %v618
    %v771 = vpack.c.b16 %v627, %v619
    %v772 = vpack.c.b16 %v628, %v620
    %v773 = vpack.c.b16 %v637, %v629
    %v774 = vpack.c.b16 %v638, %v630
    %v775 = vpack.c.b16 %v639, %v631
    %v776 = vpack.c.b16 %v640, %v632
    %v777 = vpack.c.b16 %v641, %v633
    %v778 = vpack.c.b16 %v642, %v634
    %v779 = vpack.c.b16 %v643, %v635
    %v780 = vpack.c.b16 %v644, %v636
    %v781 = vpack.c.b16 %v653, %v645
    %v782 = vpack.c.b16 %v654, %v646
    %v783 = vpack.c.b16 %v655, %v647
    %v784 = vpack.c.b16 %v656, %v648
    %v785 = vpack.c.b16 %v657, %v649
    %v786 = vpack.c.b16 %v658, %v650
    %v787 = vpack.c.b16 %v659, %v651
    %v788 = vpack.c.b16 %v660, %v652
    %917 = vmatprep.subr.bf16.mxu0 %v662
    %918 = vmatpush1.bf16.msra.mxu0 %v661
    %919 = vmatprep.subr.bf16.mxu0 %v670
    %920 = vmatpush1.bf16.msra.mxu0 %v669
    %921 = vmatprep.subr.bf16.mxu0 %v678
    %922 = vmatpush1.bf16.msra.mxu0 %v677
    %923 = vmatprep.subr.bf16.mxu0 %v686
    %924 = vmatpush1.bf16.msra.mxu0 %v685
    %925 = vmatprep.subr.bf16.mxu0 %v694
    %926 = vmatpush1.bf16.msra.mxu0 %v693
    %927 = vmatprep.subr.bf16.mxu0 %v702
    %928 = vmatpush1.bf16.msra.mxu0 %v701
    %929 = vmatprep.subr.bf16.mxu0 %v710
    %930 = vmatpush1.bf16.msra.mxu0 %v709
    %931 = vmatprep.subr.bf16.mxu0 %v718
    %932 = vmatpush1.bf16.msra.mxu0 %v717
    %933 = vmatprep.subr.bf16.mxu0 %v726
    %934 = vmatpush1.bf16.msra.mxu0 %v725
    %935 = vmatprep.subr.bf16.mxu0 %v734
    %936 = vmatpush1.bf16.msra.mxu0 %v733
    %937 = vmatprep.subr.bf16.mxu0 %v742
    %938 = vmatpush1.bf16.msra.mxu0 %v741
    %939 = vmatprep.subr.bf16.mxu0 %v750
    %940 = vmatpush1.bf16.msra.mxu0 %v749
    %941 = vmatprep.subr.bf16.mxu0 %v758
    %942 = vmatpush1.bf16.msra.mxu0 %v757
    %943 = vmatprep.subr.bf16.mxu0 %v766
    %944 = vmatpush1.bf16.msra.mxu0 %v765
    %945 = vmatprep.subr.bf16.mxu0 %v774
    %946 = vmatpush1.bf16.msra.mxu0 %v773
    %947 = vmatprep.subr.bf16.mxu0 %v782
    %948 = vmatpush1.bf16.msra.mxu0 %v781
    %949 = vmatprep.mubr.bf16.mxu0 %v274
    %950 = vmatmul.mubr.bf16.gmra.mrb[0].mxu0 %v273
    %v951 = vpop.f32.mrb[0].mxu0
    %v952 = vadd.f32 %v233, %v951
    %v953 = vpop.f32.mrb[0].mxu0
    %v954 = vadd.f32 %v237, %v953
    %v955 = vpop.f32.mrb[0].mxu0
    %v956 = vpop.f32.mrb[0].mxu0
    %957 = vdwg.mxu0
    %958 = vmatprep.subr.bf16.mxu0 %v664
    %959 = vmatpush1.bf16.msra.mxu0 %v663
    %960 = vmatprep.subr.bf16.mxu0 %v672
    %961 = vmatpush1.bf16.msra.mxu0 %v671
    %962 = vmatprep.subr.bf16.mxu0 %v680
    %963 = vmatpush1.bf16.msra.mxu0 %v679
    %964 = vmatprep.subr.bf16.mxu0 %v688
    %965 = vmatpush1.bf16.msra.mxu0 %v687
    %966 = vmatprep.subr.bf16.mxu0 %v696
    %967 = vmatpush1.bf16.msra.mxu0 %v695
    %968 = vmatprep.subr.bf16.mxu0 %v704
    %969 = vmatpush1.bf16.msra.mxu0 %v703
    %970 = vmatprep.subr.bf16.mxu0 %v712
    %971 = vmatpush1.bf16.msra.mxu0 %v711
    %972 = vmatprep.subr.bf16.mxu0 %v720
    %973 = vmatpush1.bf16.msra.mxu0 %v719
    %974 = vmatprep.subr.bf16.mxu0 %v728
    %975 = vmatpush1.bf16.msra.mxu0 %v727
    %976 = vmatprep.subr.bf16.mxu0 %v736
    %977 = vmatpush1.bf16.msra.mxu0 %v735
    %978 = vmatprep.subr.bf16.mxu0 %v744
    %979 = vmatpush1.bf16.msra.mxu0 %v743
    %980 = vmatprep.subr.bf16.mxu0 %v752
    %981 = vmatpush1.bf16.msra.mxu0 %v751
    %982 = vmatprep.subr.bf16.mxu0 %v760
    %983 = vmatpush1.bf16.msra.mxu0 %v759
    %984 = vmatprep.subr.bf16.mxu0 %v768
    %985 = vmatpush1.bf16.msra.mxu0 %v767
    %986 = vmatprep.subr.bf16.mxu0 %v776
    %987 = vmatpush1.bf16.msra.mxu0 %v775
    %988 = vmatprep.subr.bf16.mxu0 %v784
    %989 = vmatpush1.bf16.msra.mxu0 %v783
    %990 = vmatprep.mubr.bf16.mxu0 %v274
    %991 = vmatmul.mubr.bf16.gmra.mrb[0].mxu0 %v273
    %v992 = vpop.f32.mrb[0].mxu0
    %v993 = vadd.f32 %v241, %v992
    %v994 = vpop.f32.mrb[0].mxu0
    %v995 = vadd.f32 %v245, %v994
    %v996 = vpop.f32.mrb[0].mxu0
    %v997 = vpop.f32.mrb[0].mxu0
    %998 = vdwg.mxu0
    %999 = vmatprep.subr.bf16.mxu0 %v666
    %1000 = vmatpush1.bf16.msra.mxu0 %v665
    %1001 = vmatprep.subr.bf16.mxu0 %v674
    %1002 = vmatpush1.bf16.msra.mxu0 %v673
    %1003 = vmatprep.subr.bf16.mxu0 %v682
    %1004 = vmatpush1.bf16.msra.mxu0 %v681
    %1005 = vmatprep.subr.bf16.mxu0 %v690
    %1006 = vmatpush1.bf16.msra.mxu0 %v689
    %1007 = vmatprep.subr.bf16.mxu0 %v698
    %1008 = vmatpush1.bf16.msra.mxu0 %v697
    %1009 = vmatprep.subr.bf16.mxu0 %v706
    %1010 = vmatpush1.bf16.msra.mxu0 %v705
    %1011 = vmatprep.subr.bf16.mxu0 %v714
    %1012 = vmatpush1.bf16.msra.mxu0 %v713
    %1013 = vmatprep.subr.bf16.mxu0 %v722
    %1014 = vmatpush1.bf16.msra.mxu0 %v721
    %1015 = vmatprep.subr.bf16.mxu0 %v730
    %1016 = vmatpush1.bf16.msra.mxu0 %v729
    %1017 = vmatprep.subr.bf16.mxu0 %v738
    %1018 = vmatpush1.bf16.msra.mxu0 %v737
    %1019 = vmatprep.subr.bf16.mxu0 %v746
    %1020 = vmatpush1.bf16.msra.mxu0 %v745
    %1021 = vmatprep.subr.bf16.mxu0 %v754
    %1022 = vmatpush1.bf16.msra.mxu0 %v753
    %1023 = vmatprep.subr.bf16.mxu0 %v762
    %1024 = vmatpush1.bf16.msra.mxu0 %v761
    %1025 = vmatprep.subr.bf16.mxu0 %v770
    %1026 = vmatpush1.bf16.msra.mxu0 %v769
    %1027 = vmatprep.subr.bf16.mxu0 %v778
    %1028 = vmatpush1.bf16.msra.mxu0 %v777
    %1029 = vmatprep.subr.bf16.mxu0 %v786
    %1030 = vmatpush1.bf16.msra.mxu0 %v785
    %1031 = vmatprep.mubr.bf16.mxu0 %v274
    %1032 = vmatmul.mubr.bf16.gmra.mrb[0].mxu0 %v273
    %v1033 = vpop.f32.mrb[0].mxu0
    %v1034 = vadd.f32 %v249, %v1033
    %v1035 = vpop.f32.mrb[0].mxu0
    %v1036 = vadd.f32 %v253, %v1035
    %v1037 = vpop.f32.mrb[0].mxu0
    %v1038 = vpop.f32.mrb[0].mxu0
    %1039 = vdwg.mxu0
    %1040 = vmatprep.subr.bf16.mxu0 %v668
    %1041 = vmatpush1.bf16.msra.mxu0 %v667
    %1042 = vmatprep.subr.bf16.mxu0 %v676
    %1043 = vmatpush1.bf16.msra.mxu0 %v675
    %1044 = vmatprep.subr.bf16.mxu0 %v684
    %1045 = vmatpush1.bf16.msra.mxu0 %v683
    %1046 = vmatprep.subr.bf16.mxu0 %v692
    %1047 = vmatpush1.bf16.msra.mxu0 %v691
    %1048 = vmatprep.subr.bf16.mxu0 %v700
    %1049 = vmatpush1.bf16.msra.mxu0 %v699
    %1050 = vmatprep.subr.bf16.mxu0 %v708
    %1051 = vmatpush1.bf16.msra.mxu0 %v707
    %1052 = vmatprep.subr.bf16.mxu0 %v716
    %1053 = vmatpush1.bf16.msra.mxu0 %v715
    %1054 = vmatprep.subr.bf16.mxu0 %v724
    %1055 = vmatpush1.bf16.msra.mxu0 %v723
    %1056 = vmatprep.subr.bf16.mxu0 %v732
    %1057 = vmatpush1.bf16.msra.mxu0 %v731
    %1058 = vmatprep.subr.bf16.mxu0 %v740
    %1059 = vmatpush1.bf16.msra.mxu0 %v739
    %1060 = vmatprep.subr.bf16.mxu0 %v748
    %1061 = vmatpush1.bf16.msra.mxu0 %v747
    %1062 = vmatprep.subr.bf16.mxu0 %v756
    %1063 = vmatpush1.bf16.msra.mxu0 %v755
    %1064 = vmatprep.subr.bf16.mxu0 %v764
    %1065 = vmatpush1.bf16.msra.mxu0 %v763
    %1066 = vmatprep.subr.bf16.mxu0 %v772
    %1067 = vmatpush1.bf16.msra.mxu0 %v771
    %1068 = vmatprep.subr.bf16.mxu0 %v780
    %1069 = vmatpush1.bf16.msra.mxu0 %v779
    %1070 = vmatprep.subr.bf16.mxu0 %v788
    %1071 = vmatpush1.bf16.msra.mxu0 %v787
    %1072 = vmatprep.mubr.bf16.mxu0 %v274
    %1073 = vmatmul.mubr.bf16.gmra.mrb[0].mxu0 %v273
    %v1074 = vpop.f32.mrb[0].mxu0
    %v1075 = vadd.f32 %v257, %v1074
    %v1076 = vpop.f32.mrb[0].mxu0
    %v1077 = vadd.f32 %v261, %v1076
    %v1078 = vpop.f32.mrb[0].mxu0
    %v1079 = vpop.f32.mrb[0].mxu0
    %1080 = vdwg.mxu0
    %v1081 = vpack.c.bf16 %v952, %v952
    %v1082 = vpack.c.bf16 %v954, %v954
    %v1083 = vpack.c.bf16 %v993, %v993
    %v1084 = vpack.c.bf16 %v995, %v995
    %v1085 = vpack.c.bf16 %v1034, %v1034
    %v1086 = vpack.c.bf16 %v1036, %v1036
    %v1087 = vpack.c.bf16 %v1075, %v1075
    %v1088 = vpack.c.bf16 %v1077, %v1077
    %v1089 = vmul.bf16 %v1081, 1045249613
    %v1090 = vmul.bf16 %v1082, 1045249613
    %v1091 = vmul.bf16 %v1083, 1045249613
    %v1092 = vmul.bf16 %v1084, 1045249613
    %v1093 = vmul.bf16 %v1085, 1045249613
    %v1094 = vmul.bf16 %v1086, 1045249613
    %v1095 = vmul.bf16 %v1087, 1045249613
    %v1096 = vmul.bf16 %v1088, 1045249613
    %v1097 = vmax.bf16 %v1081, %v1089
    %v1098 = vmax.bf16 %v1082, %v1090
    %v1099 = vmax.bf16 %v1083, %v1091
    %v1100 = vmax.bf16 %v1084, %v1092
    %v1101 = vmax.bf16 %v1085, %v1093
    %v1102 = vmax.bf16 %v1086, %v1094
    %v1103 = vmax.bf16 %v1087, %v1095
    %v1104 = vmax.bf16 %v1088, %v1096
    %s1105 = sadd.s32 %s98, 461845907
    %v1106 = vlaneseq
    %v1107 = vshrl.u32 %v1106, 7
    %v1108 = vlaneseq
    %v1109 = vand.u32 %v1108, 127
    %v1110 = vadd.s32 %v1109, 128
    %v1111 = vadd.s32 %v1109, 256
    %v1112 = vadd.s32 %v1109, 384
    %v1113 = vadd.s32 %v1109, 512
    %v1114 = vadd.s32 %v1109, 640
    %v1115 = vadd.s32 %v1109, 768
    %v1116 = vadd.s32 %v1109, 896
    %v1117 = vmul.u32 %v1107, 2654435769
    %v1118 = vstv %s1105
    %v1119 = vadd.s32 %v1117, %v1118
    %v1120 = vmul.u32 %v1109, 2246822507
    %v1121 = vmul.u32 %v1110, 2246822507
    %v1122 = vmul.u32 %v1111, 2246822507
    %v1123 = vmul.u32 %v1112, 2246822507
    %v1124 = vmul.u32 %v1113, 2246822507
    %v1125 = vmul.u32 %v1114, 2246822507
    %v1126 = vmul.u32 %v1115, 2246822507
    %v1127 = vmul.u32 %v1116, 2246822507
    %v1128 = vadd.s32 %v1119, %v1120
    %v1129 = vadd.s32 %v1119, %v1121
    %v1130 = vadd.s32 %v1119, %v1122
    %v1131 = vadd.s32 %v1119, %v1123
    %v1132 = vadd.s32 %v1119, %v1124
    %v1133 = vadd.s32 %v1119, %v1125
    %v1134 = vadd.s32 %v1119, %v1126
    %v1135 = vadd.s32 %v1119, %v1127
    %v1136 = vshrl.u32 %v1128, 15
    %v1137 = vshrl.u32 %v1129, 15
    %v1138 = vshrl.u32 %v1130, 15
    %v1139 = vshrl.u32 %v1131, 15
    %v1140 = vshrl.u32 %v1132, 15
    %v1141 = vshrl.u32 %v1133, 15
    %v1142 = vshrl.u32 %v1134, 15
    %v1143 = vshrl.u32 %v1135, 15
    %v1144 = vxor.u32 %v1128, %v1136
    %v1145 = vxor.u32 %v1129, %v1137
    %v1146 = vxor.u32 %v1130, %v1138
    %v1147 = vxor.u32 %v1131, %v1139
    %v1148 = vxor.u32 %v1132, %v1140
    %v1149 = vxor.u32 %v1133, %v1141
    %v1150 = vxor.u32 %v1134, %v1142
    %v1151 = vxor.u32 %v1135, %v1143
    %v1152 = vmul.u32 %v1144, 2146121005
    %v1153 = vmul.u32 %v1145, 2146121005
    %v1154 = vmul.u32 %v1146, 2146121005
    %v1155 = vmul.u32 %v1147, 2146121005
    %v1156 = vmul.u32 %v1148, 2146121005
    %v1157 = vmul.u32 %v1149, 2146121005
    %v1158 = vmul.u32 %v1150, 2146121005
    %v1159 = vmul.u32 %v1151, 2146121005
    %v1160 = vshrl.u32 %v1152, 13
    %v1161 = vshrl.u32 %v1153, 13
    %v1162 = vshrl.u32 %v1154, 13
    %v1163 = vshrl.u32 %v1155, 13
    %v1164 = vshrl.u32 %v1156, 13
    %v1165 = vshrl.u32 %v1157, 13
    %v1166 = vshrl.u32 %v1158, 13
    %v1167 = vshrl.u32 %v1159, 13
    %v1168 = vxor.u32 %v1152, %v1160
    %v1169 = vxor.u32 %v1153, %v1161
    %v1170 = vxor.u32 %v1154, %v1162
    %v1171 = vxor.u32 %v1155, %v1163
    %v1172 = vxor.u32 %v1156, %v1164
    %v1173 = vxor.u32 %v1157, %v1165
    %v1174 = vxor.u32 %v1158, %v1166
    %v1175 = vxor.u32 %v1159, %v1167
    %vm1176 = vcmp.ge.u32.totalorder %v1168, 1288490189
    %vm1177 = vcmp.ge.u32.totalorder %v1169, 1288490189
    %vm1178 = vcmp.ge.u32.totalorder %v1170, 1288490189
    %vm1179 = vcmp.ge.u32.totalorder %v1171, 1288490189
    %vm1180 = vcmp.ge.u32.totalorder %v1172, 1288490189
    %vm1181 = vcmp.ge.u32.totalorder %v1173, 1288490189
    %vm1182 = vcmp.ge.u32.totalorder %v1174, 1288490189
    %vm1183 = vcmp.ge.u32.totalorder %v1175, 1288490189
    %vm1184 = vmpackc.low %vm1176, %vm1176
    %vm1185 = vmpackc.low %vm1177, %vm1177
    %vm1186 = vmpackc.low %vm1178, %vm1178
    %vm1187 = vmpackc.low %vm1179, %vm1179
    %vm1188 = vmpackc.low %vm1180, %vm1180
    %vm1189 = vmpackc.low %vm1181, %vm1181
    %vm1190 = vmpackc.low %vm1182, %vm1182
    %vm1191 = vmpackc.low %vm1183, %vm1183
    %v1192 = vsel %vm1184, %v1097, 0
    %v1193 = vsel %vm1185, %v1098, 0
    %v1194 = vsel %vm1186, %v1099, 0
    %v1195 = vsel %vm1187, %v1100, 0
    %v1196 = vsel %vm1188, %v1101, 0
    %v1197 = vsel %vm1189, %v1102, 0
    %v1198 = vsel %vm1190, %v1103, 0
    %v1199 = vsel %vm1191, %v1104, 0
    %v1200 = vld [vmem:[#allocation9] sm:$0xff]
    %v1201 = vld [vmem:[#allocation9 + $0x8] sm:$0xff]
    %v1202 = vld [vmem:[#allocation9 + $0x10] sm:$0xff]
    %v1203 = vld [vmem:[#allocation9 + $0x18] sm:$0xff]
    %v1204 = vld [vmem:[#allocation9 + $0x20] sm:$0xff]
    %v1205 = vld [vmem:[#allocation9 + $0x28] sm:$0xff]
    %v1206 = vld [vmem:[#allocation9 + $0x30] sm:$0xff]
    %v1207 = vld [vmem:[#allocation9 + $0x38] sm:$0xff]
    %v1208 = vld [vmem:[#allocation9 + $0x40] sm:$0xff]
    %v1209 = vld [vmem:[#allocation9 + $0x48] sm:$0xff]
    %v1210 = vld [vmem:[#allocation9 + $0x50] sm:$0xff]
    %v1211 = vld [vmem:[#allocation9 + $0x58] sm:$0xff]
    %v1212 = vld [vmem:[#allocation9 + $0x60] sm:$0xff]
    %v1213 = vld [vmem:[#allocation9 + $0x68] sm:$0xff]
    %v1214 = vld [vmem:[#allocation9 + $0x70] sm:$0xff]
    %v1215 = vld [vmem:[#allocation9 + $0x78] sm:$0xff]
    %v1216 = vld [vmem:[#allocation9 + $0x80] sm:$0xff]
    %v1217 = vld [vmem:[#allocation9 + $0x88] sm:$0xff]
    %v1218 = vld [vmem:[#allocation9 + $0x90] sm:$0xff]
    %v1219 = vld [vmem:[#allocation9 + $0x98] sm:$0xff]
    %v1220 = vld [vmem:[#allocation9 + $0xa0] sm:$0xff]
    %v1221 = vld [vmem:[#allocation9 + $0xa8] sm:$0xff]
    %v1222 = vld [vmem:[#allocation9 + $0xb0] sm:$0xff]
    %v1223 = vld [vmem:[#allocation9 + $0xb8] sm:$0xff]
    %v1224 = vld [vmem:[#allocation9 + $0xc0] sm:$0xff]
    %v1225 = vld [vmem:[#allocation9 + $0xc8] sm:$0xff]
    %v1226 = vld [vmem:[#allocation9 + $0xd0] sm:$0xff]
    %v1227 = vld [vmem:[#allocation9 + $0xd8] sm:$0xff]
    %v1228 = vld [vmem:[#allocation9 + $0xe0] sm:$0xff]
    %v1229 = vld [vmem:[#allocation9 + $0xe8] sm:$0xff]
    %v1230 = vld [vmem:[#allocation9 + $0xf0] sm:$0xff]
    %v1231 = vld [vmem:[#allocation9 + $0xf8] sm:$0xff]
    %v1232 = vld [vmem:[#allocation9 + $0x100] sm:$0xff]
    %v1233 = vld [vmem:[#allocation9 + $0x108] sm:$0xff]
    %v1234 = vld [vmem:[#allocation9 + $0x110] sm:$0xff]
    %v1235 = vld [vmem:[#allocation9 + $0x118] sm:$0xff]
    %v1236 = vld [vmem:[#allocation9 + $0x120] sm:$0xff]
    %v1237 = vld [vmem:[#allocation9 + $0x128] sm:$0xff]
    %v1238 = vld [vmem:[#allocation9 + $0x130] sm:$0xff]
    %v1239 = vld [vmem:[#allocation9 + $0x138] sm:$0xff]
    %v1240 = vld [vmem:[#allocation9 + $0x140] sm:$0xff]
    %v1241 = vld [vmem:[#allocation9 + $0x148] sm:$0xff]
    %v1242 = vld [vmem:[#allocation9 + $0x150] sm:$0xff]
    %v1243 = vld [vmem:[#allocation9 + $0x158] sm:$0xff]
    %v1244 = vld [vmem:[#allocation9 + $0x160] sm:$0xff]
    %v1245 = vld [vmem:[#allocation9 + $0x168] sm:$0xff]
    %v1246 = vld [vmem:[#allocation9 + $0x170] sm:$0xff]
    %v1247 = vld [vmem:[#allocation9 + $0x178] sm:$0xff]
    %v1248 = vld [vmem:[#allocation9 + $0x180] sm:$0xff]
    %v1249 = vld [vmem:[#allocation9 + $0x188] sm:$0xff]
    %v1250 = vld [vmem:[#allocation9 + $0x190] sm:$0xff]
    %v1251 = vld [vmem:[#allocation9 + $0x198] sm:$0xff]
    %v1252 = vld [vmem:[#allocation9 + $0x1a0] sm:$0xff]
    %v1253 = vld [vmem:[#allocation9 + $0x1a8] sm:$0xff]
    %v1254 = vld [vmem:[#allocation9 + $0x1b0] sm:$0xff]
    %v1255 = vld [vmem:[#allocation9 + $0x1b8] sm:$0xff]
    %v1256 = vld [vmem:[#allocation9 + $0x1c0] sm:$0xff]
    %v1257 = vld [vmem:[#allocation9 + $0x1c8] sm:$0xff]
    %v1258 = vld [vmem:[#allocation9 + $0x1d0] sm:$0xff]
    %v1259 = vld [vmem:[#allocation9 + $0x1d8] sm:$0xff]
    %v1260 = vld [vmem:[#allocation9 + $0x1e0] sm:$0xff]
    %v1261 = vld [vmem:[#allocation9 + $0x1e8] sm:$0xff]
    %v1262 = vld [vmem:[#allocation9 + $0x1f0] sm:$0xff]
    %v1263 = vld [vmem:[#allocation9 + $0x1f8] sm:$0xff]
    %v1264 = vld [vmem:[#allocation9 + $0x200] sm:$0xff]
    %v1265 = vld [vmem:[#allocation9 + $0x208] sm:$0xff]
    %v1266 = vld [vmem:[#allocation9 + $0x210] sm:$0xff]
    %v1267 = vld [vmem:[#allocation9 + $0x218] sm:$0xff]
    %v1268 = vld [vmem:[#allocation9 + $0x220] sm:$0xff]
    %v1269 = vld [vmem:[#allocation9 + $0x228] sm:$0xff]
    %v1270 = vld [vmem:[#allocation9 + $0x230] sm:$0xff]
    %v1271 = vld [vmem:[#allocation9 + $0x238] sm:$0xff]
    %v1272 = vld [vmem:[#allocation9 + $0x240] sm:$0xff]
    %v1273 = vld [vmem:[#allocation9 + $0x248] sm:$0xff]
    %v1274 = vld [vmem:[#allocation9 + $0x250] sm:$0xff]
    %v1275 = vld [vmem:[#allocation9 + $0x258] sm:$0xff]
    %v1276 = vld [vmem:[#allocation9 + $0x260] sm:$0xff]
    %v1277 = vld [vmem:[#allocation9 + $0x268] sm:$0xff]
    %v1278 = vld [vmem:[#allocation9 + $0x270] sm:$0xff]
    %v1279 = vld [vmem:[#allocation9 + $0x278] sm:$0xff]
    %v1280 = vld [vmem:[#allocation9 + $0x280] sm:$0xff]
    %v1281 = vld [vmem:[#allocation9 + $0x288] sm:$0xff]
    %v1282 = vld [vmem:[#allocation9 + $0x290] sm:$0xff]
    %v1283 = vld [vmem:[#allocation9 + $0x298] sm:$0xff]
    %v1284 = vld [vmem:[#allocation9 + $0x2a0] sm:$0xff]
    %v1285 = vld [vmem:[#allocation9 + $0x2a8] sm:$0xff]
    %v1286 = vld [vmem:[#allocation9 + $0x2b0] sm:$0xff]
    %v1287 = vld [vmem:[#allocation9 + $0x2b8] sm:$0xff]
    %v1288 = vld [vmem:[#allocation9 + $0x2c0] sm:$0xff]
    %v1289 = vld [vmem:[#allocation9 + $0x2c8] sm:$0xff]
    %v1290 = vld [vmem:[#allocation9 + $0x2d0] sm:$0xff]
    %v1291 = vld [vmem:[#allocation9 + $0x2d8] sm:$0xff]
    %v1292 = vld [vmem:[#allocation9 + $0x2e0] sm:$0xff]
    %v1293 = vld [vmem:[#allocation9 + $0x2e8] sm:$0xff]
    %v1294 = vld [vmem:[#allocation9 + $0x2f0] sm:$0xff]
    %v1295 = vld [vmem:[#allocation9 + $0x2f8] sm:$0xff]
    %v1296 = vld [vmem:[#allocation9 + $0x300] sm:$0xff]
    %v1297 = vld [vmem:[#allocation9 + $0x308] sm:$0xff]
    %v1298 = vld [vmem:[#allocation9 + $0x310] sm:$0xff]
    %v1299 = vld [vmem:[#allocation9 + $0x318] sm:$0xff]
    %v1300 = vld [vmem:[#allocation9 + $0x320] sm:$0xff]
    %v1301 = vld [vmem:[#allocation9 + $0x328] sm:$0xff]
    %v1302 = vld [vmem:[#allocation9 + $0x330] sm:$0xff]
    %v1303 = vld [vmem:[#allocation9 + $0x338] sm:$0xff]
    %v1304 = vld [vmem:[#allocation9 + $0x340] sm:$0xff]
    %v1305 = vld [vmem:[#allocation9 + $0x348] sm:$0xff]
    %v1306 = vld [vmem:[#allocation9 + $0x350] sm:$0xff]
    %v1307 = vld [vmem:[#allocation9 + $0x358] sm:$0xff]
    %v1308 = vld [vmem:[#allocation9 + $0x360] sm:$0xff]
    %v1309 = vld [vmem:[#allocation9 + $0x368] sm:$0xff]
    %v1310 = vld [vmem:[#allocation9 + $0x370] sm:$0xff]
    %v1311 = vld [vmem:[#allocation9 + $0x378] sm:$0xff]
    %v1312 = vld [vmem:[#allocation9 + $0x380] sm:$0xff]
    %v1313 = vld [vmem:[#allocation9 + $0x388] sm:$0xff]
    %v1314 = vld [vmem:[#allocation9 + $0x390] sm:$0xff]
    %v1315 = vld [vmem:[#allocation9 + $0x398] sm:$0xff]
    %v1316 = vld [vmem:[#allocation9 + $0x3a0] sm:$0xff]
    %v1317 = vld [vmem:[#allocation9 + $0x3a8] sm:$0xff]
    %v1318 = vld [vmem:[#allocation9 + $0x3b0] sm:$0xff]
    %v1319 = vld [vmem:[#allocation9 + $0x3b8] sm:$0xff]
    %v1320 = vld [vmem:[#allocation9 + $0x3c0] sm:$0xff]
    %v1321 = vld [vmem:[#allocation9 + $0x3c8] sm:$0xff]
    %v1322 = vld [vmem:[#allocation9 + $0x3d0] sm:$0xff]
    %v1323 = vld [vmem:[#allocation9 + $0x3d8] sm:$0xff]
    %v1324 = vld [vmem:[#allocation9 + $0x3e0] sm:$0xff]
    %v1325 = vld [vmem:[#allocation9 + $0x3e8] sm:$0xff]
    %v1326 = vld [vmem:[#allocation9 + $0x3f0] sm:$0xff]
    %v1327 = vld [vmem:[#allocation9 + $0x3f8] sm:$0xff]
    %v1328 = vld [vmem:[#allocation9 + $0x400] sm:$0xff]
    %v1329 = vld [vmem:[#allocation9 + $0x408] sm:$0xff]
    %v1330 = vld [vmem:[#allocation9 + $0x410] sm:$0xff]
    %v1331 = vld [vmem:[#allocation9 + $0x418] sm:$0xff]
    %v1332 = vld [vmem:[#allocation9 + $0x420] sm:$0xff]
    %v1333 = vld [vmem:[#allocation9 + $0x428] sm:$0xff]
    %v1334 = vld [vmem:[#allocation9 + $0x430] sm:$0xff]
    %v1335 = vld [vmem:[#allocation9 + $0x438] sm:$0xff]
    %v1336 = vld [vmem:[#allocation9 + $0x440] sm:$0xff]
    %v1337 = vld [vmem:[#allocation9 + $0x448] sm:$0xff]
    %v1338 = vld [vmem:[#allocation9 + $0x450] sm:$0xff]
    %v1339 = vld [vmem:[#allocation9 + $0x458] sm:$0xff]
    %v1340 = vld [vmem:[#allocation9 + $0x460] sm:$0xff]
    %v1341 = vld [vmem:[#allocation9 + $0x468] sm:$0xff]
    %v1342 = vld [vmem:[#allocation9 + $0x470] sm:$0xff]
    %v1343 = vld [vmem:[#allocation9 + $0x478] sm:$0xff]
    %v1344 = vld [vmem:[#allocation9 + $0x480] sm:$0xff]
    %v1345 = vld [vmem:[#allocation9 + $0x488] sm:$0xff]
    %v1346 = vld [vmem:[#allocation9 + $0x490] sm:$0xff]
    %v1347 = vld [vmem:[#allocation9 + $0x498] sm:$0xff]
    %v1348 = vld [vmem:[#allocation9 + $0x4a0] sm:$0xff]
    %v1349 = vld [vmem:[#allocation9 + $0x4a8] sm:$0xff]
    %v1350 = vld [vmem:[#allocation9 + $0x4b0] sm:$0xff]
    %v1351 = vld [vmem:[#allocation9 + $0x4b8] sm:$0xff]
    %v1352 = vld [vmem:[#allocation9 + $0x4c0] sm:$0xff]
    %v1353 = vld [vmem:[#allocation9 + $0x4c8] sm:$0xff]
    %v1354 = vld [vmem:[#allocation9 + $0x4d0] sm:$0xff]
    %v1355 = vld [vmem:[#allocation9 + $0x4d8] sm:$0xff]
    %v1356 = vld [vmem:[#allocation9 + $0x4e0] sm:$0xff]
    %v1357 = vld [vmem:[#allocation9 + $0x4e8] sm:$0xff]
    %v1358 = vld [vmem:[#allocation9 + $0x4f0] sm:$0xff]
    %v1359 = vld [vmem:[#allocation9 + $0x4f8] sm:$0xff]
    %v1360 = vld [vmem:[#allocation9 + $0x500] sm:$0xff]
    %v1361 = vld [vmem:[#allocation9 + $0x508] sm:$0xff]
    %v1362 = vld [vmem:[#allocation9 + $0x510] sm:$0xff]
    %v1363 = vld [vmem:[#allocation9 + $0x518] sm:$0xff]
    %v1364 = vld [vmem:[#allocation9 + $0x520] sm:$0xff]
    %v1365 = vld [vmem:[#allocation9 + $0x528] sm:$0xff]
    %v1366 = vld [vmem:[#allocation9 + $0x530] sm:$0xff]
    %v1367 = vld [vmem:[#allocation9 + $0x538] sm:$0xff]
    %v1368 = vld [vmem:[#allocation9 + $0x540] sm:$0xff]
    %v1369 = vld [vmem:[#allocation9 + $0x548] sm:$0xff]
    %v1370 = vld [vmem:[#allocation9 + $0x550] sm:$0xff]
    %v1371 = vld [vmem:[#allocation9 + $0x558] sm:$0xff]
    %v1372 = vld [vmem:[#allocation9 + $0x560] sm:$0xff]
    %v1373 = vld [vmem:[#allocation9 + $0x568] sm:$0xff]
    %v1374 = vld [vmem:[#allocation9 + $0x570] sm:$0xff]
    %v1375 = vld [vmem:[#allocation9 + $0x578] sm:$0xff]
    %v1376 = vld [vmem:[#allocation9 + $0x580] sm:$0xff]
    %v1377 = vld [vmem:[#allocation9 + $0x588] sm:$0xff]
    %v1378 = vld [vmem:[#allocation9 + $0x590] sm:$0xff]
    %v1379 = vld [vmem:[#allocation9 + $0x598] sm:$0xff]
    %v1380 = vld [vmem:[#allocation9 + $0x5a0] sm:$0xff]
    %v1381 = vld [vmem:[#allocation9 + $0x5a8] sm:$0xff]
    %v1382 = vld [vmem:[#allocation9 + $0x5b0] sm:$0xff]
    %v1383 = vld [vmem:[#allocation9 + $0x5b8] sm:$0xff]
    %v1384 = vld [vmem:[#allocation9 + $0x5c0] sm:$0xff]
    %v1385 = vld [vmem:[#allocation9 + $0x5c8] sm:$0xff]
    %v1386 = vld [vmem:[#allocation9 + $0x5d0] sm:$0xff]
    %v1387 = vld [vmem:[#allocation9 + $0x5d8] sm:$0xff]
    %v1388 = vld [vmem:[#allocation9 + $0x5e0] sm:$0xff]
    %v1389 = vld [vmem:[#allocation9 + $0x5e8] sm:$0xff]
    %v1390 = vld [vmem:[#allocation9 + $0x5f0] sm:$0xff]
    %v1391 = vld [vmem:[#allocation9 + $0x5f8] sm:$0xff]
    %v1392 = vld [vmem:[#allocation9 + $0x600] sm:$0xff]
    %v1393 = vld [vmem:[#allocation9 + $0x608] sm:$0xff]
    %v1394 = vld [vmem:[#allocation9 + $0x610] sm:$0xff]
    %v1395 = vld [vmem:[#allocation9 + $0x618] sm:$0xff]
    %v1396 = vld [vmem:[#allocation9 + $0x620] sm:$0xff]
    %v1397 = vld [vmem:[#allocation9 + $0x628] sm:$0xff]
    %v1398 = vld [vmem:[#allocation9 + $0x630] sm:$0xff]
    %v1399 = vld [vmem:[#allocation9 + $0x638] sm:$0xff]
    %v1400 = vld [vmem:[#allocation9 + $0x640] sm:$0xff]
    %v1401 = vld [vmem:[#allocation9 + $0x648] sm:$0xff]
    %v1402 = vld [vmem:[#allocation9 + $0x650] sm:$0xff]
    %v1403 = vld [vmem:[#allocation9 + $0x658] sm:$0xff]
    %v1404 = vld [vmem:[#allocation9 + $0x660] sm:$0xff]
    %v1405 = vld [vmem:[#allocation9 + $0x668] sm:$0xff]
    %v1406 = vld [vmem:[#allocation9 + $0x670] sm:$0xff]
    %v1407 = vld [vmem:[#allocation9 + $0x678] sm:$0xff]
    %v1408 = vld [vmem:[#allocation9 + $0x680] sm:$0xff]
    %v1409 = vld [vmem:[#allocation9 + $0x688] sm:$0xff]
    %v1410 = vld [vmem:[#allocation9 + $0x690] sm:$0xff]
    %v1411 = vld [vmem:[#allocation9 + $0x698] sm:$0xff]
    %v1412 = vld [vmem:[#allocation9 + $0x6a0] sm:$0xff]
    %v1413 = vld [vmem:[#allocation9 + $0x6a8] sm:$0xff]
    %v1414 = vld [vmem:[#allocation9 + $0x6b0] sm:$0xff]
    %v1415 = vld [vmem:[#allocation9 + $0x6b8] sm:$0xff]
    %v1416 = vld [vmem:[#allocation9 + $0x6c0] sm:$0xff]
    %v1417 = vld [vmem:[#allocation9 + $0x6c8] sm:$0xff]
    %v1418 = vld [vmem:[#allocation9 + $0x6d0] sm:$0xff]
    %v1419 = vld [vmem:[#allocation9 + $0x6d8] sm:$0xff]
    %v1420 = vld [vmem:[#allocation9 + $0x6e0] sm:$0xff]
    %v1421 = vld [vmem:[#allocation9 + $0x6e8] sm:$0xff]
    %v1422 = vld [vmem:[#allocation9 + $0x6f0] sm:$0xff]
    %v1423 = vld [vmem:[#allocation9 + $0x6f8] sm:$0xff]
    %v1424 = vld [vmem:[#allocation9 + $0x700] sm:$0xff]
    %v1425 = vld [vmem:[#allocation9 + $0x708] sm:$0xff]
    %v1426 = vld [vmem:[#allocation9 + $0x710] sm:$0xff]
    %v1427 = vld [vmem:[#allocation9 + $0x718] sm:$0xff]
    %v1428 = vld [vmem:[#allocation9 + $0x720] sm:$0xff]
    %v1429 = vld [vmem:[#allocation9 + $0x728] sm:$0xff]
    %v1430 = vld [vmem:[#allocation9 + $0x730] sm:$0xff]
    %v1431 = vld [vmem:[#allocation9 + $0x738] sm:$0xff]
    %v1432 = vld [vmem:[#allocation9 + $0x740] sm:$0xff]
    %v1433 = vld [vmem:[#allocation9 + $0x748] sm:$0xff]
    %v1434 = vld [vmem:[#allocation9 + $0x750] sm:$0xff]
    %v1435 = vld [vmem:[#allocation9 + $0x758] sm:$0xff]
    %v1436 = vld [vmem:[#allocation9 + $0x760] sm:$0xff]
    %v1437 = vld [vmem:[#allocation9 + $0x768] sm:$0xff]
    %v1438 = vld [vmem:[#allocation9 + $0x770] sm:$0xff]
    %v1439 = vld [vmem:[#allocation9 + $0x778] sm:$0xff]
    %v1440 = vld [vmem:[#allocation9 + $0x780] sm:$0xff]
    %v1441 = vld [vmem:[#allocation9 + $0x788] sm:$0xff]
    %v1442 = vld [vmem:[#allocation9 + $0x790] sm:$0xff]
    %v1443 = vld [vmem:[#allocation9 + $0x798] sm:$0xff]
    %v1444 = vld [vmem:[#allocation9 + $0x7a0] sm:$0xff]
    %v1445 = vld [vmem:[#allocation9 + $0x7a8] sm:$0xff]
    %v1446 = vld [vmem:[#allocation9 + $0x7b0] sm:$0xff]
    %v1447 = vld [vmem:[#allocation9 + $0x7b8] sm:$0xff]
    %v1448 = vld [vmem:[#allocation9 + $0x7c0] sm:$0xff]
    %v1449 = vld [vmem:[#allocation9 + $0x7c8] sm:$0xff]
    %v1450 = vld [vmem:[#allocation9 + $0x7d0] sm:$0xff]
    %v1451 = vld [vmem:[#allocation9 + $0x7d8] sm:$0xff]
    %v1452 = vld [vmem:[#allocation9 + $0x7e0] sm:$0xff]
    %v1453 = vld [vmem:[#allocation9 + $0x7e8] sm:$0xff]
    %v1454 = vld [vmem:[#allocation9 + $0x7f0] sm:$0xff]
    %v1455 = vld [vmem:[#allocation9 + $0x7f8] sm:$0xff]
    %v1456 = vld [vmem:[%s5] sm:$0xf]
    %v1458 = vlaneseq
    %v1459 = vshrl.u32 %v1458, 7
    %v1460 = vsub.s32 0, %v1459
    %v1461 = vrot.slane %v1456, %v1460
    %v1462 = vlaneseq
    %v1463 = vshrl.u32 %v1462, 7
    %v1464 = vsub.s32 1, %v1463
    %v1465 = vrot.slane %v1456, %v1464
    %v1466 = vlaneseq
    %v1467 = vshrl.u32 %v1466, 7
    %v1468 = vsub.s32 2, %v1467
    %v1469 = vrot.slane %v1456, %v1468
    %v1470 = vlaneseq
    %v1471 = vshrl.u32 %v1470, 7
    %v1472 = vsub.s32 3, %v1471
    %v1473 = vrot.slane %v1456, %v1472
    %v1734 = vunpack.c.l.b16 %v1200
    %v1735 = vunpack.c.h.b16 %v1200
    %v1736 = vunpack.c.l.b16 %v1201
    %v1737 = vunpack.c.h.b16 %v1201
    %v1738 = vunpack.c.l.b16 %v1202
    %v1739 = vunpack.c.h.b16 %v1202
    %v1740 = vunpack.c.l.b16 %v1203
    %v1741 = vunpack.c.h.b16 %v1203
    %v1742 = vunpack.c.l.b16 %v1204
    %v1743 = vunpack.c.h.b16 %v1204
    %v1744 = vunpack.c.l.b16 %v1205
    %v1745 = vunpack.c.h.b16 %v1205
    %v1746 = vunpack.c.l.b16 %v1206
    %v1747 = vunpack.c.h.b16 %v1206
    %v1748 = vunpack.c.l.b16 %v1207
    %v1749 = vunpack.c.h.b16 %v1207
    %v1750 = vunpack.c.l.b16 %v1208
    %v1751 = vunpack.c.h.b16 %v1208
    %v1752 = vunpack.c.l.b16 %v1209
    %v1753 = vunpack.c.h.b16 %v1209
    %v1754 = vunpack.c.l.b16 %v1210
    %v1755 = vunpack.c.h.b16 %v1210
    %v1756 = vunpack.c.l.b16 %v1211
    %v1757 = vunpack.c.h.b16 %v1211
    %v1758 = vunpack.c.l.b16 %v1212
    %v1759 = vunpack.c.h.b16 %v1212
    %v1760 = vunpack.c.l.b16 %v1213
    %v1761 = vunpack.c.h.b16 %v1213
    %v1762 = vunpack.c.l.b16 %v1214
    %v1763 = vunpack.c.h.b16 %v1214
    %v1764 = vunpack.c.l.b16 %v1215
    %v1765 = vunpack.c.h.b16 %v1215
    %v1766 = vunpack.c.l.b16 %v1216
    %v1767 = vunpack.c.h.b16 %v1216
    %v1768 = vunpack.c.l.b16 %v1217
    %v1769 = vunpack.c.h.b16 %v1217
    %v1770 = vunpack.c.l.b16 %v1218
    %v1771 = vunpack.c.h.b16 %v1218
    %v1772 = vunpack.c.l.b16 %v1219
    %v1773 = vunpack.c.h.b16 %v1219
    %v1774 = vunpack.c.l.b16 %v1220
    %v1775 = vunpack.c.h.b16 %v1220
    %v1776 = vunpack.c.l.b16 %v1221
    %v1777 = vunpack.c.h.b16 %v1221
    %v1778 = vunpack.c.l.b16 %v1222
    %v1779 = vunpack.c.h.b16 %v1222
    %v1780 = vunpack.c.l.b16 %v1223
    %v1781 = vunpack.c.h.b16 %v1223
    %v1782 = vunpack.c.l.b16 %v1224
    %v1783 = vunpack.c.h.b16 %v1224
    %v1784 = vunpack.c.l.b16 %v1225
    %v1785 = vunpack.c.h.b16 %v1225
    %v1786 = vunpack.c.l.b16 %v1226
    %v1787 = vunpack.c.h.b16 %v1226
    %v1788 = vunpack.c.l.b16 %v1227
    %v1789 = vunpack.c.h.b16 %v1227
    %v1790 = vunpack.c.l.b16 %v1228
    %v1791 = vunpack.c.h.b16 %v1228
    %v1792 = vunpack.c.l.b16 %v1229
    %v1793 = vunpack.c.h.b16 %v1229
    %v1794 = vunpack.c.l.b16 %v1230
    %v1795 = vunpack.c.h.b16 %v1230
    %v1796 = vunpack.c.l.b16 %v1231
    %v1797 = vunpack.c.h.b16 %v1231
    %v1798 = vunpack.c.l.b16 %v1232
    %v1799 = vunpack.c.h.b16 %v1232
    %v1800 = vunpack.c.l.b16 %v1233
    %v1801 = vunpack.c.h.b16 %v1233
    %v1802 = vunpack.c.l.b16 %v1234
    %v1803 = vunpack.c.h.b16 %v1234
    %v1804 = vunpack.c.l.b16 %v1235
    %v1805 = vunpack.c.h.b16 %v1235
    %v1806 = vunpack.c.l.b16 %v1236
    %v1807 = vunpack.c.h.b16 %v1236
    %v1808 = vunpack.c.l.b16 %v1237
    %v1809 = vunpack.c.h.b16 %v1237
    %v1810 = vunpack.c.l.b16 %v1238
    %v1811 = vunpack.c.h.b16 %v1238
    %v1812 = vunpack.c.l.b16 %v1239
    %v1813 = vunpack.c.h.b16 %v1239
    %v1814 = vunpack.c.l.b16 %v1240
    %v1815 = vunpack.c.h.b16 %v1240
    %v1816 = vunpack.c.l.b16 %v1241
    %v1817 = vunpack.c.h.b16 %v1241
    %v1818 = vunpack.c.l.b16 %v1242
    %v1819 = vunpack.c.h.b16 %v1242
    %v1820 = vunpack.c.l.b16 %v1243
    %v1821 = vunpack.c.h.b16 %v1243
    %v1822 = vunpack.c.l.b16 %v1244
    %v1823 = vunpack.c.h.b16 %v1244
    %v1824 = vunpack.c.l.b16 %v1245
    %v1825 = vunpack.c.h.b16 %v1245
    %v1826 = vunpack.c.l.b16 %v1246
    %v1827 = vunpack.c.h.b16 %v1246
    %v1828 = vunpack.c.l.b16 %v1247
    %v1829 = vunpack.c.h.b16 %v1247
    %v1830 = vunpack.c.l.b16 %v1248
    %v1831 = vunpack.c.h.b16 %v1248
    %v1832 = vunpack.c.l.b16 %v1249
    %v1833 = vunpack.c.h.b16 %v1249
    %v1834 = vunpack.c.l.b16 %v1250
    %v1835 = vunpack.c.h.b16 %v1250
    %v1836 = vunpack.c.l.b16 %v1251
    %v1837 = vunpack.c.h.b16 %v1251
    %v1838 = vunpack.c.l.b16 %v1252
    %v1839 = vunpack.c.h.b16 %v1252
    %v1840 = vunpack.c.l.b16 %v1253
    %v1841 = vunpack.c.h.b16 %v1253
    %v1842 = vunpack.c.l.b16 %v1254
    %v1843 = vunpack.c.h.b16 %v1254
    %v1844 = vunpack.c.l.b16 %v1255
    %v1845 = vunpack.c.h.b16 %v1255
    %v1846 = vunpack.c.l.b16 %v1256
    %v1847 = vunpack.c.h.b16 %v1256
    %v1848 = vunpack.c.l.b16 %v1257
    %v1849 = vunpack.c.h.b16 %v1257
    %v1850 = vunpack.c.l.b16 %v1258
    %v1851 = vunpack.c.h.b16 %v1258
    %v1852 = vunpack.c.l.b16 %v1259
    %v1853 = vunpack.c.h.b16 %v1259
    %v1854 = vunpack.c.l.b16 %v1260
    %v1855 = vunpack.c.h.b16 %v1260
    %v1856 = vunpack.c.l.b16 %v1261
    %v1857 = vunpack.c.h.b16 %v1261
    %v1858 = vunpack.c.l.b16 %v1262
    %v1859 = vunpack.c.h.b16 %v1262
    %v1860 = vunpack.c.l.b16 %v1263
    %v1861 = vunpack.c.h.b16 %v1263
    %v1862 = vunpack.c.l.b16 %v1264
    %v1863 = vunpack.c.h.b16 %v1264
    %v1864 = vunpack.c.l.b16 %v1265
    %v1865 = vunpack.c.h.b16 %v1265
    %v1866 = vunpack.c.l.b16 %v1266
    %v1867 = vunpack.c.h.b16 %v1266
    %v1868 = vunpack.c.l.b16 %v1267
    %v1869 = vunpack.c.h.b16 %v1267
    %v1870 = vunpack.c.l.b16 %v1268
    %v1871 = vunpack.c.h.b16 %v1268
    %v1872 = vunpack.c.l.b16 %v1269
    %v1873 = vunpack.c.h.b16 %v1269
    %v1874 = vunpack.c.l.b16 %v1270
    %v1875 = vunpack.c.h.b16 %v1270
    %v1876 = vunpack.c.l.b16 %v1271
    %v1877 = vunpack.c.h.b16 %v1271
    %v1878 = vunpack.c.l.b16 %v1272
    %v1879 = vunpack.c.h.b16 %v1272
    %v1880 = vunpack.c.l.b16 %v1273
    %v1881 = vunpack.c.h.b16 %v1273
    %v1882 = vunpack.c.l.b16 %v1274
    %v1883 = vunpack.c.h.b16 %v1274
    %v1884 = vunpack.c.l.b16 %v1275
    %v1885 = vunpack.c.h.b16 %v1275
    %v1886 = vunpack.c.l.b16 %v1276
    %v1887 = vunpack.c.h.b16 %v1276
    %v1888 = vunpack.c.l.b16 %v1277
    %v1889 = vunpack.c.h.b16 %v1277
    %v1890 = vunpack.c.l.b16 %v1278
    %v1891 = vunpack.c.h.b16 %v1278
    %v1892 = vunpack.c.l.b16 %v1279
    %v1893 = vunpack.c.h.b16 %v1279
    %v1894 = vunpack.c.l.b16 %v1280
    %v1895 = vunpack.c.h.b16 %v1280
    %v1896 = vunpack.c.l.b16 %v1281
    %v1897 = vunpack.c.h.b16 %v1281
    %v1898 = vunpack.c.l.b16 %v1282
    %v1899 = vunpack.c.h.b16 %v1282
    %v1900 = vunpack.c.l.b16 %v1283
    %v1901 = vunpack.c.h.b16 %v1283
    %v1902 = vunpack.c.l.b16 %v1284
    %v1903 = vunpack.c.h.b16 %v1284
    %v1904 = vunpack.c.l.b16 %v1285
    %v1905 = vunpack.c.h.b16 %v1285
    %v1906 = vunpack.c.l.b16 %v1286
    %v1907 = vunpack.c.h.b16 %v1286
    %v1908 = vunpack.c.l.b16 %v1287
    %v1909 = vunpack.c.h.b16 %v1287
    %v1910 = vunpack.c.l.b16 %v1288
    %v1911 = vunpack.c.h.b16 %v1288
    %v1912 = vunpack.c.l.b16 %v1289
    %v1913 = vunpack.c.h.b16 %v1289
    %v1914 = vunpack.c.l.b16 %v1290
    %v1915 = vunpack.c.h.b16 %v1290
    %v1916 = vunpack.c.l.b16 %v1291
    %v1917 = vunpack.c.h.b16 %v1291
    %v1918 = vunpack.c.l.b16 %v1292
    %v1919 = vunpack.c.h.b16 %v1292
    %v1920 = vunpack.c.l.b16 %v1293
    %v1921 = vunpack.c.h.b16 %v1293
    %v1922 = vunpack.c.l.b16 %v1294
    %v1923 = vunpack.c.h.b16 %v1294
    %v1924 = vunpack.c.l.b16 %v1295
    %v1925 = vunpack.c.h.b16 %v1295
    %v1926 = vunpack.c.l.b16 %v1296
    %v1927 = vunpack.c.h.b16 %v1296
    %v1928 = vunpack.c.l.b16 %v1297
    %v1929 = vunpack.c.h.b16 %v1297
    %v1930 = vunpack.c.l.b16 %v1298
    %v1931 = vunpack.c.h.b16 %v1298
    %v1932 = vunpack.c.l.b16 %v1299
    %v1933 = vunpack.c.h.b16 %v1299
    %v1934 = vunpack.c.l.b16 %v1300
    %v1935 = vunpack.c.h.b16 %v1300
    %v1936 = vunpack.c.l.b16 %v1301
    %v1937 = vunpack.c.h.b16 %v1301
    %v1938 = vunpack.c.l.b16 %v1302
    %v1939 = vunpack.c.h.b16 %v1302
    %v1940 = vunpack.c.l.b16 %v1303
    %v1941 = vunpack.c.h.b16 %v1303
    %v1942 = vunpack.c.l.b16 %v1304
    %v1943 = vunpack.c.h.b16 %v1304
    %v1944 = vunpack.c.l.b16 %v1305
    %v1945 = vunpack.c.h.b16 %v1305
    %v1946 = vunpack.c.l.b16 %v1306
    %v1947 = vunpack.c.h.b16 %v1306
    %v1948 = vunpack.c.l.b16 %v1307
    %v1949 = vunpack.c.h.b16 %v1307
    %v1950 = vunpack.c.l.b16 %v1308
    %v1951 = vunpack.c.h.b16 %v1308
    %v1952 = vunpack.c.l.b16 %v1309
    %v1953 = vunpack.c.h.b16 %v1309
    %v1954 = vunpack.c.l.b16 %v1310
    %v1955 = vunpack.c.h.b16 %v1310
    %v1956 = vunpack.c.l.b16 %v1311
    %v1957 = vunpack.c.h.b16 %v1311
    %v1958 = vunpack.c.l.b16 %v1312
    %v1959 = vunpack.c.h.b16 %v1312
    %v1960 = vunpack.c.l.b16 %v1313
    %v1961 = vunpack.c.h.b16 %v1313
    %v1962 = vunpack.c.l.b16 %v1314
    %v1963 = vunpack.c.h.b16 %v1314
    %v1964 = vunpack.c.l.b16 %v1315
    %v1965 = vunpack.c.h.b16 %v1315
    %v1966 = vunpack.c.l.b16 %v1316
    %v1967 = vunpack.c.h.b16 %v1316
    %v1968 = vunpack.c.l.b16 %v1317
    %v1969 = vunpack.c.h.b16 %v1317
    %v1970 = vunpack.c.l.b16 %v1318
    %v1971 = vunpack.c.h.b16 %v1318
    %v1972 = vunpack.c.l.b16 %v1319
    %v1973 = vunpack.c.h.b16 %v1319
    %v1974 = vunpack.c.l.b16 %v1320
    %v1975 = vunpack.c.h.b16 %v1320
    %v1976 = vunpack.c.l.b16 %v1321
    %v1977 = vunpack.c.h.b16 %v1321
    %v1978 = vunpack.c.l.b16 %v1322
    %v1979 = vunpack.c.h.b16 %v1322
    %v1980 = vunpack.c.l.b16 %v1323
    %v1981 = vunpack.c.h.b16 %v1323
    %v1982 = vunpack.c.l.b16 %v1324
    %v1983 = vunpack.c.h.b16 %v1324
    %v1984 = vunpack.c.l.b16 %v1325
    %v1985 = vunpack.c.h.b16 %v1325
    %v1986 = vunpack.c.l.b16 %v1326
    %v1987 = vunpack.c.h.b16 %v1326
    %v1988 = vunpack.c.l.b16 %v1327
    %v1989 = vunpack.c.h.b16 %v1327
    %v1990 = vunpack.c.l.b16 %v1328
    %v1991 = vunpack.c.h.b16 %v1328
    %v1992 = vunpack.c.l.b16 %v1329
    %v1993 = vunpack.c.h.b16 %v1329
    %v1994 = vunpack.c.l.b16 %v1330
    %v1995 = vunpack.c.h.b16 %v1330
    %v1996 = vunpack.c.l.b16 %v1331
    %v1997 = vunpack.c.h.b16 %v1331
    %v1998 = vunpack.c.l.b16 %v1332
    %v1999 = vunpack.c.h.b16 %v1332
    %v2000 = vunpack.c.l.b16 %v1333
    %v2001 = vunpack.c.h.b16 %v1333
    %v2002 = vunpack.c.l.b16 %v1334
    %v2003 = vunpack.c.h.b16 %v1334
    %v2004 = vunpack.c.l.b16 %v1335
    %v2005 = vunpack.c.h.b16 %v1335
    %v2006 = vunpack.c.l.b16 %v1336
    %v2007 = vunpack.c.h.b16 %v1336
    %v2008 = vunpack.c.l.b16 %v1337
    %v2009 = vunpack.c.h.b16 %v1337
    %v2010 = vunpack.c.l.b16 %v1338
    %v2011 = vunpack.c.h.b16 %v1338
    %v2012 = vunpack.c.l.b16 %v1339
    %v2013 = vunpack.c.h.b16 %v1339
    %v2014 = vunpack.c.l.b16 %v1340
    %v2015 = vunpack.c.h.b16 %v1340
    %v2016 = vunpack.c.l.b16 %v1341
    %v2017 = vunpack.c.h.b16 %v1341
    %v2018 = vunpack.c.l.b16 %v1342
    %v2019 = vunpack.c.h.b16 %v1342
    %v2020 = vunpack.c.l.b16 %v1343
    %v2021 = vunpack.c.h.b16 %v1343
    %v2022 = vunpack.c.l.b16 %v1344
    %v2023 = vunpack.c.h.b16 %v1344
    %v2024 = vunpack.c.l.b16 %v1345
    %v2025 = vunpack.c.h.b16 %v1345
    %v2026 = vunpack.c.l.b16 %v1346
    %v2027 = vunpack.c.h.b16 %v1346
    %v2028 = vunpack.c.l.b16 %v1347
    %v2029 = vunpack.c.h.b16 %v1347
    %v2030 = vunpack.c.l.b16 %v1348
    %v2031 = vunpack.c.h.b16 %v1348
    %v2032 = vunpack.c.l.b16 %v1349
    %v2033 = vunpack.c.h.b16 %v1349
    %v2034 = vunpack.c.l.b16 %v1350
    %v2035 = vunpack.c.h.b16 %v1350
    %v2036 = vunpack.c.l.b16 %v1351
    %v2037 = vunpack.c.h.b16 %v1351
    %v2038 = vunpack.c.l.b16 %v1352
    %v2039 = vunpack.c.h.b16 %v1352
    %v2040 = vunpack.c.l.b16 %v1353
    %v2041 = vunpack.c.h.b16 %v1353
    %v2042 = vunpack.c.l.b16 %v1354
    %v2043 = vunpack.c.h.b16 %v1354
    %v2044 = vunpack.c.l.b16 %v1355
    %v2045 = vunpack.c.h.b16 %v1355
    %v2046 = vunpack.c.l.b16 %v1356
    %v2047 = vunpack.c.h.b16 %v1356
    %v2048 = vunpack.c.l.b16 %v1357
    %v2049 = vunpack.c.h.b16 %v1357
    %v2050 = vunpack.c.l.b16 %v1358
    %v2051 = vunpack.c.h.b16 %v1358
    %v2052 = vunpack.c.l.b16 %v1359
    %v2053 = vunpack.c.h.b16 %v1359
    %v2054 = vunpack.c.l.b16 %v1360
    %v2055 = vunpack.c.h.b16 %v1360
    %v2056 = vunpack.c.l.b16 %v1361
    %v2057 = vunpack.c.h.b16 %v1361
    %v2058 = vunpack.c.l.b16 %v1362
    %v2059 = vunpack.c.h.b16 %v1362
    %v2060 = vunpack.c.l.b16 %v1363
    %v2061 = vunpack.c.h.b16 %v1363
    %v2062 = vunpack.c.l.b16 %v1364
    %v2063 = vunpack.c.h.b16 %v1364
    %v2064 = vunpack.c.l.b16 %v1365
    %v2065 = vunpack.c.h.b16 %v1365
    %v2066 = vunpack.c.l.b16 %v1366
    %v2067 = vunpack.c.h.b16 %v1366
    %v2068 = vunpack.c.l.b16 %v1367
    %v2069 = vunpack.c.h.b16 %v1367
    %v2070 = vunpack.c.l.b16 %v1368
    %v2071 = vunpack.c.h.b16 %v1368
    %v2072 = vunpack.c.l.b16 %v1369
    %v2073 = vunpack.c.h.b16 %v1369
    %v2074 = vunpack.c.l.b16 %v1370
    %v2075 = vunpack.c.h.b16 %v1370
    %v2076 = vunpack.c.l.b16 %v1371
    %v2077 = vunpack.c.h.b16 %v1371
    %v2078 = vunpack.c.l.b16 %v1372
    %v2079 = vunpack.c.h.b16 %v1372
    %v2080 = vunpack.c.l.b16 %v1373
    %v2081 = vunpack.c.h.b16 %v1373
    %v2082 = vunpack.c.l.b16 %v1374
    %v2083 = vunpack.c.h.b16 %v1374
    %v2084 = vunpack.c.l.b16 %v1375
    %v2085 = vunpack.c.h.b16 %v1375
    %v2086 = vunpack.c.l.b16 %v1376
    %v2087 = vunpack.c.h.b16 %v1376
    %v2088 = vunpack.c.l.b16 %v1377
    %v2089 = vunpack.c.h.b16 %v1377
    %v2090 = vunpack.c.l.b16 %v1378
    %v2091 = vunpack.c.h.b16 %v1378
    %v2092 = vunpack.c.l.b16 %v1379
    %v2093 = vunpack.c.h.b16 %v1379
    %v2094 = vunpack.c.l.b16 %v1380
    %v2095 = vunpack.c.h.b16 %v1380
    %v2096 = vunpack.c.l.b16 %v1381
    %v2097 = vunpack.c.h.b16 %v1381
    %v2098 = vunpack.c.l.b16 %v1382
    %v2099 = vunpack.c.h.b16 %v1382
    %v2100 = vunpack.c.l.b16 %v1383
    %v2101 = vunpack.c.h.b16 %v1383
    %v2102 = vunpack.c.l.b16 %v1384
    %v2103 = vunpack.c.h.b16 %v1384
    %v2104 = vunpack.c.l.b16 %v1385
    %v2105 = vunpack.c.h.b16 %v1385
    %v2106 = vunpack.c.l.b16 %v1386
    %v2107 = vunpack.c.h.b16 %v1386
    %v2108 = vunpack.c.l.b16 %v1387
    %v2109 = vunpack.c.h.b16 %v1387
    %v2110 = vunpack.c.l.b16 %v1388
    %v2111 = vunpack.c.h.b16 %v1388
    %v2112 = vunpack.c.l.b16 %v1389
    %v2113 = vunpack.c.h.b16 %v1389
    %v2114 = vunpack.c.l.b16 %v1390
    %v2115 = vunpack.c.h.b16 %v1390
    %v2116 = vunpack.c.l.b16 %v1391
    %v2117 = vunpack.c.h.b16 %v1391
    %v2118 = vunpack.c.l.b16 %v1392
    %v2119 = vunpack.c.h.b16 %v1392
    %v2120 = vunpack.c.l.b16 %v1393
    %v2121 = vunpack.c.h.b16 %v1393
    %v2122 = vunpack.c.l.b16 %v1394
    %v2123 = vunpack.c.h.b16 %v1394
    %v2124 = vunpack.c.l.b16 %v1395
    %v2125 = vunpack.c.h.b16 %v1395
    %v2126 = vunpack.c.l.b16 %v1396
    %v2127 = vunpack.c.h.b16 %v1396
    %v2128 = vunpack.c.l.b16 %v1397
    %v2129 = vunpack.c.h.b16 %v1397
    %v2130 = vunpack.c.l.b16 %v1398
    %v2131 = vunpack.c.h.b16 %v1398
    %v2132 = vunpack.c.l.b16 %v1399
    %v2133 = vunpack.c.h.b16 %v1399
    %v2134 = vunpack.c.l.b16 %v1400
    %v2135 = vunpack.c.h.b16 %v1400
    %v2136 = vunpack.c.l.b16 %v1401
    %v2137 = vunpack.c.h.b16 %v1401
    %v2138 = vunpack.c.l.b16 %v1402
    %v2139 = vunpack.c.h.b16 %v1402
    %v2140 = vunpack.c.l.b16 %v1403
    %v2141 = vunpack.c.h.b16 %v1403
    %v2142 = vunpack.c.l.b16 %v1404
    %v2143 = vunpack.c.h.b16 %v1404
    %v2144 = vunpack.c.l.b16 %v1405
    %v2145 = vunpack.c.h.b16 %v1405
    %v2146 = vunpack.c.l.b16 %v1406
    %v2147 = vunpack.c.h.b16 %v1406
    %v2148 = vunpack.c.l.b16 %v1407
    %v2149 = vunpack.c.h.b16 %v1407
    %v2150 = vunpack.c.l.b16 %v1408
    %v2151 = vunpack.c.h.b16 %v1408
    %v2152 = vunpack.c.l.b16 %v1409
    %v2153 = vunpack.c.h.b16 %v1409
    %v2154 = vunpack.c.l.b16 %v1410
    %v2155 = vunpack.c.h.b16 %v1410
    %v2156 = vunpack.c.l.b16 %v1411
    %v2157 = vunpack.c.h.b16 %v1411
    %v2158 = vunpack.c.l.b16 %v1412
    %v2159 = vunpack.c.h.b16 %v1412
    %v2160 = vunpack.c.l.b16 %v1413
    %v2161 = vunpack.c.h.b16 %v1413
    %v2162 = vunpack.c.l.b16 %v1414
    %v2163 = vunpack.c.h.b16 %v1414
    %v2164 = vunpack.c.l.b16 %v1415
    %v2165 = vunpack.c.h.b16 %v1415
    %v2166 = vunpack.c.l.b16 %v1416
    %v2167 = vunpack.c.h.b16 %v1416
    %v2168 = vunpack.c.l.b16 %v1417
    %v2169 = vunpack.c.h.b16 %v1417
    %v2170 = vunpack.c.l.b16 %v1418
    %v2171 = vunpack.c.h.b16 %v1418
    %v2172 = vunpack.c.l.b16 %v1419
    %v2173 = vunpack.c.h.b16 %v1419
    %v2174 = vunpack.c.l.b16 %v1420
    %v2175 = vunpack.c.h.b16 %v1420
    %v2176 = vunpack.c.l.b16 %v1421
    %v2177 = vunpack.c.h.b16 %v1421
    %v2178 = vunpack.c.l.b16 %v1422
    %v2179 = vunpack.c.h.b16 %v1422
    %v2180 = vunpack.c.l.b16 %v1423
    %v2181 = vunpack.c.h.b16 %v1423
    %v2182 = vunpack.c.l.b16 %v1424
    %v2183 = vunpack.c.h.b16 %v1424
    %v2184 = vunpack.c.l.b16 %v1425
    %v2185 = vunpack.c.h.b16 %v1425
    %v2186 = vunpack.c.l.b16 %v1426
    %v2187 = vunpack.c.h.b16 %v1426
    %v2188 = vunpack.c.l.b16 %v1427
    %v2189 = vunpack.c.h.b16 %v1427
    %v2190 = vunpack.c.l.b16 %v1428
    %v2191 = vunpack.c.h.b16 %v1428
    %v2192 = vunpack.c.l.b16 %v1429
    %v2193 = vunpack.c.h.b16 %v1429
    %v2194 = vunpack.c.l.b16 %v1430
    %v2195 = vunpack.c.h.b16 %v1430
    %v2196 = vunpack.c.l.b16 %v1431
    %v2197 = vunpack.c.h.b16 %v1431
    %v2198 = vunpack.c.l.b16 %v1432
    %v2199 = vunpack.c.h.b16 %v1432
    %v2200 = vunpack.c.l.b16 %v1433
    %v2201 = vunpack.c.h.b16 %v1433
    %v2202 = vunpack.c.l.b16 %v1434
    %v2203 = vunpack.c.h.b16 %v1434
    %v2204 = vunpack.c.l.b16 %v1435
    %v2205 = vunpack.c.h.b16 %v1435
    %v2206 = vunpack.c.l.b16 %v1436
    %v2207 = vunpack.c.h.b16 %v1436
    %v2208 = vunpack.c.l.b16 %v1437
    %v2209 = vunpack.c.h.b16 %v1437
    %v2210 = vunpack.c.l.b16 %v1438
    %v2211 = vunpack.c.h.b16 %v1438
    %v2212 = vunpack.c.l.b16 %v1439
    %v2213 = vunpack.c.h.b16 %v1439
    %v2214 = vunpack.c.l.b16 %v1440
    %v2215 = vunpack.c.h.b16 %v1440
    %v2216 = vunpack.c.l.b16 %v1441
    %v2217 = vunpack.c.h.b16 %v1441
    %v2218 = vunpack.c.l.b16 %v1442
    %v2219 = vunpack.c.h.b16 %v1442
    %v2220 = vunpack.c.l.b16 %v1443
    %v2221 = vunpack.c.h.b16 %v1443
    %v2222 = vunpack.c.l.b16 %v1444
    %v2223 = vunpack.c.h.b16 %v1444
    %v2224 = vunpack.c.l.b16 %v1445
    %v2225 = vunpack.c.h.b16 %v1445
    %v2226 = vunpack.c.l.b16 %v1446
    %v2227 = vunpack.c.h.b16 %v1446
    %v2228 = vunpack.c.l.b16 %v1447
    %v2229 = vunpack.c.h.b16 %v1447
    %v2230 = vunpack.c.l.b16 %v1448
    %v2231 = vunpack.c.h.b16 %v1448
    %v2232 = vunpack.c.l.b16 %v1449
    %v2233 = vunpack.c.h.b16 %v1449
    %v2234 = vunpack.c.l.b16 %v1450
    %v2235 = vunpack.c.h.b16 %v1450
    %v2236 = vunpack.c.l.b16 %v1451
    %v2237 = vunpack.c.h.b16 %v1451
    %v2238 = vunpack.c.l.b16 %v1452
    %v2239 = vunpack.c.h.b16 %v1452
    %v2240 = vunpack.c.l.b16 %v1453
    %v2241 = vunpack.c.h.b16 %v1453
    %v2242 = vunpack.c.l.b16 %v1454
    %v2243 = vunpack.c.h.b16 %v1454
    %v2244 = vunpack.c.l.b16 %v1455
    %v2245 = vunpack.c.h.b16 %v1455
    %v2246 = vpack.c.b16 %v1738, %v1734
    %v2247 = vpack.c.b16 %v1739, %v1735
    %v2248 = vpack.c.b16 %v1740, %v1736
    %v2249 = vpack.c.b16 %v1741, %v1737
    %v2250 = vpack.c.b16 %v1746, %v1742
    %v2251 = vpack.c.b16 %v1747, %v1743
    %v2252 = vpack.c.b16 %v1748, %v1744
    %v2253 = vpack.c.b16 %v1749, %v1745
    %v2254 = vpack.c.b16 %v1754, %v1750
    %v2255 = vpack.c.b16 %v1755, %v1751
    %v2256 = vpack.c.b16 %v1756, %v1752
    %v2257 = vpack.c.b16 %v1757, %v1753
    %v2258 = vpack.c.b16 %v1762, %v1758
    %v2259 = vpack.c.b16 %v1763, %v1759
    %v2260 = vpack.c.b16 %v1764, %v1760
    %v2261 = vpack.c.b16 %v1765, %v1761
    %v2262 = vpack.c.b16 %v1770, %v1766
    %v2263 = vpack.c.b16 %v1771, %v1767
    %v2264 = vpack.c.b16 %v1772, %v1768
    %v2265 = vpack.c.b16 %v1773, %v1769
    %v2266 = vpack.c.b16 %v1778, %v1774
    %v2267 = vpack.c.b16 %v1779, %v1775
    %v2268 = vpack.c.b16 %v1780, %v1776
    %v2269 = vpack.c.b16 %v1781, %v1777
    %v2270 = vpack.c.b16 %v1786, %v1782
    %v2271 = vpack.c.b16 %v1787, %v1783
    %v2272 = vpack.c.b16 %v1788, %v1784
    %v2273 = vpack.c.b16 %v1789, %v1785
    %v2274 = vpack.c.b16 %v1794, %v1790
    %v2275 = vpack.c.b16 %v1795, %v1791
    %v2276 = vpack.c.b16 %v1796, %v1792
    %v2277 = vpack.c.b16 %v1797, %v1793
    %v2278 = vpack.c.b16 %v1802, %v1798
    %v2279 = vpack.c.b16 %v1803, %v1799
    %v2280 = vpack.c.b16 %v1804, %v1800
    %v2281 = vpack.c.b16 %v1805, %v1801
    %v2282 = vpack.c.b16 %v1810, %v1806
    %v2283 = vpack.c.b16 %v1811, %v1807
    %v2284 = vpack.c.b16 %v1812, %v1808
    %v2285 = vpack.c.b16 %v1813, %v1809
    %v2286 = vpack.c.b16 %v1818, %v1814
    %v2287 = vpack.c.b16 %v1819, %v1815
    %v2288 = vpack.c.b16 %v1820, %v1816
    %v2289 = vpack.c.b16 %v1821, %v1817
    %v2290 = vpack.c.b16 %v1826, %v1822
    %v2291 = vpack.c.b16 %v1827, %v1823
    %v2292 = vpack.c.b16 %v1828, %v1824
    %v2293 = vpack.c.b16 %v1829, %v1825
    %v2294 = vpack.c.b16 %v1834, %v1830
    %v2295 = vpack.c.b16 %v1835, %v1831
    %v2296 = vpack.c.b16 %v1836, %v1832
    %v2297 = vpack.c.b16 %v1837, %v1833
    %v2298 = vpack.c.b16 %v1842, %v1838
    %v2299 = vpack.c.b16 %v1843, %v1839
    %v2300 = vpack.c.b16 %v1844, %v1840
    %v2301 = vpack.c.b16 %v1845, %v1841
    %v2302 = vpack.c.b16 %v1850, %v1846
    %v2303 = vpack.c.b16 %v1851, %v1847
    %v2304 = vpack.c.b16 %v1852, %v1848
    %v2305 = vpack.c.b16 %v1853, %v1849
    %v2306 = vpack.c.b16 %v1858, %v1854
    %v2307 = vpack.c.b16 %v1859, %v1855
    %v2308 = vpack.c.b16 %v1860, %v1856
    %v2309 = vpack.c.b16 %v1861, %v1857
    %v2310 = vpack.c.b16 %v1866, %v1862
    %v2311 = vpack.c.b16 %v1867, %v1863
    %v2312 = vpack.c.b16 %v1868, %v1864
    %v2313 = vpack.c.b16 %v1869, %v1865
    %v2314 = vpack.c.b16 %v1874, %v1870
    %v2315 = vpack.c.b16 %v1875, %v1871
    %v2316 = vpack.c.b16 %v1876, %v1872
    %v2317 = vpack.c.b16 %v1877, %v1873
    %v2318 = vpack.c.b16 %v1882, %v1878
    %v2319 = vpack.c.b16 %v1883, %v1879
    %v2320 = vpack.c.b16 %v1884, %v1880
    %v2321 = vpack.c.b16 %v1885, %v1881
    %v2322 = vpack.c.b16 %v1890, %v1886
    %v2323 = vpack.c.b16 %v1891, %v1887
    %v2324 = vpack.c.b16 %v1892, %v1888
    %v2325 = vpack.c.b16 %v1893, %v1889
    %v2326 = vpack.c.b16 %v1898, %v1894
    %v2327 = vpack.c.b16 %v1899, %v1895
    %v2328 = vpack.c.b16 %v1900, %v1896
    %v2329 = vpack.c.b16 %v1901, %v1897
    %v2330 = vpack.c.b16 %v1906, %v1902
    %v2331 = vpack.c.b16 %v1907, %v1903
    %v2332 = vpack.c.b16 %v1908, %v1904
    %v2333 = vpack.c.b16 %v1909, %v1905
    %v2334 = vpack.c.b16 %v1914, %v1910
    %v2335 = vpack.c.b16 %v1915, %v1911
    %v2336 = vpack.c.b16 %v1916, %v1912
    %v2337 = vpack.c.b16 %v1917, %v1913
    %v2338 = vpack.c.b16 %v1922, %v1918
    %v2339 = vpack.c.b16 %v1923, %v1919
    %v2340 = vpack.c.b16 %v1924, %v1920
    %v2341 = vpack.c.b16 %v1925, %v1921
    %v2342 = vpack.c.b16 %v1930, %v1926
    %v2343 = vpack.c.b16 %v1931, %v1927
    %v2344 = vpack.c.b16 %v1932, %v1928
    %v2345 = vpack.c.b16 %v1933, %v1929
    %v2346 = vpack.c.b16 %v1938, %v1934
    %v2347 = vpack.c.b16 %v1939, %v1935
    %v2348 = vpack.c.b16 %v1940, %v1936
    %v2349 = vpack.c.b16 %v1941, %v1937
    %v2350 = vpack.c.b16 %v1946, %v1942
    %v2351 = vpack.c.b16 %v1947, %v1943
    %v2352 = vpack.c.b16 %v1948, %v1944
    %v2353 = vpack.c.b16 %v1949, %v1945
    %v2354 = vpack.c.b16 %v1954, %v1950
    %v2355 = vpack.c.b16 %v1955, %v1951
    %v2356 = vpack.c.b16 %v1956, %v1952
    %v2357 = vpack.c.b16 %v1957, %v1953
    %v2358 = vpack.c.b16 %v1962, %v1958
    %v2359 = vpack.c.b16 %v1963, %v1959
    %v2360 = vpack.c.b16 %v1964, %v1960
    %v2361 = vpack.c.b16 %v1965, %v1961
    %v2362 = vpack.c.b16 %v1970, %v1966
    %v2363 = vpack.c.b16 %v1971, %v1967
    %v2364 = vpack.c.b16 %v1972, %v1968
    %v2365 = vpack.c.b16 %v1973, %v1969
    %v2366 = vpack.c.b16 %v1978, %v1974
    %v2367 = vpack.c.b16 %v1979, %v1975
    %v2368 = vpack.c.b16 %v1980, %v1976
    %v2369 = vpack.c.b16 %v1981, %v1977
    %v2370 = vpack.c.b16 %v1986, %v1982
    %v2371 = vpack.c.b16 %v1987, %v1983
    %v2372 = vpack.c.b16 %v1988, %v1984
    %v2373 = vpack.c.b16 %v1989, %v1985
    %v2374 = vpack.c.b16 %v1994, %v1990
    %v2375 = vpack.c.b16 %v1995, %v1991
    %v2376 = vpack.c.b16 %v1996, %v1992
    %v2377 = vpack.c.b16 %v1997, %v1993
    %v2378 = vpack.c.b16 %v2002, %v1998
    %v2379 = vpack.c.b16 %v2003, %v1999
    %v2380 = vpack.c.b16 %v2004, %v2000
    %v2381 = vpack.c.b16 %v2005, %v2001
    %v2382 = vpack.c.b16 %v2010, %v2006
    %v2383 = vpack.c.b16 %v2011, %v2007
    %v2384 = vpack.c.b16 %v2012, %v2008
    %v2385 = vpack.c.b16 %v2013, %v2009
    %v2386 = vpack.c.b16 %v2018, %v2014
    %v2387 = vpack.c.b16 %v2019, %v2015
    %v2388 = vpack.c.b16 %v2020, %v2016
    %v2389 = vpack.c.b16 %v2021, %v2017
    %v2390 = vpack.c.b16 %v2026, %v2022
    %v2391 = vpack.c.b16 %v2027, %v2023
    %v2392 = vpack.c.b16 %v2028, %v2024
    %v2393 = vpack.c.b16 %v2029, %v2025
    %v2394 = vpack.c.b16 %v2034, %v2030
    %v2395 = vpack.c.b16 %v2035, %v2031
    %v2396 = vpack.c.b16 %v2036, %v2032
    %v2397 = vpack.c.b16 %v2037, %v2033
    %v2398 = vpack.c.b16 %v2042, %v2038
    %v2399 = vpack.c.b16 %v2043, %v2039
    %v2400 = vpack.c.b16 %v2044, %v2040
    %v2401 = vpack.c.b16 %v2045, %v2041
    %v2402 = vpack.c.b16 %v2050, %v2046
    %v2403 = vpack.c.b16 %v2051, %v2047
    %v2404 = vpack.c.b16 %v2052, %v2048
    %v2405 = vpack.c.b16 %v2053, %v2049
    %v2406 = vpack.c.b16 %v2058, %v2054
    %v2407 = vpack.c.b16 %v2059, %v2055
    %v2408 = vpack.c.b16 %v2060, %v2056
    %v2409 = vpack.c.b16 %v2061, %v2057
    %v2410 = vpack.c.b16 %v2066, %v2062
    %v2411 = vpack.c.b16 %v2067, %v2063
    %v2412 = vpack.c.b16 %v2068, %v2064
    %v2413 = vpack.c.b16 %v2069, %v2065
    %v2414 = vpack.c.b16 %v2074, %v2070
    %v2415 = vpack.c.b16 %v2075, %v2071
    %v2416 = vpack.c.b16 %v2076, %v2072
    %v2417 = vpack.c.b16 %v2077, %v2073
    %v2418 = vpack.c.b16 %v2082, %v2078
    %v2419 = vpack.c.b16 %v2083, %v2079
    %v2420 = vpack.c.b16 %v2084, %v2080
    %v2421 = vpack.c.b16 %v2085, %v2081
    %v2422 = vpack.c.b16 %v2090, %v2086
    %v2423 = vpack.c.b16 %v2091, %v2087
    %v2424 = vpack.c.b16 %v2092, %v2088
    %v2425 = vpack.c.b16 %v2093, %v2089
    %v2426 = vpack.c.b16 %v2098, %v2094
    %v2427 = vpack.c.b16 %v2099, %v2095
    %v2428 = vpack.c.b16 %v2100, %v2096
    %v2429 = vpack.c.b16 %v2101, %v2097
    %v2430 = vpack.c.b16 %v2106, %v2102
    %v2431 = vpack.c.b16 %v2107, %v2103
    %v2432 = vpack.c.b16 %v2108, %v2104
    %v2433 = vpack.c.b16 %v2109, %v2105
    %v2434 = vpack.c.b16 %v2114, %v2110
    %v2435 = vpack.c.b16 %v2115, %v2111
    %v2436 = vpack.c.b16 %v2116, %v2112
    %v2437 = vpack.c.b16 %v2117, %v2113
    %v2438 = vpack.c.b16 %v2122, %v2118
    %v2439 = vpack.c.b16 %v2123, %v2119
    %v2440 = vpack.c.b16 %v2124, %v2120
    %v2441 = vpack.c.b16 %v2125, %v2121
    %v2442 = vpack.c.b16 %v2130, %v2126
    %v2443 = vpack.c.b16 %v2131, %v2127
    %v2444 = vpack.c.b16 %v2132, %v2128
    %v2445 = vpack.c.b16 %v2133, %v2129
    %v2446 = vpack.c.b16 %v2138, %v2134
    %v2447 = vpack.c.b16 %v2139, %v2135
    %v2448 = vpack.c.b16 %v2140, %v2136
    %v2449 = vpack.c.b16 %v2141, %v2137
    %v2450 = vpack.c.b16 %v2146, %v2142
    %v2451 = vpack.c.b16 %v2147, %v2143
    %v2452 = vpack.c.b16 %v2148, %v2144
    %v2453 = vpack.c.b16 %v2149, %v2145
    %v2454 = vpack.c.b16 %v2154, %v2150
    %v2455 = vpack.c.b16 %v2155, %v2151
    %v2456 = vpack.c.b16 %v2156, %v2152
    %v2457 = vpack.c.b16 %v2157, %v2153
    %v2458 = vpack.c.b16 %v2162, %v2158
    %v2459 = vpack.c.b16 %v2163, %v2159
    %v2460 = vpack.c.b16 %v2164, %v2160
    %v2461 = vpack.c.b16 %v2165, %v2161
    %v2462 = vpack.c.b16 %v2170, %v2166
    %v2463 = vpack.c.b16 %v2171, %v2167
    %v2464 = vpack.c.b16 %v2172, %v2168
    %v2465 = vpack.c.b16 %v2173, %v2169
    %v2466 = vpack.c.b16 %v2178, %v2174
    %v2467 = vpack.c.b16 %v2179, %v2175
    %v2468 = vpack.c.b16 %v2180, %v2176
    %v2469 = vpack.c.b16 %v2181, %v2177
    %v2470 = vpack.c.b16 %v2186, %v2182
    %v2471 = vpack.c.b16 %v2187, %v2183
    %v2472 = vpack.c.b16 %v2188, %v2184
    %v2473 = vpack.c.b16 %v2189, %v2185
    %v2474 = vpack.c.b16 %v2194, %v2190
    %v2475 = vpack.c.b16 %v2195, %v2191
    %v2476 = vpack.c.b16 %v2196, %v2192
    %v2477 = vpack.c.b16 %v2197, %v2193
    %v2478 = vpack.c.b16 %v2202, %v2198
    %v2479 = vpack.c.b16 %v2203, %v2199
    %v2480 = vpack.c.b16 %v2204, %v2200
    %v2481 = vpack.c.b16 %v2205, %v2201
    %v2482 = vpack.c.b16 %v2210, %v2206
    %v2483 = vpack.c.b16 %v2211, %v2207
    %v2484 = vpack.c.b16 %v2212, %v2208
    %v2485 = vpack.c.b16 %v2213, %v2209
    %v2486 = vpack.c.b16 %v2218, %v2214
    %v2487 = vpack.c.b16 %v2219, %v2215
    %v2488 = vpack.c.b16 %v2220, %v2216
    %v2489 = vpack.c.b16 %v2221, %v2217
    %v2490 = vpack.c.b16 %v2226, %v2222
    %v2491 = vpack.c.b16 %v2227, %v2223
    %v2492 = vpack.c.b16 %v2228, %v2224
    %v2493 = vpack.c.b16 %v2229, %v2225
    %v2494 = vpack.c.b16 %v2234, %v2230
    %v2495 = vpack.c.b16 %v2235, %v2231
    %v2496 = vpack.c.b16 %v2236, %v2232
    %v2497 = vpack.c.b16 %v2237, %v2233
    %v2498 = vpack.c.b16 %v2242, %v2238
    %v2499 = vpack.c.b16 %v2243, %v2239
    %v2500 = vpack.c.b16 %v2244, %v2240
    %v2501 = vpack.c.b16 %v2245, %v2241
    %2758 = vmatprep.subr.bf16.mxu0 %v2247
    %2759 = vmatpush1.bf16.msra.mxu0 %v2246
    %2760 = vmatprep.subr.bf16.mxu0 %v2251
    %2761 = vmatpush1.bf16.msra.mxu0 %v2250
    %2762 = vmatprep.subr.bf16.mxu0 %v2255
    %2763 = vmatpush1.bf16.msra.mxu0 %v2254
    %2764 = vmatprep.subr.bf16.mxu0 %v2259
    %2765 = vmatpush1.bf16.msra.mxu0 %v2258
    %2766 = vmatprep.subr.bf16.mxu0 %v2263
    %2767 = vmatpush1.bf16.msra.mxu0 %v2262
    %2768 = vmatprep.subr.bf16.mxu0 %v2267
    %2769 = vmatpush1.bf16.msra.mxu0 %v2266
    %2770 = vmatprep.subr.bf16.mxu0 %v2271
    %2771 = vmatpush1.bf16.msra.mxu0 %v2270
    %2772 = vmatprep.subr.bf16.mxu0 %v2275
    %2773 = vmatpush1.bf16.msra.mxu0 %v2274
    %2774 = vmatprep.subr.bf16.mxu0 %v2279
    %2775 = vmatpush1.bf16.msra.mxu0 %v2278
    %2776 = vmatprep.subr.bf16.mxu0 %v2283
    %2777 = vmatpush1.bf16.msra.mxu0 %v2282
    %2778 = vmatprep.subr.bf16.mxu0 %v2287
    %2779 = vmatpush1.bf16.msra.mxu0 %v2286
    %2780 = vmatprep.subr.bf16.mxu0 %v2291
    %2781 = vmatpush1.bf16.msra.mxu0 %v2290
    %2782 = vmatprep.subr.bf16.mxu0 %v2295
    %2783 = vmatpush1.bf16.msra.mxu0 %v2294
    %2784 = vmatprep.subr.bf16.mxu0 %v2299
    %2785 = vmatpush1.bf16.msra.mxu0 %v2298
    %2786 = vmatprep.subr.bf16.mxu0 %v2303
    %2787 = vmatpush1.bf16.msra.mxu0 %v2302
    %2788 = vmatprep.subr.bf16.mxu0 %v2307
    %2789 = vmatpush1.bf16.msra.mxu0 %v2306
    %2790 = vmatprep.mubr.bf16.mxu0 %v1193
    %2791 = vmatmul.mubr.bf16.gmra.mrb[0].mxu0 %v1192
    %v2792 = vpop.f32.mrb[0].mxu0
    %v2793 = vadd.f32 %v1461, %v2792
    %v2794 = vpop.f32.mrb[0].mxu0
    %v2795 = vadd.f32 %v1465, %v2794
    %v2796 = vpop.f32.mrb[0].mxu0
    %v2797 = vpop.f32.mrb[0].mxu0
    %2798 = vdwg.mxu0
    %2799 = vmatprep.subr.bf16.mxu0 %v2311
    %2800 = vmatpush1.bf16.msra.mxu0 %v2310
    %2801 = vmatprep.subr.bf16.mxu0 %v2315
    %2802 = vmatpush1.bf16.msra.mxu0 %v2314
    %2803 = vmatprep.subr.bf16.mxu0 %v2319
    %2804 = vmatpush1.bf16.msra.mxu0 %v2318
    %2805 = vmatprep.subr.bf16.mxu0 %v2323
    %2806 = vmatpush1.bf16.msra.mxu0 %v2322
    %2807 = vmatprep.subr.bf16.mxu0 %v2327
    %2808 = vmatpush1.bf16.msra.mxu0 %v2326
    %2809 = vmatprep.subr.bf16.mxu0 %v2331
    %2810 = vmatpush1.bf16.msra.mxu0 %v2330
    %2811 = vmatprep.subr.bf16.mxu0 %v2335
    %2812 = vmatpush1.bf16.msra.mxu0 %v2334
    %2813 = vmatprep.subr.bf16.mxu0 %v2339
    %2814 = vmatpush1.bf16.msra.mxu0 %v2338
    %2815 = vmatprep.subr.bf16.mxu0 %v2343
    %2816 = vmatpush1.bf16.msra.mxu0 %v2342
    %2817 = vmatprep.subr.bf16.mxu0 %v2347
    %2818 = vmatpush1.bf16.msra.mxu0 %v2346
    %2819 = vmatprep.subr.bf16.mxu0 %v2351
    %2820 = vmatpush1.bf16.msra.mxu0 %v2350
    %2821 = vmatprep.subr.bf16.mxu0 %v2355
    %2822 = vmatpush1.bf16.msra.mxu0 %v2354
    %2823 = vmatprep.subr.bf16.mxu0 %v2359
    %2824 = vmatpush1.bf16.msra.mxu0 %v2358
    %2825 = vmatprep.subr.bf16.mxu0 %v2363
    %2826 = vmatpush1.bf16.msra.mxu0 %v2362
    %2827 = vmatprep.subr.bf16.mxu0 %v2367
    %2828 = vmatpush1.bf16.msra.mxu0 %v2366
    %2829 = vmatprep.subr.bf16.mxu0 %v2371
    %2830 = vmatpush1.bf16.msra.mxu0 %v2370
    %2831 = vmatprep.mubr.bf16.mxu0 %v1195
    %2832 = vmatmul.mubr.bf16.gmra.mrb[0].mxu0 %v1194
    %v2833 = vpop.f32.mrb[0].mxu0
    %v2834 = vadd.f32 %v2793, %v2833
    %v2835 = vpop.f32.mrb[0].mxu0
    %v2836 = vadd.f32 %v2795, %v2835
    %v2837 = vpop.f32.mrb[0].mxu0
    %v2838 = vpop.f32.mrb[0].mxu0
    %2839 = vdwg.mxu0
    %2840 = vmatprep.subr.bf16.mxu0 %v2375
    %2841 = vmatpush1.bf16.msra.mxu0 %v2374
    %2842 = vmatprep.subr.bf16.mxu0 %v2379
    %2843 = vmatpush1.bf16.msra.mxu0 %v2378
    %2844 = vmatprep.subr.bf16.mxu0 %v2383
    %2845 = vmatpush1.bf16.msra.mxu0 %v2382
    %2846 = vmatprep.subr.bf16.mxu0 %v2387
    %2847 = vmatpush1.bf16.msra.mxu0 %v2386
    %2848 = vmatprep.subr.bf16.mxu0 %v2391
    %2849 = vmatpush1.bf16.msra.mxu0 %v2390
    %2850 = vmatprep.subr.bf16.mxu0 %v2395
    %2851 = vmatpush1.bf16.msra.mxu0 %v2394
    %2852 = vmatprep.subr.bf16.mxu0 %v2399
    %2853 = vmatpush1.bf16.msra.mxu0 %v2398
    %2854 = vmatprep.subr.bf16.mxu0 %v2403
    %2855 = vmatpush1.bf16.msra.mxu0 %v2402
    %2856 = vmatprep.subr.bf16.mxu0 %v2407
    %2857 = vmatpush1.bf16.msra.mxu0 %v2406
    %2858 = vmatprep.subr.bf16.mxu0 %v2411
    %2859 = vmatpush1.bf16.msra.mxu0 %v2410
    %2860 = vmatprep.subr.bf16.mxu0 %v2415
    %2861 = vmatpush1.bf16.msra.mxu0 %v2414
    %2862 = vmatprep.subr.bf16.mxu0 %v2419
    %2863 = vmatpush1.bf16.msra.mxu0 %v2418
    %2864 = vmatprep.subr.bf16.mxu0 %v2423
    %2865 = vmatpush1.bf16.msra.mxu0 %v2422
    %2866 = vmatprep.subr.bf16.mxu0 %v2427
    %2867 = vmatpush1.bf16.msra.mxu0 %v2426
    %2868 = vmatprep.subr.bf16.mxu0 %v2431
    %2869 = vmatpush1.bf16.msra.mxu0 %v2430
    %2870 = vmatprep.subr.bf16.mxu0 %v2435
    %2871 = vmatpush1.bf16.msra.mxu0 %v2434
    %2872 = vmatprep.mubr.bf16.mxu0 %v1197
    %2873 = vmatmul.mubr.bf16.gmra.mrb[0].mxu0 %v1196
    %v2874 = vpop.f32.mrb[0].mxu0
    %v2875 = vadd.f32 %v2834, %v2874
    %v2876 = vpop.f32.mrb[0].mxu0
    %v2877 = vadd.f32 %v2836, %v2876
    %v2878 = vpop.f32.mrb[0].mxu0
    %v2879 = vpop.f32.mrb[0].mxu0
    %2880 = vdwg.mxu0
    %2881 = vmatprep.subr.bf16.mxu0 %v2439
    %2882 = vmatpush1.bf16.msra.mxu0 %v2438
    %2883 = vmatprep.subr.bf16.mxu0 %v2443
    %2884 = vmatpush1.bf16.msra.mxu0 %v2442
    %2885 = vmatprep.subr.bf16.mxu0 %v2447
    %2886 = vmatpush1.bf16.msra.mxu0 %v2446
    %2887 = vmatprep.subr.bf16.mxu0 %v2451
    %2888 = vmatpush1.bf16.msra.mxu0 %v2450
    %2889 = vmatprep.subr.bf16.mxu0 %v2455
    %2890 = vmatpush1.bf16.msra.mxu0 %v2454
    %2891 = vmatprep.subr.bf16.mxu0 %v2459
    %2892 = vmatpush1.bf16.msra.mxu0 %v2458
    %2893 = vmatprep.subr.bf16.mxu0 %v2463
    %2894 = vmatpush1.bf16.msra.mxu0 %v2462
    %2895 = vmatprep.subr.bf16.mxu0 %v2467
    %2896 = vmatpush1.bf16.msra.mxu0 %v2466
    %2897 = vmatprep.subr.bf16.mxu0 %v2471
    %2898 = vmatpush1.bf16.msra.mxu0 %v2470
    %2899 = vmatprep.subr.bf16.mxu0 %v2475
    %2900 = vmatpush1.bf16.msra.mxu0 %v2474
    %2901 = vmatprep.subr.bf16.mxu0 %v2479
    %2902 = vmatpush1.bf16.msra.mxu0 %v2478
    %2903 = vmatprep.subr.bf16.mxu0 %v2483
    %2904 = vmatpush1.bf16.msra.mxu0 %v2482
    %2905 = vmatprep.subr.bf16.mxu0 %v2487
    %2906 = vmatpush1.bf16.msra.mxu0 %v2486
    %2907 = vmatprep.subr.bf16.mxu0 %v2491
    %2908 = vmatpush1.bf16.msra.mxu0 %v2490
    %2909 = vmatprep.subr.bf16.mxu0 %v2495
    %2910 = vmatpush1.bf16.msra.mxu0 %v2494
    %2911 = vmatprep.subr.bf16.mxu0 %v2499
    %2912 = vmatpush1.bf16.msra.mxu0 %v2498
    %2913 = vmatprep.mubr.bf16.mxu0 %v1199
    %2914 = vmatmul.mubr.bf16.gmra.mrb[0].mxu0 %v1198
    %v2915 = vpop.f32.mrb[0].mxu0
    %v2916 = vadd.f32 %v2875, %v2915
    %v2917 = vpop.f32.mrb[0].mxu0
    %v2918 = vadd.f32 %v2877, %v2917
    %v2919 = vpop.f32.mrb[0].mxu0
    %v2920 = vpop.f32.mrb[0].mxu0
    %2921 = vdwg.mxu0
    %2922 = vmatprep.subr.bf16.mxu0 %v2249
    %2923 = vmatpush1.bf16.msra.mxu0 %v2248
    %2924 = vmatprep.subr.bf16.mxu0 %v2253
    %2925 = vmatpush1.bf16.msra.mxu0 %v2252
    %2926 = vmatprep.subr.bf16.mxu0 %v2257
    %2927 = vmatpush1.bf16.msra.mxu0 %v2256
    %2928 = vmatprep.subr.bf16.mxu0 %v2261
    %2929 = vmatpush1.bf16.msra.mxu0 %v2260
    %2930 = vmatprep.subr.bf16.mxu0 %v2265
    %2931 = vmatpush1.bf16.msra.mxu0 %v2264
    %2932 = vmatprep.subr.bf16.mxu0 %v2269
    %2933 = vmatpush1.bf16.msra.mxu0 %v2268
    %2934 = vmatprep.subr.bf16.mxu0 %v2273
    %2935 = vmatpush1.bf16.msra.mxu0 %v2272
    %2936 = vmatprep.subr.bf16.mxu0 %v2277
    %2937 = vmatpush1.bf16.msra.mxu0 %v2276
    %2938 = vmatprep.subr.bf16.mxu0 %v2281
    %2939 = vmatpush1.bf16.msra.mxu0 %v2280
    %2940 = vmatprep.subr.bf16.mxu0 %v2285
    %2941 = vmatpush1.bf16.msra.mxu0 %v2284
    %2942 = vmatprep.subr.bf16.mxu0 %v2289
    %2943 = vmatpush1.bf16.msra.mxu0 %v2288
    %2944 = vmatprep.subr.bf16.mxu0 %v2293
    %2945 = vmatpush1.bf16.msra.mxu0 %v2292
    %2946 = vmatprep.subr.bf16.mxu0 %v2297
    %2947 = vmatpush1.bf16.msra.mxu0 %v2296
    %2948 = vmatprep.subr.bf16.mxu0 %v2301
    %2949 = vmatpush1.bf16.msra.mxu0 %v2300
    %2950 = vmatprep.subr.bf16.mxu0 %v2305
    %2951 = vmatpush1.bf16.msra.mxu0 %v2304
    %2952 = vmatprep.subr.bf16.mxu0 %v2309
    %2953 = vmatpush1.bf16.msra.mxu0 %v2308
    %2954 = vmatprep.mubr.bf16.mxu0 %v1193
    %2955 = vmatmul.mubr.bf16.gmra.mrb[0].mxu0 %v1192
    %v2956 = vpop.f32.mrb[0].mxu0
    %v2957 = vadd.f32 %v1469, %v2956
    %v2958 = vpop.f32.mrb[0].mxu0
    %v2959 = vadd.f32 %v1473, %v2958
    %v2960 = vpop.f32.mrb[0].mxu0
    %v2961 = vpop.f32.mrb[0].mxu0
    %2962 = vdwg.mxu0
    %2963 = vmatprep.subr.bf16.mxu0 %v2313
    %2964 = vmatpush1.bf16.msra.mxu0 %v2312
    %2965 = vmatprep.subr.bf16.mxu0 %v2317
    %2966 = vmatpush1.bf16.msra.mxu0 %v2316
    %2967 = vmatprep.subr.bf16.mxu0 %v2321
    %2968 = vmatpush1.bf16.msra.mxu0 %v2320
    %2969 = vmatprep.subr.bf16.mxu0 %v2325
    %2970 = vmatpush1.bf16.msra.mxu0 %v2324
    %2971 = vmatprep.subr.bf16.mxu0 %v2329
    %2972 = vmatpush1.bf16.msra.mxu0 %v2328
    %2973 = vmatprep.subr.bf16.mxu0 %v2333
    %2974 = vmatpush1.bf16.msra.mxu0 %v2332
    %2975 = vmatprep.subr.bf16.mxu0 %v2337
    %2976 = vmatpush1.bf16.msra.mxu0 %v2336
    %2977 = vmatprep.subr.bf16.mxu0 %v2341
    %2978 = vmatpush1.bf16.msra.mxu0 %v2340
    %2979 = vmatprep.subr.bf16.mxu0 %v2345
    %2980 = vmatpush1.bf16.msra.mxu0 %v2344
    %2981 = vmatprep.subr.bf16.mxu0 %v2349
    %2982 = vmatpush1.bf16.msra.mxu0 %v2348
    %2983 = vmatprep.subr.bf16.mxu0 %v2353
    %2984 = vmatpush1.bf16.msra.mxu0 %v2352
    %2985 = vmatprep.subr.bf16.mxu0 %v2357
    %2986 = vmatpush1.bf16.msra.mxu0 %v2356
    %2987 = vmatprep.subr.bf16.mxu0 %v2361
    %2988 = vmatpush1.bf16.msra.mxu0 %v2360
    %2989 = vmatprep.subr.bf16.mxu0 %v2365
    %2990 = vmatpush1.bf16.msra.mxu0 %v2364
    %2991 = vmatprep.subr.bf16.mxu0 %v2369
    %2992 = vmatpush1.bf16.msra.mxu0 %v2368
    %2993 = vmatprep.subr.bf16.mxu0 %v2373
    %2994 = vmatpush1.bf16.msra.mxu0 %v2372
    %2995 = vmatprep.mubr.bf16.mxu0 %v1195
    %2996 = vmatmul.mubr.bf16.gmra.mrb[0].mxu0 %v1194
    %v2997 = vpop.f32.mrb[0].mxu0
    %v2998 = vadd.f32 %v2957, %v2997
    %v2999 = vpop.f32.mrb[0].mxu0
    %v3000 = vadd.f32 %v2959, %v2999
    %v3001 = vpop.f32.mrb[0].mxu0
    %v3002 = vpop.f32.mrb[0].mxu0
    %3003 = vdwg.mxu0
    %3004 = vmatprep.subr.bf16.mxu0 %v2377
    %3005 = vmatpush1.bf16.msra.mxu0 %v2376
    %3006 = vmatprep.subr.bf16.mxu0 %v2381
    %3007 = vmatpush1.bf16.msra.mxu0 %v2380
    %3008 = vmatprep.subr.bf16.mxu0 %v2385
    %3009 = vmatpush1.bf16.msra.mxu0 %v2384
    %3010 = vmatprep.subr.bf16.mxu0 %v2389
    %3011 = vmatpush1.bf16.msra.mxu0 %v2388
    %3012 = vmatprep.subr.bf16.mxu0 %v2393
    %3013 = vmatpush1.bf16.msra.mxu0 %v2392
    %3014 = vmatprep.subr.bf16.mxu0 %v2397
    %3015 = vmatpush1.bf16.msra.mxu0 %v2396
    %3016 = vmatprep.subr.bf16.mxu0 %v2401
    %3017 = vmatpush1.bf16.msra.mxu0 %v2400
    %3018 = vmatprep.subr.bf16.mxu0 %v2405
    %3019 = vmatpush1.bf16.msra.mxu0 %v2404
    %3020 = vmatprep.subr.bf16.mxu0 %v2409
    %3021 = vmatpush1.bf16.msra.mxu0 %v2408
    %3022 = vmatprep.subr.bf16.mxu0 %v2413
    %3023 = vmatpush1.bf16.msra.mxu0 %v2412
    %3024 = vmatprep.subr.bf16.mxu0 %v2417
    %3025 = vmatpush1.bf16.msra.mxu0 %v2416
    %3026 = vmatprep.subr.bf16.mxu0 %v2421
    %3027 = vmatpush1.bf16.msra.mxu0 %v2420
    %3028 = vmatprep.subr.bf16.mxu0 %v2425
    %3029 = vmatpush1.bf16.msra.mxu0 %v2424
    %3030 = vmatprep.subr.bf16.mxu0 %v2429
    %3031 = vmatpush1.bf16.msra.mxu0 %v2428
    %3032 = vmatprep.subr.bf16.mxu0 %v2433
    %3033 = vmatpush1.bf16.msra.mxu0 %v2432
    %3034 = vmatprep.subr.bf16.mxu0 %v2437
    %3035 = vmatpush1.bf16.msra.mxu0 %v2436
    %3036 = vmatprep.mubr.bf16.mxu0 %v1197
    %3037 = vmatmul.mubr.bf16.gmra.mrb[0].mxu0 %v1196
    %v3038 = vpop.f32.mrb[0].mxu0
    %v3039 = vadd.f32 %v2998, %v3038
    %v3040 = vpop.f32.mrb[0].mxu0
    %v3041 = vadd.f32 %v3000, %v3040
    %v3042 = vpop.f32.mrb[0].mxu0
    %v3043 = vpop.f32.mrb[0].mxu0
    %3044 = vdwg.mxu0
    %3045 = vmatprep.subr.bf16.mxu0 %v2441
    %3046 = vmatpush1.bf16.msra.mxu0 %v2440
    %3047 = vmatprep.subr.bf16.mxu0 %v2445
    %3048 = vmatpush1.bf16.msra.mxu0 %v2444
    %3049 = vmatprep.subr.bf16.mxu0 %v2449
    %3050 = vmatpush1.bf16.msra.mxu0 %v2448
    %3051 = vmatprep.subr.bf16.mxu0 %v2453
    %3052 = vmatpush1.bf16.msra.mxu0 %v2452
    %3053 = vmatprep.subr.bf16.mxu0 %v2457
    %3054 = vmatpush1.bf16.msra.mxu0 %v2456
    %3055 = vmatprep.subr.bf16.mxu0 %v2461
    %3056 = vmatpush1.bf16.msra.mxu0 %v2460
    %3057 = vmatprep.subr.bf16.mxu0 %v2465
    %3058 = vmatpush1.bf16.msra.mxu0 %v2464
    %3059 = vmatprep.subr.bf16.mxu0 %v2469
    %3060 = vmatpush1.bf16.msra.mxu0 %v2468
    %3061 = vmatprep.subr.bf16.mxu0 %v2473
    %3062 = vmatpush1.bf16.msra.mxu0 %v2472
    %3063 = vmatprep.subr.bf16.mxu0 %v2477
    %3064 = vmatpush1.bf16.msra.mxu0 %v2476
    %3065 = vmatprep.subr.bf16.mxu0 %v2481
    %3066 = vmatpush1.bf16.msra.mxu0 %v2480
    %3067 = vmatprep.subr.bf16.mxu0 %v2485
    %3068 = vmatpush1.bf16.msra.mxu0 %v2484
    %3069 = vmatprep.subr.bf16.mxu0 %v2489
    %3070 = vmatpush1.bf16.msra.mxu0 %v2488
    %3071 = vmatprep.subr.bf16.mxu0 %v2493
    %3072 = vmatpush1.bf16.msra.mxu0 %v2492
    %3073 = vmatprep.subr.bf16.mxu0 %v2497
    %3074 = vmatpush1.bf16.msra.mxu0 %v2496
    %3075 = vmatprep.subr.bf16.mxu0 %v2501
    %3076 = vmatpush1.bf16.msra.mxu0 %v2500
    %3077 = vmatprep.mubr.bf16.mxu0 %v1199
    %3078 = vmatmul.mubr.bf16.gmra.mrb[0].mxu0 %v1198
    %v3079 = vpop.f32.mrb[0].mxu0
    %v3080 = vadd.f32 %v3039, %v3079
    %v3081 = vpop.f32.mrb[0].mxu0
    %v3082 = vadd.f32 %v3041, %v3081
    %v3083 = vpop.f32.mrb[0].mxu0
    %v3084 = vpop.f32.mrb[0].mxu0
    %3085 = vdwg.mxu0
    %v3086 = vpack.c.bf16 %v2916, %v2916
    %v3087 = vpack.c.bf16 %v2918, %v2918
    %v3088 = vpack.c.bf16 %v3080, %v3080
    %v3089 = vpack.c.bf16 %v3082, %v3082
    %v3090 = vmul.bf16 %v3086, 1045249613
    %v3091 = vmul.bf16 %v3087, 1045249613
    %v3092 = vmul.bf16 %v3088, 1045249613
    %v3093 = vmul.bf16 %v3089, 1045249613
    %v3094 = vmax.bf16 %v3086, %v3090
    %v3095 = vmax.bf16 %v3087, %v3091
    %v3096 = vmax.bf16 %v3088, %v3092
    %v3097 = vmax.bf16 %v3089, %v3093
    %s3098 = sadd.s32 %s98, 625341585
    %v3099 = vstv %s3098
    %v3100 = vadd.s32 %v1117, %v3099
    %v3101 = vadd.s32 %v3100, %v1120
    %v3102 = vadd.s32 %v3100, %v1121
    %v3103 = vadd.s32 %v3100, %v1122
    %v3104 = vadd.s32 %v3100, %v1123
    %v3105 = vshrl.u32 %v3101, 15
    %v3106 = vshrl.u32 %v3102, 15
    %v3107 = vshrl.u32 %v3103, 15
    %v3108 = vshrl.u32 %v3104, 15
    %v3109 = vxor.u32 %v3101, %v3105
    %v3110 = vxor.u32 %v3102, %v3106
    %v3111 = vxor.u32 %v3103, %v3107
    %v3112 = vxor.u32 %v3104, %v3108
    %v3113 = vmul.u32 %v3109, 2146121005
    %v3114 = vmul.u32 %v3110, 2146121005
    %v3115 = vmul.u32 %v3111, 2146121005
    %v3116 = vmul.u32 %v3112, 2146121005
    %v3117 = vshrl.u32 %v3113, 13
    %v3118 = vshrl.u32 %v3114, 13
    %v3119 = vshrl.u32 %v3115, 13
    %v3120 = vshrl.u32 %v3116, 13
    %v3121 = vxor.u32 %v3113, %v3117
    %v3122 = vxor.u32 %v3114, %v3118
    %v3123 = vxor.u32 %v3115, %v3119
    %v3124 = vxor.u32 %v3116, %v3120
    %vm3125 = vcmp.ge.u32.totalorder %v3121, 1288490189
    %vm3126 = vcmp.ge.u32.totalorder %v3122, 1288490189
    %vm3127 = vcmp.ge.u32.totalorder %v3123, 1288490189
    %vm3128 = vcmp.ge.u32.totalorder %v3124, 1288490189
    %vm3129 = vmpackc.low %vm3125, %vm3125
    %vm3130 = vmpackc.low %vm3126, %vm3126
    %vm3131 = vmpackc.low %vm3127, %vm3127
    %vm3132 = vmpackc.low %vm3128, %vm3128
    %v3133 = vsel %vm3129, %v3094, 0
    %v3134 = vsel %vm3130, %v3095, 0
    %v3135 = vsel %vm3131, %v3096, 0
    %v3136 = vsel %vm3132, %v3097, 0
    %v3137 = vld [vmem:[#allocation10] sm:$0xff]
    %v3138 = vld [vmem:[#allocation10 + $0x8] sm:$0xff]
    %v3139 = vld [vmem:[#allocation10 + $0x10] sm:$0xff]
    %v3140 = vld [vmem:[#allocation10 + $0x18] sm:$0xff]
    %v3141 = vld [vmem:[#allocation10 + $0x20] sm:$0xff]
    %v3142 = vld [vmem:[#allocation10 + $0x28] sm:$0xff]
    %v3143 = vld [vmem:[#allocation10 + $0x30] sm:$0xff]
    %v3144 = vld [vmem:[#allocation10 + $0x38] sm:$0xff]
    %v3145 = vld [vmem:[#allocation10 + $0x40] sm:$0xff]
    %v3146 = vld [vmem:[#allocation10 + $0x48] sm:$0xff]
    %v3147 = vld [vmem:[#allocation10 + $0x50] sm:$0xff]
    %v3148 = vld [vmem:[#allocation10 + $0x58] sm:$0xff]
    %v3149 = vld [vmem:[#allocation10 + $0x60] sm:$0xff]
    %v3150 = vld [vmem:[#allocation10 + $0x68] sm:$0xff]
    %v3151 = vld [vmem:[#allocation10 + $0x70] sm:$0xff]
    %v3152 = vld [vmem:[#allocation10 + $0x78] sm:$0xff]
    %v3153 = vld [vmem:[#allocation10 + $0x80] sm:$0xff]
    %v3154 = vld [vmem:[#allocation10 + $0x88] sm:$0xff]
    %v3155 = vld [vmem:[#allocation10 + $0x90] sm:$0xff]
    %v3156 = vld [vmem:[#allocation10 + $0x98] sm:$0xff]
    %v3157 = vld [vmem:[#allocation10 + $0xa0] sm:$0xff]
    %v3158 = vld [vmem:[#allocation10 + $0xa8] sm:$0xff]
    %v3159 = vld [vmem:[#allocation10 + $0xb0] sm:$0xff]
    %v3160 = vld [vmem:[#allocation10 + $0xb8] sm:$0xff]
    %v3161 = vld [vmem:[#allocation10 + $0xc0] sm:$0xff]
    %v3162 = vld [vmem:[#allocation10 + $0xc8] sm:$0xff]
    %v3163 = vld [vmem:[#allocation10 + $0xd0] sm:$0xff]
    %v3164 = vld [vmem:[#allocation10 + $0xd8] sm:$0xff]
    %v3165 = vld [vmem:[#allocation10 + $0xe0] sm:$0xff]
    %v3166 = vld [vmem:[#allocation10 + $0xe8] sm:$0xff]
    %v3167 = vld [vmem:[#allocation10 + $0xf0] sm:$0xff]
    %v3168 = vld [vmem:[#allocation10 + $0xf8] sm:$0xff]
    %v3169 = vld [vmem:[#allocation10 + $0x100] sm:$0xff]
    %v3170 = vld [vmem:[#allocation10 + $0x108] sm:$0xff]
    %v3171 = vld [vmem:[#allocation10 + $0x110] sm:$0xff]
    %v3172 = vld [vmem:[#allocation10 + $0x118] sm:$0xff]
    %v3173 = vld [vmem:[#allocation10 + $0x120] sm:$0xff]
    %v3174 = vld [vmem:[#allocation10 + $0x128] sm:$0xff]
    %v3175 = vld [vmem:[#allocation10 + $0x130] sm:$0xff]
    %v3176 = vld [vmem:[#allocation10 + $0x138] sm:$0xff]
    %v3177 = vld [vmem:[#allocation10 + $0x140] sm:$0xff]
    %v3178 = vld [vmem:[#allocation10 + $0x148] sm:$0xff]
    %v3179 = vld [vmem:[#allocation10 + $0x150] sm:$0xff]
    %v3180 = vld [vmem:[#allocation10 + $0x158] sm:$0xff]
    %v3181 = vld [vmem:[#allocation10 + $0x160] sm:$0xff]
    %v3182 = vld [vmem:[#allocation10 + $0x168] sm:$0xff]
    %v3183 = vld [vmem:[#allocation10 + $0x170] sm:$0xff]
    %v3184 = vld [vmem:[#allocation10 + $0x178] sm:$0xff]
    %v3185 = vld [vmem:[#allocation10 + $0x180] sm:$0xff]
    %v3186 = vld [vmem:[#allocation10 + $0x188] sm:$0xff]
    %v3187 = vld [vmem:[#allocation10 + $0x190] sm:$0xff]
    %v3188 = vld [vmem:[#allocation10 + $0x198] sm:$0xff]
    %v3189 = vld [vmem:[#allocation10 + $0x1a0] sm:$0xff]
    %v3190 = vld [vmem:[#allocation10 + $0x1a8] sm:$0xff]
    %v3191 = vld [vmem:[#allocation10 + $0x1b0] sm:$0xff]
    %v3192 = vld [vmem:[#allocation10 + $0x1b8] sm:$0xff]
    %v3193 = vld [vmem:[#allocation10 + $0x1c0] sm:$0xff]
    %v3194 = vld [vmem:[#allocation10 + $0x1c8] sm:$0xff]
    %v3195 = vld [vmem:[#allocation10 + $0x1d0] sm:$0xff]
    %v3196 = vld [vmem:[#allocation10 + $0x1d8] sm:$0xff]
    %v3197 = vld [vmem:[#allocation10 + $0x1e0] sm:$0xff]
    %v3198 = vld [vmem:[#allocation10 + $0x1e8] sm:$0xff]
    %v3199 = vld [vmem:[#allocation10 + $0x1f0] sm:$0xff]
    %v3200 = vld [vmem:[#allocation10 + $0x1f8] sm:$0xff]
    %v3201 = vld [vmem:[%s7] sm:$0x3]
    %v3203 = vlaneseq
    %v3204 = vshrl.u32 %v3203, 7
    %v3205 = vsub.s32 0, %v3204
    %v3206 = vrot.slane %v3201, %v3205
    %v3207 = vlaneseq
    %v3208 = vshrl.u32 %v3207, 7
    %v3209 = vsub.s32 1, %v3208
    %v3210 = vrot.slane %v3201, %v3209
    %v3277 = vunpack.c.l.b16 %v3137
    %v3278 = vunpack.c.h.b16 %v3137
    %v3279 = vunpack.c.l.b16 %v3138
    %v3280 = vunpack.c.h.b16 %v3138
    %v3281 = vunpack.c.l.b16 %v3139
    %v3282 = vunpack.c.h.b16 %v3139
    %v3283 = vunpack.c.l.b16 %v3140
    %v3284 = vunpack.c.h.b16 %v3140
    %v3285 = vunpack.c.l.b16 %v3141
    %v3286 = vunpack.c.h.b16 %v3141
    %v3287 = vunpack.c.l.b16 %v3142
    %v3288 = vunpack.c.h.b16 %v3142
    %v3289 = vunpack.c.l.b16 %v3143
    %v3290 = vunpack.c.h.b16 %v3143
    %v3291 = vunpack.c.l.b16 %v3144
    %v3292 = vunpack.c.h.b16 %v3144
    %v3293 = vunpack.c.l.b16 %v3145
    %v3294 = vunpack.c.h.b16 %v3145
    %v3295 = vunpack.c.l.b16 %v3146
    %v3296 = vunpack.c.h.b16 %v3146
    %v3297 = vunpack.c.l.b16 %v3147
    %v3298 = vunpack.c.h.b16 %v3147
    %v3299 = vunpack.c.l.b16 %v3148
    %v3300 = vunpack.c.h.b16 %v3148
    %v3301 = vunpack.c.l.b16 %v3149
    %v3302 = vunpack.c.h.b16 %v3149
    %v3303 = vunpack.c.l.b16 %v3150
    %v3304 = vunpack.c.h.b16 %v3150
    %v3305 = vunpack.c.l.b16 %v3151
    %v3306 = vunpack.c.h.b16 %v3151
    %v3307 = vunpack.c.l.b16 %v3152
    %v3308 = vunpack.c.h.b16 %v3152
    %v3309 = vunpack.c.l.b16 %v3153
    %v3310 = vunpack.c.h.b16 %v3153
    %v3311 = vunpack.c.l.b16 %v3154
    %v3312 = vunpack.c.h.b16 %v3154
    %v3313 = vunpack.c.l.b16 %v3155
    %v3314 = vunpack.c.h.b16 %v3155
    %v3315 = vunpack.c.l.b16 %v3156
    %v3316 = vunpack.c.h.b16 %v3156
    %v3317 = vunpack.c.l.b16 %v3157
    %v3318 = vunpack.c.h.b16 %v3157
    %v3319 = vunpack.c.l.b16 %v3158
    %v3320 = vunpack.c.h.b16 %v3158
    %v3321 = vunpack.c.l.b16 %v3159
    %v3322 = vunpack.c.h.b16 %v3159
    %v3323 = vunpack.c.l.b16 %v3160
    %v3324 = vunpack.c.h.b16 %v3160
    %v3325 = vunpack.c.l.b16 %v3161
    %v3326 = vunpack.c.h.b16 %v3161
    %v3327 = vunpack.c.l.b16 %v3162
    %v3328 = vunpack.c.h.b16 %v3162
    %v3329 = vunpack.c.l.b16 %v3163
    %v3330 = vunpack.c.h.b16 %v3163
    %v3331 = vunpack.c.l.b16 %v3164
    %v3332 = vunpack.c.h.b16 %v3164
    %v3333 = vunpack.c.l.b16 %v3165
    %v3334 = vunpack.c.h.b16 %v3165
    %v3335 = vunpack.c.l.b16 %v3166
    %v3336 = vunpack.c.h.b16 %v3166
    %v3337 = vunpack.c.l.b16 %v3167
    %v3338 = vunpack.c.h.b16 %v3167
    %v3339 = vunpack.c.l.b16 %v3168
    %v3340 = vunpack.c.h.b16 %v3168
    %v3341 = vunpack.c.l.b16 %v3169
    %v3342 = vunpack.c.h.b16 %v3169
    %v3343 = vunpack.c.l.b16 %v3170
    %v3344 = vunpack.c.h.b16 %v3170
    %v3345 = vunpack.c.l.b16 %v3171
    %v3346 = vunpack.c.h.b16 %v3171
    %v3347 = vunpack.c.l.b16 %v3172
    %v3348 = vunpack.c.h.b16 %v3172
    %v3349 = vunpack.c.l.b16 %v3173
    %v3350 = vunpack.c.h.b16 %v3173
    %v3351 = vunpack.c.l.b16 %v3174
    %v3352 = vunpack.c.h.b16 %v3174
    %v3353 = vunpack.c.l.b16 %v3175
    %v3354 = vunpack.c.h.b16 %v3175
    %v3355 = vunpack.c.l.b16 %v3176
    %v3356 = vunpack.c.h.b16 %v3176
    %v3357 = vunpack.c.l.b16 %v3177
    %v3358 = vunpack.c.h.b16 %v3177
    %v3359 = vunpack.c.l.b16 %v3178
    %v3360 = vunpack.c.h.b16 %v3178
    %v3361 = vunpack.c.l.b16 %v3179
    %v3362 = vunpack.c.h.b16 %v3179
    %v3363 = vunpack.c.l.b16 %v3180
    %v3364 = vunpack.c.h.b16 %v3180
    %v3365 = vunpack.c.l.b16 %v3181
    %v3366 = vunpack.c.h.b16 %v3181
    %v3367 = vunpack.c.l.b16 %v3182
    %v3368 = vunpack.c.h.b16 %v3182
    %v3369 = vunpack.c.l.b16 %v3183
    %v3370 = vunpack.c.h.b16 %v3183
    %v3371 = vunpack.c.l.b16 %v3184
    %v3372 = vunpack.c.h.b16 %v3184
    %v3373 = vunpack.c.l.b16 %v3185
    %v3374 = vunpack.c.h.b16 %v3185
    %v3375 = vunpack.c.l.b16 %v3186
    %v3376 = vunpack.c.h.b16 %v3186
    %v3377 = vunpack.c.l.b16 %v3187
    %v3378 = vunpack.c.h.b16 %v3187
    %v3379 = vunpack.c.l.b16 %v3188
    %v3380 = vunpack.c.h.b16 %v3188
    %v3381 = vunpack.c.l.b16 %v3189
    %v3382 = vunpack.c.h.b16 %v3189
    %v3383 = vunpack.c.l.b16 %v3190
    %v3384 = vunpack.c.h.b16 %v3190
    %v3385 = vunpack.c.l.b16 %v3191
    %v3386 = vunpack.c.h.b16 %v3191
    %v3387 = vunpack.c.l.b16 %v3192
    %v3388 = vunpack.c.h.b16 %v3192
    %v3389 = vunpack.c.l.b16 %v3193
    %v3390 = vunpack.c.h.b16 %v3193
    %v3391 = vunpack.c.l.b16 %v3194
    %v3392 = vunpack.c.h.b16 %v3194
    %v3393 = vunpack.c.l.b16 %v3195
    %v3394 = vunpack.c.h.b16 %v3195
    %v3395 = vunpack.c.l.b16 %v3196
    %v3396 = vunpack.c.h.b16 %v3196
    %v3397 = vunpack.c.l.b16 %v3197
    %v3398 = vunpack.c.h.b16 %v3197
    %v3399 = vunpack.c.l.b16 %v3198
    %v3400 = vunpack.c.h.b16 %v3198
    %v3401 = vunpack.c.l.b16 %v3199
    %v3402 = vunpack.c.h.b16 %v3199
    %v3403 = vunpack.c.l.b16 %v3200
    %v3404 = vunpack.c.h.b16 %v3200
    %v3405 = vpack.c.b16 %v3279, %v3277
    %v3406 = vpack.c.b16 %v3280, %v3278
    %v3407 = vpack.c.b16 %v3283, %v3281
    %v3408 = vpack.c.b16 %v3284, %v3282
    %v3409 = vpack.c.b16 %v3287, %v3285
    %v3410 = vpack.c.b16 %v3288, %v3286
    %v3411 = vpack.c.b16 %v3291, %v3289
    %v3412 = vpack.c.b16 %v3292, %v3290
    %v3413 = vpack.c.b16 %v3295, %v3293
    %v3414 = vpack.c.b16 %v3296, %v3294
    %v3415 = vpack.c.b16 %v3299, %v3297
    %v3416 = vpack.c.b16 %v3300, %v3298
    %v3417 = vpack.c.b16 %v3303, %v3301
    %v3418 = vpack.c.b16 %v3304, %v3302
    %v3419 = vpack.c.b16 %v3307, %v3305
    %v3420 = vpack.c.b16 %v3308, %v3306
    %v3421 = vpack.c.b16 %v3311, %v3309
    %v3422 = vpack.c.b16 %v3312, %v3310
    %v3423 = vpack.c.b16 %v3315, %v3313
    %v3424 = vpack.c.b16 %v3316, %v3314
    %v3425 = vpack.c.b16 %v3319, %v3317
    %v3426 = vpack.c.b16 %v3320, %v3318
    %v3427 = vpack.c.b16 %v3323, %v3321
    %v3428 = vpack.c.b16 %v3324, %v3322
    %v3429 = vpack.c.b16 %v3327, %v3325
    %v3430 = vpack.c.b16 %v3328, %v3326
    %v3431 = vpack.c.b16 %v3331, %v3329
    %v3432 = vpack.c.b16 %v3332, %v3330
    %v3433 = vpack.c.b16 %v3335, %v3333
    %v3434 = vpack.c.b16 %v3336, %v3334
    %v3435 = vpack.c.b16 %v3339, %v3337
    %v3436 = vpack.c.b16 %v3340, %v3338
    %v3437 = vpack.c.b16 %v3343, %v3341
    %v3438 = vpack.c.b16 %v3344, %v3342
    %v3439 = vpack.c.b16 %v3347, %v3345
    %v3440 = vpack.c.b16 %v3348, %v3346
    %v3441 = vpack.c.b16 %v3351, %v3349
    %v3442 = vpack.c.b16 %v3352, %v3350
    %v3443 = vpack.c.b16 %v3355, %v3353
    %v3444 = vpack.c.b16 %v3356, %v3354
    %v3445 = vpack.c.b16 %v3359, %v3357
    %v3446 = vpack.c.b16 %v3360, %v3358
    %v3447 = vpack.c.b16 %v3363, %v3361
    %v3448 = vpack.c.b16 %v3364, %v3362
    %v3449 = vpack.c.b16 %v3367, %v3365
    %v3450 = vpack.c.b16 %v3368, %v3366
    %v3451 = vpack.c.b16 %v3371, %v3369
    %v3452 = vpack.c.b16 %v3372, %v3370
    %v3453 = vpack.c.b16 %v3375, %v3373
    %v3454 = vpack.c.b16 %v3376, %v3374
    %v3455 = vpack.c.b16 %v3379, %v3377
    %v3456 = vpack.c.b16 %v3380, %v3378
    %v3457 = vpack.c.b16 %v3383, %v3381
    %v3458 = vpack.c.b16 %v3384, %v3382
    %v3459 = vpack.c.b16 %v3387, %v3385
    %v3460 = vpack.c.b16 %v3388, %v3386
    %v3461 = vpack.c.b16 %v3391, %v3389
    %v3462 = vpack.c.b16 %v3392, %v3390
    %v3463 = vpack.c.b16 %v3395, %v3393
    %v3464 = vpack.c.b16 %v3396, %v3394
    %v3465 = vpack.c.b16 %v3399, %v3397
    %v3466 = vpack.c.b16 %v3400, %v3398
    %v3467 = vpack.c.b16 %v3403, %v3401
    %v3468 = vpack.c.b16 %v3404, %v3402
    %3533 = vmatprep.subr.bf16.mxu0 %v3406
    %3534 = vmatpush1.bf16.msra.mxu0 %v3405
    %3535 = vmatprep.subr.bf16.mxu0 %v3408
    %3536 = vmatpush1.bf16.msra.mxu0 %v3407
    %3537 = vmatprep.subr.bf16.mxu0 %v3410
    %3538 = vmatpush1.bf16.msra.mxu0 %v3409
    %3539 = vmatprep.subr.bf16.mxu0 %v3412
    %3540 = vmatpush1.bf16.msra.mxu0 %v3411
    %3541 = vmatprep.subr.bf16.mxu0 %v3414
    %3542 = vmatpush1.bf16.msra.mxu0 %v3413
    %3543 = vmatprep.subr.bf16.mxu0 %v3416
    %3544 = vmatpush1.bf16.msra.mxu0 %v3415
    %3545 = vmatprep.subr.bf16.mxu0 %v3418
    %3546 = vmatpush1.bf16.msra.mxu0 %v3417
    %3547 = vmatprep.subr.bf16.mxu0 %v3420
    %3548 = vmatpush1.bf16.msra.mxu0 %v3419
    %3549 = vmatprep.subr.bf16.mxu0 %v3422
    %3550 = vmatpush1.bf16.msra.mxu0 %v3421
    %3551 = vmatprep.subr.bf16.mxu0 %v3424
    %3552 = vmatpush1.bf16.msra.mxu0 %v3423
    %3553 = vmatprep.subr.bf16.mxu0 %v3426
    %3554 = vmatpush1.bf16.msra.mxu0 %v3425
    %3555 = vmatprep.subr.bf16.mxu0 %v3428
    %3556 = vmatpush1.bf16.msra.mxu0 %v3427
    %3557 = vmatprep.subr.bf16.mxu0 %v3430
    %3558 = vmatpush1.bf16.msra.mxu0 %v3429
    %3559 = vmatprep.subr.bf16.mxu0 %v3432
    %3560 = vmatpush1.bf16.msra.mxu0 %v3431
    %3561 = vmatprep.subr.bf16.mxu0 %v3434
    %3562 = vmatpush1.bf16.msra.mxu0 %v3433
    %3563 = vmatprep.subr.bf16.mxu0 %v3436
    %3564 = vmatpush1.bf16.msra.mxu0 %v3435
    %3565 = vmatprep.mubr.bf16.mxu0 %v3134
    %3566 = vmatmul.mubr.bf16.gmra.mrb[0].mxu0 %v3133
    %v3567 = vpop.f32.mrb[0].mxu0
    %v3568 = vadd.f32 %v3206, %v3567
    %v3569 = vpop.f32.mrb[0].mxu0
    %v3570 = vadd.f32 %v3210, %v3569
    %v3571 = vpop.f32.mrb[0].mxu0
    %v3572 = vpop.f32.mrb[0].mxu0
    %3573 = vdwg.mxu0
    %3574 = vmatprep.subr.bf16.mxu0 %v3438
    %3575 = vmatpush1.bf16.msra.mxu0 %v3437
    %3576 = vmatprep.subr.bf16.mxu0 %v3440
    %3577 = vmatpush1.bf16.msra.mxu0 %v3439
    %3578 = vmatprep.subr.bf16.mxu0 %v3442
    %3579 = vmatpush1.bf16.msra.mxu0 %v3441
    %3580 = vmatprep.subr.bf16.mxu0 %v3444
    %3581 = vmatpush1.bf16.msra.mxu0 %v3443
    %3582 = vmatprep.subr.bf16.mxu0 %v3446
    %3583 = vmatpush1.bf16.msra.mxu0 %v3445
    %3584 = vmatprep.subr.bf16.mxu0 %v3448
    %3585 = vmatpush1.bf16.msra.mxu0 %v3447
    %3586 = vmatprep.subr.bf16.mxu0 %v3450
    %3587 = vmatpush1.bf16.msra.mxu0 %v3449
    %3588 = vmatprep.subr.bf16.mxu0 %v3452
    %3589 = vmatpush1.bf16.msra.mxu0 %v3451
    %3590 = vmatprep.subr.bf16.mxu0 %v3454
    %3591 = vmatpush1.bf16.msra.mxu0 %v3453
    %3592 = vmatprep.subr.bf16.mxu0 %v3456
    %3593 = vmatpush1.bf16.msra.mxu0 %v3455
    %3594 = vmatprep.subr.bf16.mxu0 %v3458
    %3595 = vmatpush1.bf16.msra.mxu0 %v3457
    %3596 = vmatprep.subr.bf16.mxu0 %v3460
    %3597 = vmatpush1.bf16.msra.mxu0 %v3459
    %3598 = vmatprep.subr.bf16.mxu0 %v3462
    %3599 = vmatpush1.bf16.msra.mxu0 %v3461
    %3600 = vmatprep.subr.bf16.mxu0 %v3464
    %3601 = vmatpush1.bf16.msra.mxu0 %v3463
    %3602 = vmatprep.subr.bf16.mxu0 %v3466
    %3603 = vmatpush1.bf16.msra.mxu0 %v3465
    %3604 = vmatprep.subr.bf16.mxu0 %v3468
    %3605 = vmatpush1.bf16.msra.mxu0 %v3467
    %3606 = vmatprep.mubr.bf16.mxu0 %v3136
    %3607 = vmatmul.mubr.bf16.gmra.mrb[0].mxu0 %v3135
    %v3608 = vpop.f32.mrb[0].mxu0
    %v3609 = vadd.f32 %v3568, %v3608
    %v3610 = vpop.f32.mrb[0].mxu0
    %v3611 = vadd.f32 %v3570, %v3610
    %v3612 = vpop.f32.mrb[0].mxu0
    %v3613 = vpop.f32.mrb[0].mxu0
    %3614 = vdwg.mxu0
    %v3615 = vpack.c.bf16 %v3609, %v3609
    %v3616 = vpack.c.bf16 %v3611, %v3611
    %v3617 = vmul.bf16 %v3615, 1045249613
    %v3618 = vmul.bf16 %v3616, 1045249613
    %v3619 = vmax.bf16 %v3615, %v3617
    %v3620 = vmax.bf16 %v3616, %v3618
    %s3621 = sadd.s32 %s98, 1759714724
    %v3622 = vstv %s3621
    %v3623 = vadd.s32 %v1117, %v3622
    %v3624 = vadd.s32 %v3623, %v1120
    %v3625 = vadd.s32 %v3623, %v1121
    %v3626 = vshrl.u32 %v3624, 15
    %v3627 = vshrl.u32 %v3625, 15
    %v3628 = vxor.u32 %v3624, %v3626
    %v3629 = vxor.u32 %v3625, %v3627
    %v3630 = vmul.u32 %v3628, 2146121005
    %v3631 = vmul.u32 %v3629, 2146121005
    %v3632 = vshrl.u32 %v3630, 13
    %v3633 = vshrl.u32 %v3631, 13
    %v3634 = vxor.u32 %v3630, %v3632
    %v3635 = vxor.u32 %v3631, %v3633
    %vm3636 = vcmp.ge.u32.totalorder %v3634, 1288490189
    %vm3637 = vcmp.ge.u32.totalorder %v3635, 1288490189
    %vm3638 = vmpackc.low %vm3636, %vm3636
    %vm3639 = vmpackc.low %vm3637, %vm3637
    %v3640 = vsel %vm3638, %v3619, 0
    %v3641 = vsel %vm3639, %v3620, 0
    %v3642 = vld [vmem:[%s8] sm:$0x3]
    %v3643 = vunpack.c.l.bf16 %v3640
    %v3644 = vunpack.c.l.bf16 %v3641
    %v3646 = vlaneseq
    %v3647 = vshrl.u32 %v3646, 7
    %v3648 = vsub.s32 0, %v3647
    %v3649 = vrot.slane %v3642, %v3648
    %v3650 = vlaneseq
    %v3651 = vshrl.u32 %v3650, 7
    %v3652 = vsub.s32 1, %v3651
    %v3653 = vrot.slane %v3642, %v3652
    %v3656 = vmul.f32 %v3643, %v3649
    %v3657 = vmul.f32 %v3644, %v3653
    %v3658 = vadd.f32 %v3656, %v3657
    %3659 = vadd.xlane.f32.xlu0 %v3658
    %v3660 = vpop.xlane.xlu0 %3659
    %v3661 = vld [vmem:[#allocation3] sm:$0x1]
    %v3663 = vlaneseq
    %v3664 = vshrl.u32 %v3663, 7
    %v3665 = vsub.s32 0, %v3664
    %v3666 = vrot.slane %v3661, %v3665
    %v3668 = vadd.f32 %v3660, %v3666
    %v3669 = vmul.f32 %v3668, 0.5
    %v3670 = vtanh.pop %v3669
    %v3671 = vadd.f32 %v3670, 1.0
    %v3672 = vmul.f32 %v3671, 0.5
    %3674 = vset.pattern.permute.xlu0 0
    %3675 = vperm.xlu0 %3674, %v3672
    %v3676 = vpop.permute.xlu0 %3675
    %v3677 = vlaneseq
    %v3678 = vshrl.u32 %v3677, 7
    %v3679 = vsub.s32 %v1109, %v3678
    %v3680 = vrot.slane %v3676, %v3679
    %vm3682 = vcmask 57344
    %3683 = vst.msk [vmem:[#allocation12] sm:$0x1] %vm3682, %v3680
    // Predicated region
    $region58: #{tpu_custom_call.1} parent=1 // pred_check
      _
    $region59: #{tpu_custom_call.1} parent=1 // pred_check_branch
      %3685 = sbr.rel (0) target = $region61
    $region60: #{tpu_custom_call.1} parent=1 // pred_region
      %s3687 = ssub.s32 16, 16
      %3688 = vsyncadd [#allocation6], %s3687
      %s3690 = sshll.u32 [#allocation12], 4
      %s3691 = int_to_ptr.vmem [resolvable:$true] %s3690
      %3693 = dma.vmem_to_hbm [thread:$0]  %s3691, 16, %s10, [#allocation6]
    $region61: #{tpu_custom_call.1} parent=1 // pred_fallthru
      _
    // Predicated region
    $region62: #{tpu_custom_call.1} parent=1 // pred_check
      _
    $region63: #{tpu_custom_call.1} parent=1 // pred_check_branch
      %3695 = sbr.rel (0) target = $region65
    $region64: #{tpu_custom_call.1} parent=1 // pred_region
      %3696 = dma.done [#allocation6], 16
    $region65: #{tpu_custom_call.1} parent=1 // pred_fallthru
      _
    %3697 = vsyncpa [#allocation5], 1
    %3698 = vsyncpa [#allocation8], 1
    %3699 = vsyncpa [#allocation11], 1
    %3700 = vsyncpa [#allocation6], 1

</llo_original>
